<compile_context>
chip_gen: v7x
topology: tpu7x:2x2x1
jax: 0.10.0
libtpu: 0.0.40
codegen_flags: <defaults>
</compile_context>

<pallas_src>
import jax
import jax.numpy as jnp
from jax.experimental import pallas as pl
from jax.experimental.pallas import tpu as pltpu


def _rgenerator_kernel(x_ref,
                       wih1_ref, bih1_ref, whh1_ref, bhh1_ref,
                       wih2_ref, bih2_ref, whh2_ref, bhh2_ref,
                       wproj_ref, bproj_ref,
                       out_ref):
    # x_ref:     (T, B)            float32 (lane-dense, singleton squeezed)
    # wih1_ref:  (3, 1, dim)       layer-0 input weights, per gate (input size 1)
    # bih1_ref:  (3, 1, dim)
    # whh1_ref:  (3, dim, dim)     layer-0 recurrent weights, per gate, pre-transposed
    # bhh1_ref:  (3, 1, dim)
    # wih2_ref:  (3, dim, dim)     layer-1 input weights, per gate, pre-transposed
    # bih2_ref:  (3, 1, dim)
    # whh2_ref:  (3, dim, dim)
    # bhh2_ref:  (3, 1, dim)
    # wproj_ref: (1, dim)
    # bproj_ref: (1, 1)
    # out_ref:   (T, B)
    T, B = x_ref.shape
    dim = whh1_ref.shape[-1]
    f32 = jnp.float32

    x_col = x_ref[...][:, :, None]                       # (T, B, 1)

    # ---------------- Layer 0 ----------------
    # Hoisted input-to-hidden: broadcast multiply (VPU), off the serial chain.
    gi1 = [x_col * wih1_ref[g] + bih1_ref[g] for g in range(3)]   # 3 x (T, B, dim)

    whh1 = [whh1_ref[g] for g in range(3)]               # pinned in vregs
    bhh1 = [bhh1_ref[g] for g in range(3)]

    h = jnp.zeros((B, dim), f32)
    h1_steps = []
    for t in range(T):                                    # static unroll (T small, fixed)
        gh_r = jnp.dot(h, whh1[0], preferred_element_type=f32) + bhh1[0]
        gh_z = jnp.dot(h, whh1[1], preferred_element_type=f32) + bhh1[1]
        gh_n = jnp.dot(h, whh1[2], preferred_element_type=f32) + bhh1[2]
        r = jax.nn.sigmoid(gi1[0][t] + gh_r)
        z = jax.nn.sigmoid(gi1[1][t] + gh_z)
        n = jnp.tanh(gi1[2][t] + r * gh_n)
        h = (1.0 - z) * n + z * h
        h1_steps.append(h)

    h1_all = jnp.stack(h1_steps, axis=0)                  # (T, B, dim)

    # ---------------- Layer 1 ----------------
    # Hoisted input-to-hidden: one batched matmul per gate over all timesteps.
    h1_flat = h1_all.reshape(T * B, dim)
    gi2 = [
        (jnp.dot(h1_flat, wih2_ref[g], preferred_element_type=f32)
         + bih2_ref[g]).reshape(T, B, dim)
        for g in range(3)
    ]

    whh2 = [whh2_ref[g] for g in range(3)]
    bhh2 = [bhh2_ref[g] for g in range(3)]

    h = jnp.zeros((B, dim), f32)
    h2_steps = []
    for t in range(T):
        gh_r = jnp.dot(h, whh2[0], preferred_element_type=f32) + bhh2[0]
        gh_z = jnp.dot(h, whh2[1], preferred_element_type=f32) + bhh2[1]
        gh_n = jnp.dot(h, whh2[2], preferred_element_type=f32) + bhh2[2]
        r = jax.nn.sigmoid(gi2[0][t] + gh_r)
        z = jax.nn.sigmoid(gi2[1][t] + gh_z)
        n = jnp.tanh(gi2[2][t] + r * gh_n)
        h = (1.0 - z) * n + z * h
        h2_steps.append(h)

    h2_all = jnp.stack(h2_steps, axis=0)                  # (T, B, dim)

    # ---------------- Projection ----------------
    # N=1 linear as VPU multiply + lane reduction (no MXU push/drain).
    out = jnp.sum(h2_all * wproj_ref[...], axis=-1) + bproj_ref[...]   # (T, B)
    out_ref[...] = out.astype(out_ref.dtype)


def rgenerator_forward(x, params):
    """x: (T, B, 1) float32.  Returns (T, B, 1) like PyTorch RGenerator."""
    (w_ih_l0, w_hh_l0, b_ih_l0, b_hh_l0,
     w_ih_l1, w_hh_l1, b_ih_l1, b_hh_l1,
     w_proj, b_proj) = params
    T, B, _ = x.shape
    dim = w_hh_l0.shape[1]

    # Per-gate, lane-aligned parameter layouts (gate order r, z, n — PyTorch).
    wih1 = w_ih_l0.reshape(3, dim)[:, None, :]                       # (3, 1, dim)
    bih1 = b_ih_l0.reshape(3, 1, dim)
    whh1 = w_hh_l0.reshape(3, dim, dim).transpose(0, 2, 1)           # (3, dim, dim) = W_hg.T
    bhh1 = b_hh_l0.reshape(3, 1, dim)
    wih2 = w_ih_l1.reshape(3, dim, dim).transpose(0, 2, 1)           # (3, dim, dim) = W_ig.T
    bih2 = b_ih_l1.reshape(3, 1, dim)
    whh2 = w_hh_l1.reshape(3, dim, dim).transpose(0, 2, 1)
    bhh2 = b_hh_l1.reshape(3, 1, dim)
    wproj = w_proj.reshape(1, dim)
    bproj = b_proj.reshape(1, 1)

    x_dense = x.reshape(T, B)                                        # lane-dense input

    vmem = pl.BlockSpec(memory_space=pltpu.MemorySpace.VMEM)
    out = pl.pallas_call(
        _rgenerator_kernel,
        out_shape=jax.ShapeDtypeStruct((T, B), jnp.float32),
        in_specs=[vmem] * 11,
        out_specs=vmem,
    )(x_dense,
      wih1, bih1, whh1, bhh1,
      wih2, bih2, whh2, bhh2,
      wproj, bproj)
    return out.reshape(T, B, 1)


def init_params(key, dim):
    """Deterministic init matching PyTorch GRU/Linear shapes (uniform +-1/sqrt(dim))."""
    ks = jax.random.split(key, 10)
    bound = 1.0 / jnp.sqrt(jnp.float32(dim))
    u = lambda k, shape: jax.random.uniform(k, shape, jnp.float32, -bound, bound)
    w_ih_l0 = u(ks[0], (3 * dim, 1))
    w_hh_l0 = u(ks[1], (3 * dim, dim))
    b_ih_l0 = u(ks[2], (3 * dim,))
    b_hh_l0 = u(ks[3], (3 * dim,))
    w_ih_l1 = u(ks[4], (3 * dim, dim))
    w_hh_l1 = u(ks[5], (3 * dim, dim))
    b_ih_l1 = u(ks[6], (3 * dim,))
    b_hh_l1 = u(ks[7], (3 * dim,))
    w_proj = u(ks[8], (1, dim))
    b_proj = u(ks[9], (1,))
    return (w_ih_l0, w_hh_l0, b_ih_l0, b_hh_l0,
            w_ih_l1, w_hh_l1, b_ih_l1, b_hh_l1,
            w_proj, b_proj)


def rgenerator_reference(x, params):
    """Pure-JAX reference of the PyTorch forward (for validation)."""
    (w_ih_l0, w_hh_l0, b_ih_l0, b_hh_l0,
     w_ih_l1, w_hh_l1, b_ih_l1, b_hh_l1,
     w_proj, b_proj) = params
    T, B, _ = x.shape
    dim = w_hh_l0.shape[1]

    def gru_layer(inp, w_ih, w_hh, b_ih, b_hh):
        h = jnp.zeros((B, dim), jnp.float32)
        outs = []
        for t in range(T):
            x_t = inp[t]                                  # (B, in)
            gi = x_t @ w_ih.T + b_ih                      # (B, 3*dim)
            gh = h @ w_hh.T + b_hh
            r = jax.nn.sigmoid(gi[:, :dim] + gh[:, :dim])
            z = jax.nn.sigmoid(gi[:, dim:2 * dim] + gh[:, dim:2 * dim])
            n = jnp.tanh(gi[:, 2 * dim:] + r * gh[:, 2 * dim:])
            h = (1.0 - z) * n + z * h
            outs.append(h)
        return jnp.stack(outs, axis=0)                    # (T, B, dim)

    h1 = gru_layer(x, w_ih_l0, w_hh_l0, b_ih_l0, b_hh_l0)
    h2 = gru_layer(h1, w_ih_l1, w_hh_l1, b_ih_l1, b_hh_l1)
    return h2 @ w_proj.T + b_proj                         # (T, B, 1)


if __name__ == "__main__":
    T, B, DIM = 8, 2, 32
    key = jax.random.PRNGKey(0)
    k_x, k_p = jax.random.split(key)

    x = jax.random.normal(k_x, (T, B, 1), dtype=jnp.float32)
    params = init_params(k_p, DIM)

    out = rgenerator_forward(x, params)
    out = jax.block_until_ready(out)

    ref = rgenerator_reference(x, params)
    assert out.shape == (T, B, 1), out.shape
    assert jnp.allclose(out, ref, atol=1e-4, rtol=1e-4), (out, ref)

    print("KERNEL_OK")
</pallas_src>

<mosaic_0001>
module attributes {stable_mosaic.version = 11 : i64} {
  func.func @_rgenerator_kernel(%arg0: memref<8x2xf32, #tpu.memory_space<vmem>>, %arg1: memref<3x1x32xf32, #tpu.memory_space<vmem>>, %arg2: memref<3x1x32xf32, #tpu.memory_space<vmem>>, %arg3: memref<3x32x32xf32, #tpu.memory_space<vmem>>, %arg4: memref<3x1x32xf32, #tpu.memory_space<vmem>>, %arg5: memref<3x32x32xf32, #tpu.memory_space<vmem>>, %arg6: memref<3x1x32xf32, #tpu.memory_space<vmem>>, %arg7: memref<3x32x32xf32, #tpu.memory_space<vmem>>, %arg8: memref<3x1x32xf32, #tpu.memory_space<vmem>>, %arg9: memref<1x32xf32, #tpu.memory_space<vmem>>, %arg10: memref<1x1xf32, #tpu.memory_space<vmem>>, %arg11: memref<8x2xf32, #tpu.memory_space<vmem>>) attributes {dimension_semantics = [], scalar_prefetch = 0 : i64, scratch_operands = 0 : i64, tpu.core_type = #tpu.core_type<tc>} {
    %c0 = arith.constant 0 : index
    %c0_0 = arith.constant 0 : index
    %0 = vector.load %arg0[%c0, %c0_0] : memref<8x2xf32, #tpu.memory_space<vmem>>, vector<8x2xf32>
    %1 = vector.shape_cast %0 : vector<8x2xf32> to vector<8x2x1xf32>
    %c0_1 = arith.constant 0 : index
    %c0_2 = arith.constant 0 : index
    %c0_3 = arith.constant 0 : index
    %2 = vector.load %arg1[%c0_1, %c0_2, %c0_3] : memref<3x1x32xf32, #tpu.memory_space<vmem>>, vector<1x1x32xf32>
    %3 = vector.shape_cast %2 : vector<1x1x32xf32> to vector<1x32xf32>
    %4 = vector.shape_cast %3 : vector<1x32xf32> to vector<1x1x32xf32>
    %5 = vector.broadcast %1 : vector<8x2x1xf32> to vector<8x2x32xf32>
    %6 = vector.broadcast %4 : vector<1x1x32xf32> to vector<8x2x32xf32>
    %7 = arith.mulf %5, %6 : vector<8x2x32xf32>
    %c0_4 = arith.constant 0 : index
    %c0_5 = arith.constant 0 : index
    %c0_6 = arith.constant 0 : index
    %8 = vector.load %arg2[%c0_4, %c0_5, %c0_6] : memref<3x1x32xf32, #tpu.memory_space<vmem>>, vector<1x1x32xf32>
    %9 = vector.shape_cast %8 : vector<1x1x32xf32> to vector<1x32xf32>
    %10 = vector.shape_cast %9 : vector<1x32xf32> to vector<1x1x32xf32>
    %11 = vector.broadcast %10 : vector<1x1x32xf32> to vector<8x2x32xf32>
    %12 = arith.addf %7, %11 : vector<8x2x32xf32>
    %c1 = arith.constant 1 : index
    %c0_7 = arith.constant 0 : index
    %c0_8 = arith.constant 0 : index
    %13 = vector.load %arg1[%c1, %c0_7, %c0_8] : memref<3x1x32xf32, #tpu.memory_space<vmem>>, vector<1x1x32xf32>
    %14 = vector.shape_cast %13 : vector<1x1x32xf32> to vector<1x32xf32>
    %15 = vector.shape_cast %14 : vector<1x32xf32> to vector<1x1x32xf32>
    %16 = vector.broadcast %1 : vector<8x2x1xf32> to vector<8x2x32xf32>
    %17 = vector.broadcast %15 : vector<1x1x32xf32> to vector<8x2x32xf32>
    %18 = arith.mulf %16, %17 : vector<8x2x32xf32>
    %c1_9 = arith.constant 1 : index
    %c0_10 = arith.constant 0 : index
    %c0_11 = arith.constant 0 : index
    %19 = vector.load %arg2[%c1_9, %c0_10, %c0_11] : memref<3x1x32xf32, #tpu.memory_space<vmem>>, vector<1x1x32xf32>
    %20 = vector.shape_cast %19 : vector<1x1x32xf32> to vector<1x32xf32>
    %21 = vector.shape_cast %20 : vector<1x32xf32> to vector<1x1x32xf32>
    %22 = vector.broadcast %21 : vector<1x1x32xf32> to vector<8x2x32xf32>
    %23 = arith.addf %18, %22 : vector<8x2x32xf32>
    %c2 = arith.constant 2 : index
    %c0_12 = arith.constant 0 : index
    %c0_13 = arith.constant 0 : index
    %24 = vector.load %arg1[%c2, %c0_12, %c0_13] : memref<3x1x32xf32, #tpu.memory_space<vmem>>, vector<1x1x32xf32>
    %25 = vector.shape_cast %24 : vector<1x1x32xf32> to vector<1x32xf32>
    %26 = vector.shape_cast %25 : vector<1x32xf32> to vector<1x1x32xf32>
    %27 = vector.broadcast %1 : vector<8x2x1xf32> to vector<8x2x32xf32>
    %28 = vector.broadcast %26 : vector<1x1x32xf32> to vector<8x2x32xf32>
    %29 = arith.mulf %27, %28 : vector<8x2x32xf32>
    %c2_14 = arith.constant 2 : index
    %c0_15 = arith.constant 0 : index
    %c0_16 = arith.constant 0 : index
    %30 = vector.load %arg2[%c2_14, %c0_15, %c0_16] : memref<3x1x32xf32, #tpu.memory_space<vmem>>, vector<1x1x32xf32>
    %31 = vector.shape_cast %30 : vector<1x1x32xf32> to vector<1x32xf32>
    %32 = vector.shape_cast %31 : vector<1x32xf32> to vector<1x1x32xf32>
    %33 = vector.broadcast %32 : vector<1x1x32xf32> to vector<8x2x32xf32>
    %34 = arith.addf %29, %33 : vector<8x2x32xf32>
    %c0_17 = arith.constant 0 : index
    %c0_18 = arith.constant 0 : index
    %c0_19 = arith.constant 0 : index
    %35 = vector.load %arg3[%c0_17, %c0_18, %c0_19] : memref<3x32x32xf32, #tpu.memory_space<vmem>>, vector<1x32x32xf32>
    %36 = vector.shape_cast %35 : vector<1x32x32xf32> to vector<32x32xf32>
    %c1_20 = arith.constant 1 : index
    %c0_21 = arith.constant 0 : index
    %c0_22 = arith.constant 0 : index
    %37 = vector.load %arg3[%c1_20, %c0_21, %c0_22] : memref<3x32x32xf32, #tpu.memory_space<vmem>>, vector<1x32x32xf32>
    %38 = vector.shape_cast %37 : vector<1x32x32xf32> to vector<32x32xf32>
    %c2_23 = arith.constant 2 : index
    %c0_24 = arith.constant 0 : index
    %c0_25 = arith.constant 0 : index
    %39 = vector.load %arg3[%c2_23, %c0_24, %c0_25] : memref<3x32x32xf32, #tpu.memory_space<vmem>>, vector<1x32x32xf32>
    %40 = vector.shape_cast %39 : vector<1x32x32xf32> to vector<32x32xf32>
    %c0_26 = arith.constant 0 : index
    %c0_27 = arith.constant 0 : index
    %c0_28 = arith.constant 0 : index
    %41 = vector.load %arg4[%c0_26, %c0_27, %c0_28] : memref<3x1x32xf32, #tpu.memory_space<vmem>>, vector<1x1x32xf32>
    %42 = vector.shape_cast %41 : vector<1x1x32xf32> to vector<1x32xf32>
    %c1_29 = arith.constant 1 : index
    %c0_30 = arith.constant 0 : index
    %c0_31 = arith.constant 0 : index
    %43 = vector.load %arg4[%c1_29, %c0_30, %c0_31] : memref<3x1x32xf32, #tpu.memory_space<vmem>>, vector<1x1x32xf32>
    %44 = vector.shape_cast %43 : vector<1x1x32xf32> to vector<1x32xf32>
    %c2_32 = arith.constant 2 : index
    %c0_33 = arith.constant 0 : index
    %c0_34 = arith.constant 0 : index
    %45 = vector.load %arg4[%c2_32, %c0_33, %c0_34] : memref<3x1x32xf32, #tpu.memory_space<vmem>>, vector<1x1x32xf32>
    %46 = vector.shape_cast %45 : vector<1x1x32xf32> to vector<1x32xf32>
    %cst = arith.constant 0.000000e+00 : f32
    %47 = vector.broadcast %cst : f32 to vector<2x32xf32>
    %cst_35 = arith.constant dense<0.000000e+00> : vector<2x32xf32>
    %48 = tpu.matmul %47, %36, %cst_35 {dimension_numbers = #tpu.dot_dimension_numbers<[1], [0], [0], [1], [0, 0, 1, 1], [], []>} : vector<2x32xf32>, vector<32x32xf32>, vector<2x32xf32> -> vector<2x32xf32>
    %49 = vector.broadcast %42 : vector<1x32xf32> to vector<2x32xf32>
    %50 = arith.addf %48, %49 : vector<2x32xf32>
    %cst_36 = arith.constant dense<0.000000e+00> : vector<2x32xf32>
    %51 = tpu.matmul %47, %38, %cst_36 {dimension_numbers = #tpu.dot_dimension_numbers<[1], [0], [0], [1], [0, 0, 1, 1], [], []>} : vector<2x32xf32>, vector<32x32xf32>, vector<2x32xf32> -> vector<2x32xf32>
    %52 = vector.broadcast %44 : vector<1x32xf32> to vector<2x32xf32>
    %53 = arith.addf %51, %52 : vector<2x32xf32>
    %cst_37 = arith.constant dense<0.000000e+00> : vector<2x32xf32>
    %54 = tpu.matmul %47, %40, %cst_37 {dimension_numbers = #tpu.dot_dimension_numbers<[1], [0], [0], [1], [0, 0, 1, 1], [], []>} : vector<2x32xf32>, vector<32x32xf32>, vector<2x32xf32> -> vector<2x32xf32>
    %55 = vector.broadcast %46 : vector<1x32xf32> to vector<2x32xf32>
    %56 = arith.addf %54, %55 : vector<2x32xf32>
    %57 = vector.extract_strided_slice %12 {offsets = [0, 0, 0], sizes = [1, 2, 32], strides = [1, 1, 1]} : vector<8x2x32xf32> to vector<1x2x32xf32>
    %58 = vector.shape_cast %57 : vector<1x2x32xf32> to vector<2x32xf32>
    %59 = arith.addf %58, %50 : vector<2x32xf32>
    %60 = arith.negf %59 : vector<2x32xf32>
    %61 = math.exp %60 : vector<2x32xf32>
    %cst_38 = arith.constant 1.000000e+00 : f32
    %62 = vector.broadcast %cst_38 : f32 to vector<2x32xf32>
    %63 = arith.addf %62, %61 : vector<2x32xf32>
    %64 = arith.divf %62, %63 : vector<2x32xf32>
    %65 = vector.extract_strided_slice %23 {offsets = [0, 0, 0], sizes = [1, 2, 32], strides = [1, 1, 1]} : vector<8x2x32xf32> to vector<1x2x32xf32>
    %66 = vector.shape_cast %65 : vector<1x2x32xf32> to vector<2x32xf32>
    %67 = arith.addf %66, %53 : vector<2x32xf32>
    %68 = arith.negf %67 : vector<2x32xf32>
    %69 = math.exp %68 : vector<2x32xf32>
    %cst_39 = arith.constant 1.000000e+00 : f32
    %70 = vector.broadcast %cst_39 : f32 to vector<2x32xf32>
    %71 = arith.addf %70, %69 : vector<2x32xf32>
    %72 = arith.divf %70, %71 : vector<2x32xf32>
    %73 = vector.extract_strided_slice %34 {offsets = [0, 0, 0], sizes = [1, 2, 32], strides = [1, 1, 1]} : vector<8x2x32xf32> to vector<1x2x32xf32>
    %74 = vector.shape_cast %73 : vector<1x2x32xf32> to vector<2x32xf32>
    %75 = arith.mulf %64, %56 : vector<2x32xf32>
    %76 = arith.addf %74, %75 : vector<2x32xf32>
    %77 = math.tanh %76 : vector<2x32xf32>
    %cst_40 = arith.constant 1.000000e+00 : f32
    %78 = vector.broadcast %cst_40 : f32 to vector<2x32xf32>
    %79 = arith.subf %78, %72 : vector<2x32xf32>
    %80 = arith.mulf %79, %77 : vector<2x32xf32>
    %81 = arith.mulf %72, %47 : vector<2x32xf32>
    %82 = arith.addf %80, %81 : vector<2x32xf32>
    %cst_41 = arith.constant dense<0.000000e+00> : vector<2x32xf32>
    %83 = tpu.matmul %82, %36, %cst_41 {dimension_numbers = #tpu.dot_dimension_numbers<[1], [0], [0], [1], [0, 0, 1, 1], [], []>} : vector<2x32xf32>, vector<32x32xf32>, vector<2x32xf32> -> vector<2x32xf32>
    %84 = vector.broadcast %42 : vector<1x32xf32> to vector<2x32xf32>
    %85 = arith.addf %83, %84 : vector<2x32xf32>
    %cst_42 = arith.constant dense<0.000000e+00> : vector<2x32xf32>
    %86 = tpu.matmul %82, %38, %cst_42 {dimension_numbers = #tpu.dot_dimension_numbers<[1], [0], [0], [1], [0, 0, 1, 1], [], []>} : vector<2x32xf32>, vector<32x32xf32>, vector<2x32xf32> -> vector<2x32xf32>
    %87 = vector.broadcast %44 : vector<1x32xf32> to vector<2x32xf32>
    %88 = arith.addf %86, %87 : vector<2x32xf32>
    %cst_43 = arith.constant dense<0.000000e+00> : vector<2x32xf32>
    %89 = tpu.matmul %82, %40, %cst_43 {dimension_numbers = #tpu.dot_dimension_numbers<[1], [0], [0], [1], [0, 0, 1, 1], [], []>} : vector<2x32xf32>, vector<32x32xf32>, vector<2x32xf32> -> vector<2x32xf32>
    %90 = vector.broadcast %46 : vector<1x32xf32> to vector<2x32xf32>
    %91 = arith.addf %89, %90 : vector<2x32xf32>
    %92 = vector.extract_strided_slice %12 {offsets = [1, 0, 0], sizes = [1, 2, 32], strides = [1, 1, 1]} : vector<8x2x32xf32> to vector<1x2x32xf32>
    %93 = vector.shape_cast %92 : vector<1x2x32xf32> to vector<2x32xf32>
    %94 = arith.addf %93, %85 : vector<2x32xf32>
    %95 = arith.negf %94 : vector<2x32xf32>
    %96 = math.exp %95 : vector<2x32xf32>
    %cst_44 = arith.constant 1.000000e+00 : f32
    %97 = vector.broadcast %cst_44 : f32 to vector<2x32xf32>
    %98 = arith.addf %97, %96 : vector<2x32xf32>
    %99 = arith.divf %97, %98 : vector<2x32xf32>
    %100 = vector.extract_strided_slice %23 {offsets = [1, 0, 0], sizes = [1, 2, 32], strides = [1, 1, 1]} : vector<8x2x32xf32> to vector<1x2x32xf32>
    %101 = vector.shape_cast %100 : vector<1x2x32xf32> to vector<2x32xf32>
    %102 = arith.addf %101, %88 : vector<2x32xf32>
    %103 = arith.negf %102 : vector<2x32xf32>
    %104 = math.exp %103 : vector<2x32xf32>
    %cst_45 = arith.constant 1.000000e+00 : f32
    %105 = vector.broadcast %cst_45 : f32 to vector<2x32xf32>
    %106 = arith.addf %105, %104 : vector<2x32xf32>
    %107 = arith.divf %105, %106 : vector<2x32xf32>
    %108 = vector.extract_strided_slice %34 {offsets = [1, 0, 0], sizes = [1, 2, 32], strides = [1, 1, 1]} : vector<8x2x32xf32> to vector<1x2x32xf32>
    %109 = vector.shape_cast %108 : vector<1x2x32xf32> to vector<2x32xf32>
    %110 = arith.mulf %99, %91 : vector<2x32xf32>
    %111 = arith.addf %109, %110 : vector<2x32xf32>
    %112 = math.tanh %111 : vector<2x32xf32>
    %cst_46 = arith.constant 1.000000e+00 : f32
    %113 = vector.broadcast %cst_46 : f32 to vector<2x32xf32>
    %114 = arith.subf %113, %107 : vector<2x32xf32>
    %115 = arith.mulf %114, %112 : vector<2x32xf32>
    %116 = arith.mulf %107, %82 : vector<2x32xf32>
    %117 = arith.addf %115, %116 : vector<2x32xf32>
    %cst_47 = arith.constant dense<0.000000e+00> : vector<2x32xf32>
    %118 = tpu.matmul %117, %36, %cst_47 {dimension_numbers = #tpu.dot_dimension_numbers<[1], [0], [0], [1], [0, 0, 1, 1], [], []>} : vector<2x32xf32>, vector<32x32xf32>, vector<2x32xf32> -> vector<2x32xf32>
    %119 = vector.broadcast %42 : vector<1x32xf32> to vector<2x32xf32>
    %120 = arith.addf %118, %119 : vector<2x32xf32>
    %cst_48 = arith.constant dense<0.000000e+00> : vector<2x32xf32>
    %121 = tpu.matmul %117, %38, %cst_48 {dimension_numbers = #tpu.dot_dimension_numbers<[1], [0], [0], [1], [0, 0, 1, 1], [], []>} : vector<2x32xf32>, vector<32x32xf32>, vector<2x32xf32> -> vector<2x32xf32>
    %122 = vector.broadcast %44 : vector<1x32xf32> to vector<2x32xf32>
    %123 = arith.addf %121, %122 : vector<2x32xf32>
    %cst_49 = arith.constant dense<0.000000e+00> : vector<2x32xf32>
    %124 = tpu.matmul %117, %40, %cst_49 {dimension_numbers = #tpu.dot_dimension_numbers<[1], [0], [0], [1], [0, 0, 1, 1], [], []>} : vector<2x32xf32>, vector<32x32xf32>, vector<2x32xf32> -> vector<2x32xf32>
    %125 = vector.broadcast %46 : vector<1x32xf32> to vector<2x32xf32>
    %126 = arith.addf %124, %125 : vector<2x32xf32>
    %127 = vector.extract_strided_slice %12 {offsets = [2, 0, 0], sizes = [1, 2, 32], strides = [1, 1, 1]} : vector<8x2x32xf32> to vector<1x2x32xf32>
    %128 = vector.shape_cast %127 : vector<1x2x32xf32> to vector<2x32xf32>
    %129 = arith.addf %128, %120 : vector<2x32xf32>
    %130 = arith.negf %129 : vector<2x32xf32>
    %131 = math.exp %130 : vector<2x32xf32>
    %cst_50 = arith.constant 1.000000e+00 : f32
    %132 = vector.broadcast %cst_50 : f32 to vector<2x32xf32>
    %133 = arith.addf %132, %131 : vector<2x32xf32>
    %134 = arith.divf %132, %133 : vector<2x32xf32>
    %135 = vector.extract_strided_slice %23 {offsets = [2, 0, 0], sizes = [1, 2, 32], strides = [1, 1, 1]} : vector<8x2x32xf32> to vector<1x2x32xf32>
    %136 = vector.shape_cast %135 : vector<1x2x32xf32> to vector<2x32xf32>
    %137 = arith.addf %136, %123 : vector<2x32xf32>
    %138 = arith.negf %137 : vector<2x32xf32>
    %139 = math.exp %138 : vector<2x32xf32>
    %cst_51 = arith.constant 1.000000e+00 : f32
    %140 = vector.broadcast %cst_51 : f32 to vector<2x32xf32>
    %141 = arith.addf %140, %139 : vector<2x32xf32>
    %142 = arith.divf %140, %141 : vector<2x32xf32>
    %143 = vector.extract_strided_slice %34 {offsets = [2, 0, 0], sizes = [1, 2, 32], strides = [1, 1, 1]} : vector<8x2x32xf32> to vector<1x2x32xf32>
    %144 = vector.shape_cast %143 : vector<1x2x32xf32> to vector<2x32xf32>
    %145 = arith.mulf %134, %126 : vector<2x32xf32>
    %146 = arith.addf %144, %145 : vector<2x32xf32>
    %147 = math.tanh %146 : vector<2x32xf32>
    %cst_52 = arith.constant 1.000000e+00 : f32
    %148 = vector.broadcast %cst_52 : f32 to vector<2x32xf32>
    %149 = arith.subf %148, %142 : vector<2x32xf32>
    %150 = arith.mulf %149, %147 : vector<2x32xf32>
    %151 = arith.mulf %142, %117 : vector<2x32xf32>
    %152 = arith.addf %150, %151 : vector<2x32xf32>
    %cst_53 = arith.constant dense<0.000000e+00> : vector<2x32xf32>
    %153 = tpu.matmul %152, %36, %cst_53 {dimension_numbers = #tpu.dot_dimension_numbers<[1], [0], [0], [1], [0, 0, 1, 1], [], []>} : vector<2x32xf32>, vector<32x32xf32>, vector<2x32xf32> -> vector<2x32xf32>
    %154 = vector.broadcast %42 : vector<1x32xf32> to vector<2x32xf32>
    %155 = arith.addf %153, %154 : vector<2x32xf32>
    %cst_54 = arith.constant dense<0.000000e+00> : vector<2x32xf32>
    %156 = tpu.matmul %152, %38, %cst_54 {dimension_numbers = #tpu.dot_dimension_numbers<[1], [0], [0], [1], [0, 0, 1, 1], [], []>} : vector<2x32xf32>, vector<32x32xf32>, vector<2x32xf32> -> vector<2x32xf32>
    %157 = vector.broadcast %44 : vector<1x32xf32> to vector<2x32xf32>
    %158 = arith.addf %156, %157 : vector<2x32xf32>
    %cst_55 = arith.constant dense<0.000000e+00> : vector<2x32xf32>
    %159 = tpu.matmul %152, %40, %cst_55 {dimension_numbers = #tpu.dot_dimension_numbers<[1], [0], [0], [1], [0, 0, 1, 1], [], []>} : vector<2x32xf32>, vector<32x32xf32>, vector<2x32xf32> -> vector<2x32xf32>
    %160 = vector.broadcast %46 : vector<1x32xf32> to vector<2x32xf32>
    %161 = arith.addf %159, %160 : vector<2x32xf32>
    %162 = vector.extract_strided_slice %12 {offsets = [3, 0, 0], sizes = [1, 2, 32], strides = [1, 1, 1]} : vector<8x2x32xf32> to vector<1x2x32xf32>
    %163 = vector.shape_cast %162 : vector<1x2x32xf32> to vector<2x32xf32>
    %164 = arith.addf %163, %155 : vector<2x32xf32>
    %165 = arith.negf %164 : vector<2x32xf32>
    %166 = math.exp %165 : vector<2x32xf32>
    %cst_56 = arith.constant 1.000000e+00 : f32
    %167 = vector.broadcast %cst_56 : f32 to vector<2x32xf32>
    %168 = arith.addf %167, %166 : vector<2x32xf32>
    %169 = arith.divf %167, %168 : vector<2x32xf32>
    %170 = vector.extract_strided_slice %23 {offsets = [3, 0, 0], sizes = [1, 2, 32], strides = [1, 1, 1]} : vector<8x2x32xf32> to vector<1x2x32xf32>
    %171 = vector.shape_cast %170 : vector<1x2x32xf32> to vector<2x32xf32>
    %172 = arith.addf %171, %158 : vector<2x32xf32>
    %173 = arith.negf %172 : vector<2x32xf32>
    %174 = math.exp %173 : vector<2x32xf32>
    %cst_57 = arith.constant 1.000000e+00 : f32
    %175 = vector.broadcast %cst_57 : f32 to vector<2x32xf32>
    %176 = arith.addf %175, %174 : vector<2x32xf32>
    %177 = arith.divf %175, %176 : vector<2x32xf32>
    %178 = vector.extract_strided_slice %34 {offsets = [3, 0, 0], sizes = [1, 2, 32], strides = [1, 1, 1]} : vector<8x2x32xf32> to vector<1x2x32xf32>
    %179 = vector.shape_cast %178 : vector<1x2x32xf32> to vector<2x32xf32>
    %180 = arith.mulf %169, %161 : vector<2x32xf32>
    %181 = arith.addf %179, %180 : vector<2x32xf32>
    %182 = math.tanh %181 : vector<2x32xf32>
    %cst_58 = arith.constant 1.000000e+00 : f32
    %183 = vector.broadcast %cst_58 : f32 to vector<2x32xf32>
    %184 = arith.subf %183, %177 : vector<2x32xf32>
    %185 = arith.mulf %184, %182 : vector<2x32xf32>
    %186 = arith.mulf %177, %152 : vector<2x32xf32>
    %187 = arith.addf %185, %186 : vector<2x32xf32>
    %cst_59 = arith.constant dense<0.000000e+00> : vector<2x32xf32>
    %188 = tpu.matmul %187, %36, %cst_59 {dimension_numbers = #tpu.dot_dimension_numbers<[1], [0], [0], [1], [0, 0, 1, 1], [], []>} : vector<2x32xf32>, vector<32x32xf32>, vector<2x32xf32> -> vector<2x32xf32>
    %189 = vector.broadcast %42 : vector<1x32xf32> to vector<2x32xf32>
    %190 = arith.addf %188, %189 : vector<2x32xf32>
    %cst_60 = arith.constant dense<0.000000e+00> : vector<2x32xf32>
    %191 = tpu.matmul %187, %38, %cst_60 {dimension_numbers = #tpu.dot_dimension_numbers<[1], [0], [0], [1], [0, 0, 1, 1], [], []>} : vector<2x32xf32>, vector<32x32xf32>, vector<2x32xf32> -> vector<2x32xf32>
    %192 = vector.broadcast %44 : vector<1x32xf32> to vector<2x32xf32>
    %193 = arith.addf %191, %192 : vector<2x32xf32>
    %cst_61 = arith.constant dense<0.000000e+00> : vector<2x32xf32>
    %194 = tpu.matmul %187, %40, %cst_61 {dimension_numbers = #tpu.dot_dimension_numbers<[1], [0], [0], [1], [0, 0, 1, 1], [], []>} : vector<2x32xf32>, vector<32x32xf32>, vector<2x32xf32> -> vector<2x32xf32>
    %195 = vector.broadcast %46 : vector<1x32xf32> to vector<2x32xf32>
    %196 = arith.addf %194, %195 : vector<2x32xf32>
    %197 = vector.extract_strided_slice %12 {offsets = [4, 0, 0], sizes = [1, 2, 32], strides = [1, 1, 1]} : vector<8x2x32xf32> to vector<1x2x32xf32>
    %198 = vector.shape_cast %197 : vector<1x2x32xf32> to vector<2x32xf32>
    %199 = arith.addf %198, %190 : vector<2x32xf32>
    %200 = arith.negf %199 : vector<2x32xf32>
    %201 = math.exp %200 : vector<2x32xf32>
    %cst_62 = arith.constant 1.000000e+00 : f32
    %202 = vector.broadcast %cst_62 : f32 to vector<2x32xf32>
    %203 = arith.addf %202, %201 : vector<2x32xf32>
    %204 = arith.divf %202, %203 : vector<2x32xf32>
    %205 = vector.extract_strided_slice %23 {offsets = [4, 0, 0], sizes = [1, 2, 32], strides = [1, 1, 1]} : vector<8x2x32xf32> to vector<1x2x32xf32>
    %206 = vector.shape_cast %205 : vector<1x2x32xf32> to vector<2x32xf32>
    %207 = arith.addf %206, %193 : vector<2x32xf32>
    %208 = arith.negf %207 : vector<2x32xf32>
    %209 = math.exp %208 : vector<2x32xf32>
    %cst_63 = arith.constant 1.000000e+00 : f32
    %210 = vector.broadcast %cst_63 : f32 to vector<2x32xf32>
    %211 = arith.addf %210, %209 : vector<2x32xf32>
    %212 = arith.divf %210, %211 : vector<2x32xf32>
    %213 = vector.extract_strided_slice %34 {offsets = [4, 0, 0], sizes = [1, 2, 32], strides = [1, 1, 1]} : vector<8x2x32xf32> to vector<1x2x32xf32>
    %214 = vector.shape_cast %213 : vector<1x2x32xf32> to vector<2x32xf32>
    %215 = arith.mulf %204, %196 : vector<2x32xf32>
    %216 = arith.addf %214, %215 : vector<2x32xf32>
    %217 = math.tanh %216 : vector<2x32xf32>
    %cst_64 = arith.constant 1.000000e+00 : f32
    %218 = vector.broadcast %cst_64 : f32 to vector<2x32xf32>
    %219 = arith.subf %218, %212 : vector<2x32xf32>
    %220 = arith.mulf %219, %217 : vector<2x32xf32>
    %221 = arith.mulf %212, %187 : vector<2x32xf32>
    %222 = arith.addf %220, %221 : vector<2x32xf32>
    %cst_65 = arith.constant dense<0.000000e+00> : vector<2x32xf32>
    %223 = tpu.matmul %222, %36, %cst_65 {dimension_numbers = #tpu.dot_dimension_numbers<[1], [0], [0], [1], [0, 0, 1, 1], [], []>} : vector<2x32xf32>, vector<32x32xf32>, vector<2x32xf32> -> vector<2x32xf32>
    %224 = vector.broadcast %42 : vector<1x32xf32> to vector<2x32xf32>
    %225 = arith.addf %223, %224 : vector<2x32xf32>
    %cst_66 = arith.constant dense<0.000000e+00> : vector<2x32xf32>
    %226 = tpu.matmul %222, %38, %cst_66 {dimension_numbers = #tpu.dot_dimension_numbers<[1], [0], [0], [1], [0, 0, 1, 1], [], []>} : vector<2x32xf32>, vector<32x32xf32>, vector<2x32xf32> -> vector<2x32xf32>
    %227 = vector.broadcast %44 : vector<1x32xf32> to vector<2x32xf32>
    %228 = arith.addf %226, %227 : vector<2x32xf32>
    %cst_67 = arith.constant dense<0.000000e+00> : vector<2x32xf32>
    %229 = tpu.matmul %222, %40, %cst_67 {dimension_numbers = #tpu.dot_dimension_numbers<[1], [0], [0], [1], [0, 0, 1, 1], [], []>} : vector<2x32xf32>, vector<32x32xf32>, vector<2x32xf32> -> vector<2x32xf32>
    %230 = vector.broadcast %46 : vector<1x32xf32> to vector<2x32xf32>
    %231 = arith.addf %229, %230 : vector<2x32xf32>
    %232 = vector.extract_strided_slice %12 {offsets = [5, 0, 0], sizes = [1, 2, 32], strides = [1, 1, 1]} : vector<8x2x32xf32> to vector<1x2x32xf32>
    %233 = vector.shape_cast %232 : vector<1x2x32xf32> to vector<2x32xf32>
    %234 = arith.addf %233, %225 : vector<2x32xf32>
    %235 = arith.negf %234 : vector<2x32xf32>
    %236 = math.exp %235 : vector<2x32xf32>
    %cst_68 = arith.constant 1.000000e+00 : f32
    %237 = vector.broadcast %cst_68 : f32 to vector<2x32xf32>
    %238 = arith.addf %237, %236 : vector<2x32xf32>
    %239 = arith.divf %237, %238 : vector<2x32xf32>
    %240 = vector.extract_strided_slice %23 {offsets = [5, 0, 0], sizes = [1, 2, 32], strides = [1, 1, 1]} : vector<8x2x32xf32> to vector<1x2x32xf32>
    %241 = vector.shape_cast %240 : vector<1x2x32xf32> to vector<2x32xf32>
    %242 = arith.addf %241, %228 : vector<2x32xf32>
    %243 = arith.negf %242 : vector<2x32xf32>
    %244 = math.exp %243 : vector<2x32xf32>
    %cst_69 = arith.constant 1.000000e+00 : f32
    %245 = vector.broadcast %cst_69 : f32 to vector<2x32xf32>
    %246 = arith.addf %245, %244 : vector<2x32xf32>
    %247 = arith.divf %245, %246 : vector<2x32xf32>
    %248 = vector.extract_strided_slice %34 {offsets = [5, 0, 0], sizes = [1, 2, 32], strides = [1, 1, 1]} : vector<8x2x32xf32> to vector<1x2x32xf32>
    %249 = vector.shape_cast %248 : vector<1x2x32xf32> to vector<2x32xf32>
    %250 = arith.mulf %239, %231 : vector<2x32xf32>
    %251 = arith.addf %249, %250 : vector<2x32xf32>
    %252 = math.tanh %251 : vector<2x32xf32>
    %cst_70 = arith.constant 1.000000e+00 : f32
    %253 = vector.broadcast %cst_70 : f32 to vector<2x32xf32>
    %254 = arith.subf %253, %247 : vector<2x32xf32>
    %255 = arith.mulf %254, %252 : vector<2x32xf32>
    %256 = arith.mulf %247, %222 : vector<2x32xf32>
    %257 = arith.addf %255, %256 : vector<2x32xf32>
    %cst_71 = arith.constant dense<0.000000e+00> : vector<2x32xf32>
    %258 = tpu.matmul %257, %36, %cst_71 {dimension_numbers = #tpu.dot_dimension_numbers<[1], [0], [0], [1], [0, 0, 1, 1], [], []>} : vector<2x32xf32>, vector<32x32xf32>, vector<2x32xf32> -> vector<2x32xf32>
    %259 = vector.broadcast %42 : vector<1x32xf32> to vector<2x32xf32>
    %260 = arith.addf %258, %259 : vector<2x32xf32>
    %cst_72 = arith.constant dense<0.000000e+00> : vector<2x32xf32>
    %261 = tpu.matmul %257, %38, %cst_72 {dimension_numbers = #tpu.dot_dimension_numbers<[1], [0], [0], [1], [0, 0, 1, 1], [], []>} : vector<2x32xf32>, vector<32x32xf32>, vector<2x32xf32> -> vector<2x32xf32>
    %262 = vector.broadcast %44 : vector<1x32xf32> to vector<2x32xf32>
    %263 = arith.addf %261, %262 : vector<2x32xf32>
    %cst_73 = arith.constant dense<0.000000e+00> : vector<2x32xf32>
    %264 = tpu.matmul %257, %40, %cst_73 {dimension_numbers = #tpu.dot_dimension_numbers<[1], [0], [0], [1], [0, 0, 1, 1], [], []>} : vector<2x32xf32>, vector<32x32xf32>, vector<2x32xf32> -> vector<2x32xf32>
    %265 = vector.broadcast %46 : vector<1x32xf32> to vector<2x32xf32>
    %266 = arith.addf %264, %265 : vector<2x32xf32>
    %267 = vector.extract_strided_slice %12 {offsets = [6, 0, 0], sizes = [1, 2, 32], strides = [1, 1, 1]} : vector<8x2x32xf32> to vector<1x2x32xf32>
    %268 = vector.shape_cast %267 : vector<1x2x32xf32> to vector<2x32xf32>
    %269 = arith.addf %268, %260 : vector<2x32xf32>
    %270 = arith.negf %269 : vector<2x32xf32>
    %271 = math.exp %270 : vector<2x32xf32>
    %cst_74 = arith.constant 1.000000e+00 : f32
    %272 = vector.broadcast %cst_74 : f32 to vector<2x32xf32>
    %273 = arith.addf %272, %271 : vector<2x32xf32>
    %274 = arith.divf %272, %273 : vector<2x32xf32>
    %275 = vector.extract_strided_slice %23 {offsets = [6, 0, 0], sizes = [1, 2, 32], strides = [1, 1, 1]} : vector<8x2x32xf32> to vector<1x2x32xf32>
    %276 = vector.shape_cast %275 : vector<1x2x32xf32> to vector<2x32xf32>
    %277 = arith.addf %276, %263 : vector<2x32xf32>
    %278 = arith.negf %277 : vector<2x32xf32>
    %279 = math.exp %278 : vector<2x32xf32>
    %cst_75 = arith.constant 1.000000e+00 : f32
    %280 = vector.broadcast %cst_75 : f32 to vector<2x32xf32>
    %281 = arith.addf %280, %279 : vector<2x32xf32>
    %282 = arith.divf %280, %281 : vector<2x32xf32>
    %283 = vector.extract_strided_slice %34 {offsets = [6, 0, 0], sizes = [1, 2, 32], strides = [1, 1, 1]} : vector<8x2x32xf32> to vector<1x2x32xf32>
    %284 = vector.shape_cast %283 : vector<1x2x32xf32> to vector<2x32xf32>
    %285 = arith.mulf %274, %266 : vector<2x32xf32>
    %286 = arith.addf %284, %285 : vector<2x32xf32>
    %287 = math.tanh %286 : vector<2x32xf32>
    %cst_76 = arith.constant 1.000000e+00 : f32
    %288 = vector.broadcast %cst_76 : f32 to vector<2x32xf32>
    %289 = arith.subf %288, %282 : vector<2x32xf32>
    %290 = arith.mulf %289, %287 : vector<2x32xf32>
    %291 = arith.mulf %282, %257 : vector<2x32xf32>
    %292 = arith.addf %290, %291 : vector<2x32xf32>
    %cst_77 = arith.constant dense<0.000000e+00> : vector<2x32xf32>
    %293 = tpu.matmul %292, %36, %cst_77 {dimension_numbers = #tpu.dot_dimension_numbers<[1], [0], [0], [1], [0, 0, 1, 1], [], []>} : vector<2x32xf32>, vector<32x32xf32>, vector<2x32xf32> -> vector<2x32xf32>
    %294 = vector.broadcast %42 : vector<1x32xf32> to vector<2x32xf32>
    %295 = arith.addf %293, %294 : vector<2x32xf32>
    %cst_78 = arith.constant dense<0.000000e+00> : vector<2x32xf32>
    %296 = tpu.matmul %292, %38, %cst_78 {dimension_numbers = #tpu.dot_dimension_numbers<[1], [0], [0], [1], [0, 0, 1, 1], [], []>} : vector<2x32xf32>, vector<32x32xf32>, vector<2x32xf32> -> vector<2x32xf32>
    %297 = vector.broadcast %44 : vector<1x32xf32> to vector<2x32xf32>
    %298 = arith.addf %296, %297 : vector<2x32xf32>
    %cst_79 = arith.constant dense<0.000000e+00> : vector<2x32xf32>
    %299 = tpu.matmul %292, %40, %cst_79 {dimension_numbers = #tpu.dot_dimension_numbers<[1], [0], [0], [1], [0, 0, 1, 1], [], []>} : vector<2x32xf32>, vector<32x32xf32>, vector<2x32xf32> -> vector<2x32xf32>
    %300 = vector.broadcast %46 : vector<1x32xf32> to vector<2x32xf32>
    %301 = arith.addf %299, %300 : vector<2x32xf32>
    %302 = vector.extract_strided_slice %12 {offsets = [7, 0, 0], sizes = [1, 2, 32], strides = [1, 1, 1]} : vector<8x2x32xf32> to vector<1x2x32xf32>
    %303 = vector.shape_cast %302 : vector<1x2x32xf32> to vector<2x32xf32>
    %304 = arith.addf %303, %295 : vector<2x32xf32>
    %305 = arith.negf %304 : vector<2x32xf32>
    %306 = math.exp %305 : vector<2x32xf32>
    %cst_80 = arith.constant 1.000000e+00 : f32
    %307 = vector.broadcast %cst_80 : f32 to vector<2x32xf32>
    %308 = arith.addf %307, %306 : vector<2x32xf32>
    %309 = arith.divf %307, %308 : vector<2x32xf32>
    %310 = vector.extract_strided_slice %23 {offsets = [7, 0, 0], sizes = [1, 2, 32], strides = [1, 1, 1]} : vector<8x2x32xf32> to vector<1x2x32xf32>
    %311 = vector.shape_cast %310 : vector<1x2x32xf32> to vector<2x32xf32>
    %312 = arith.addf %311, %298 : vector<2x32xf32>
    %313 = arith.negf %312 : vector<2x32xf32>
    %314 = math.exp %313 : vector<2x32xf32>
    %cst_81 = arith.constant 1.000000e+00 : f32
    %315 = vector.broadcast %cst_81 : f32 to vector<2x32xf32>
    %316 = arith.addf %315, %314 : vector<2x32xf32>
    %317 = arith.divf %315, %316 : vector<2x32xf32>
    %318 = vector.extract_strided_slice %34 {offsets = [7, 0, 0], sizes = [1, 2, 32], strides = [1, 1, 1]} : vector<8x2x32xf32> to vector<1x2x32xf32>
    %319 = vector.shape_cast %318 : vector<1x2x32xf32> to vector<2x32xf32>
    %320 = arith.mulf %309, %301 : vector<2x32xf32>
    %321 = arith.addf %319, %320 : vector<2x32xf32>
    %322 = math.tanh %321 : vector<2x32xf32>
    %cst_82 = arith.constant 1.000000e+00 : f32
    %323 = vector.broadcast %cst_82 : f32 to vector<2x32xf32>
    %324 = arith.subf %323, %317 : vector<2x32xf32>
    %325 = arith.mulf %324, %322 : vector<2x32xf32>
    %326 = arith.mulf %317, %292 : vector<2x32xf32>
    %327 = arith.addf %325, %326 : vector<2x32xf32>
    %328 = vector.shape_cast %82 : vector<2x32xf32> to vector<1x2x32xf32>
    %329 = vector.shape_cast %117 : vector<2x32xf32> to vector<1x2x32xf32>
    %330 = vector.shape_cast %152 : vector<2x32xf32> to vector<1x2x32xf32>
    %331 = vector.shape_cast %187 : vector<2x32xf32> to vector<1x2x32xf32>
    %332 = vector.shape_cast %222 : vector<2x32xf32> to vector<1x2x32xf32>
    %333 = vector.shape_cast %257 : vector<2x32xf32> to vector<1x2x32xf32>
    %334 = vector.shape_cast %292 : vector<2x32xf32> to vector<1x2x32xf32>
    %335 = vector.shape_cast %327 : vector<2x32xf32> to vector<1x2x32xf32>
    %336 = tpu.concatenate %328, %329, %330, %331, %332, %333, %334, %335 in 0 : vector<1x2x32xf32>, vector<1x2x32xf32>, vector<1x2x32xf32>, vector<1x2x32xf32>, vector<1x2x32xf32>, vector<1x2x32xf32>, vector<1x2x32xf32>, vector<1x2x32xf32> -> vector<8x2x32xf32>
    %337 = vector.shape_cast %336 : vector<8x2x32xf32> to vector<16x32xf32>
    %c0_83 = arith.constant 0 : index
    %c0_84 = arith.constant 0 : index
    %c0_85 = arith.constant 0 : index
    %338 = vector.load %arg5[%c0_83, %c0_84, %c0_85] : memref<3x32x32xf32, #tpu.memory_space<vmem>>, vector<1x32x32xf32>
    %339 = vector.shape_cast %338 : vector<1x32x32xf32> to vector<32x32xf32>
    %cst_86 = arith.constant dense<0.000000e+00> : vector<16x32xf32>
    %340 = tpu.matmul %337, %339, %cst_86 {dimension_numbers = #tpu.dot_dimension_numbers<[1], [0], [0], [1], [0, 0, 1, 1], [], []>} : vector<16x32xf32>, vector<32x32xf32>, vector<16x32xf32> -> vector<16x32xf32>
    %c0_87 = arith.constant 0 : index
    %c0_88 = arith.constant 0 : index
    %c0_89 = arith.constant 0 : index
    %341 = vector.load %arg6[%c0_87, %c0_88, %c0_89] : memref<3x1x32xf32, #tpu.memory_space<vmem>>, vector<1x1x32xf32>
    %342 = vector.shape_cast %341 : vector<1x1x32xf32> to vector<1x32xf32>
    %343 = vector.broadcast %342 : vector<1x32xf32> to vector<16x32xf32>
    %344 = arith.addf %340, %343 : vector<16x32xf32>
    %345 = vector.shape_cast %344 : vector<16x32xf32> to vector<8x2x32xf32>
    %c1_90 = arith.constant 1 : index
    %c0_91 = arith.constant 0 : index
    %c0_92 = arith.constant 0 : index
    %346 = vector.load %arg5[%c1_90, %c0_91, %c0_92] : memref<3x32x32xf32, #tpu.memory_space<vmem>>, vector<1x32x32xf32>
    %347 = vector.shape_cast %346 : vector<1x32x32xf32> to vector<32x32xf32>
    %cst_93 = arith.constant dense<0.000000e+00> : vector<16x32xf32>
    %348 = tpu.matmul %337, %347, %cst_93 {dimension_numbers = #tpu.dot_dimension_numbers<[1], [0], [0], [1], [0, 0, 1, 1], [], []>} : vector<16x32xf32>, vector<32x32xf32>, vector<16x32xf32> -> vector<16x32xf32>
    %c1_94 = arith.constant 1 : index
    %c0_95 = arith.constant 0 : index
    %c0_96 = arith.constant 0 : index
    %349 = vector.load %arg6[%c1_94, %c0_95, %c0_96] : memref<3x1x32xf32, #tpu.memory_space<vmem>>, vector<1x1x32xf32>
    %350 = vector.shape_cast %349 : vector<1x1x32xf32> to vector<1x32xf32>
    %351 = vector.broadcast %350 : vector<1x32xf32> to vector<16x32xf32>
    %352 = arith.addf %348, %351 : vector<16x32xf32>
    %353 = vector.shape_cast %352 : vector<16x32xf32> to vector<8x2x32xf32>
    %c2_97 = arith.constant 2 : index
    %c0_98 = arith.constant 0 : index
    %c0_99 = arith.constant 0 : index
    %354 = vector.load %arg5[%c2_97, %c0_98, %c0_99] : memref<3x32x32xf32, #tpu.memory_space<vmem>>, vector<1x32x32xf32>
    %355 = vector.shape_cast %354 : vector<1x32x32xf32> to vector<32x32xf32>
    %cst_100 = arith.constant dense<0.000000e+00> : vector<16x32xf32>
    %356 = tpu.matmul %337, %355, %cst_100 {dimension_numbers = #tpu.dot_dimension_numbers<[1], [0], [0], [1], [0, 0, 1, 1], [], []>} : vector<16x32xf32>, vector<32x32xf32>, vector<16x32xf32> -> vector<16x32xf32>
    %c2_101 = arith.constant 2 : index
    %c0_102 = arith.constant 0 : index
    %c0_103 = arith.constant 0 : index
    %357 = vector.load %arg6[%c2_101, %c0_102, %c0_103] : memref<3x1x32xf32, #tpu.memory_space<vmem>>, vector<1x1x32xf32>
    %358 = vector.shape_cast %357 : vector<1x1x32xf32> to vector<1x32xf32>
    %359 = vector.broadcast %358 : vector<1x32xf32> to vector<16x32xf32>
    %360 = arith.addf %356, %359 : vector<16x32xf32>
    %361 = vector.shape_cast %360 : vector<16x32xf32> to vector<8x2x32xf32>
    %c0_104 = arith.constant 0 : index
    %c0_105 = arith.constant 0 : index
    %c0_106 = arith.constant 0 : index
    %362 = vector.load %arg7[%c0_104, %c0_105, %c0_106] : memref<3x32x32xf32, #tpu.memory_space<vmem>>, vector<1x32x32xf32>
    %363 = vector.shape_cast %362 : vector<1x32x32xf32> to vector<32x32xf32>
    %c1_107 = arith.constant 1 : index
    %c0_108 = arith.constant 0 : index
    %c0_109 = arith.constant 0 : index
    %364 = vector.load %arg7[%c1_107, %c0_108, %c0_109] : memref<3x32x32xf32, #tpu.memory_space<vmem>>, vector<1x32x32xf32>
    %365 = vector.shape_cast %364 : vector<1x32x32xf32> to vector<32x32xf32>
    %c2_110 = arith.constant 2 : index
    %c0_111 = arith.constant 0 : index
    %c0_112 = arith.constant 0 : index
    %366 = vector.load %arg7[%c2_110, %c0_111, %c0_112] : memref<3x32x32xf32, #tpu.memory_space<vmem>>, vector<1x32x32xf32>
    %367 = vector.shape_cast %366 : vector<1x32x32xf32> to vector<32x32xf32>
    %c0_113 = arith.constant 0 : index
    %c0_114 = arith.constant 0 : index
    %c0_115 = arith.constant 0 : index
    %368 = vector.load %arg8[%c0_113, %c0_114, %c0_115] : memref<3x1x32xf32, #tpu.memory_space<vmem>>, vector<1x1x32xf32>
    %369 = vector.shape_cast %368 : vector<1x1x32xf32> to vector<1x32xf32>
    %c1_116 = arith.constant 1 : index
    %c0_117 = arith.constant 0 : index
    %c0_118 = arith.constant 0 : index
    %370 = vector.load %arg8[%c1_116, %c0_117, %c0_118] : memref<3x1x32xf32, #tpu.memory_space<vmem>>, vector<1x1x32xf32>
    %371 = vector.shape_cast %370 : vector<1x1x32xf32> to vector<1x32xf32>
    %c2_119 = arith.constant 2 : index
    %c0_120 = arith.constant 0 : index
    %c0_121 = arith.constant 0 : index
    %372 = vector.load %arg8[%c2_119, %c0_120, %c0_121] : memref<3x1x32xf32, #tpu.memory_space<vmem>>, vector<1x1x32xf32>
    %373 = vector.shape_cast %372 : vector<1x1x32xf32> to vector<1x32xf32>
    %cst_122 = arith.constant 0.000000e+00 : f32
    %374 = vector.broadcast %cst_122 : f32 to vector<2x32xf32>
    %cst_123 = arith.constant dense<0.000000e+00> : vector<2x32xf32>
    %375 = tpu.matmul %374, %363, %cst_123 {dimension_numbers = #tpu.dot_dimension_numbers<[1], [0], [0], [1], [0, 0, 1, 1], [], []>} : vector<2x32xf32>, vector<32x32xf32>, vector<2x32xf32> -> vector<2x32xf32>
    %376 = vector.broadcast %369 : vector<1x32xf32> to vector<2x32xf32>
    %377 = arith.addf %375, %376 : vector<2x32xf32>
    %cst_124 = arith.constant dense<0.000000e+00> : vector<2x32xf32>
    %378 = tpu.matmul %374, %365, %cst_124 {dimension_numbers = #tpu.dot_dimension_numbers<[1], [0], [0], [1], [0, 0, 1, 1], [], []>} : vector<2x32xf32>, vector<32x32xf32>, vector<2x32xf32> -> vector<2x32xf32>
    %379 = vector.broadcast %371 : vector<1x32xf32> to vector<2x32xf32>
    %380 = arith.addf %378, %379 : vector<2x32xf32>
    %cst_125 = arith.constant dense<0.000000e+00> : vector<2x32xf32>
    %381 = tpu.matmul %374, %367, %cst_125 {dimension_numbers = #tpu.dot_dimension_numbers<[1], [0], [0], [1], [0, 0, 1, 1], [], []>} : vector<2x32xf32>, vector<32x32xf32>, vector<2x32xf32> -> vector<2x32xf32>
    %382 = vector.broadcast %373 : vector<1x32xf32> to vector<2x32xf32>
    %383 = arith.addf %381, %382 : vector<2x32xf32>
    %384 = vector.extract_strided_slice %345 {offsets = [0, 0, 0], sizes = [1, 2, 32], strides = [1, 1, 1]} : vector<8x2x32xf32> to vector<1x2x32xf32>
    %385 = vector.shape_cast %384 : vector<1x2x32xf32> to vector<2x32xf32>
    %386 = arith.addf %385, %377 : vector<2x32xf32>
    %387 = arith.negf %386 : vector<2x32xf32>
    %388 = math.exp %387 : vector<2x32xf32>
    %cst_126 = arith.constant 1.000000e+00 : f32
    %389 = vector.broadcast %cst_126 : f32 to vector<2x32xf32>
    %390 = arith.addf %389, %388 : vector<2x32xf32>
    %391 = arith.divf %389, %390 : vector<2x32xf32>
    %392 = vector.extract_strided_slice %353 {offsets = [0, 0, 0], sizes = [1, 2, 32], strides = [1, 1, 1]} : vector<8x2x32xf32> to vector<1x2x32xf32>
    %393 = vector.shape_cast %392 : vector<1x2x32xf32> to vector<2x32xf32>
    %394 = arith.addf %393, %380 : vector<2x32xf32>
    %395 = arith.negf %394 : vector<2x32xf32>
    %396 = math.exp %395 : vector<2x32xf32>
    %cst_127 = arith.constant 1.000000e+00 : f32
    %397 = vector.broadcast %cst_127 : f32 to vector<2x32xf32>
    %398 = arith.addf %397, %396 : vector<2x32xf32>
    %399 = arith.divf %397, %398 : vector<2x32xf32>
    %400 = vector.extract_strided_slice %361 {offsets = [0, 0, 0], sizes = [1, 2, 32], strides = [1, 1, 1]} : vector<8x2x32xf32> to vector<1x2x32xf32>
    %401 = vector.shape_cast %400 : vector<1x2x32xf32> to vector<2x32xf32>
    %402 = arith.mulf %391, %383 : vector<2x32xf32>
    %403 = arith.addf %401, %402 : vector<2x32xf32>
    %404 = math.tanh %403 : vector<2x32xf32>
    %cst_128 = arith.constant 1.000000e+00 : f32
    %405 = vector.broadcast %cst_128 : f32 to vector<2x32xf32>
    %406 = arith.subf %405, %399 : vector<2x32xf32>
    %407 = arith.mulf %406, %404 : vector<2x32xf32>
    %408 = arith.mulf %399, %374 : vector<2x32xf32>
    %409 = arith.addf %407, %408 : vector<2x32xf32>
    %cst_129 = arith.constant dense<0.000000e+00> : vector<2x32xf32>
    %410 = tpu.matmul %409, %363, %cst_129 {dimension_numbers = #tpu.dot_dimension_numbers<[1], [0], [0], [1], [0, 0, 1, 1], [], []>} : vector<2x32xf32>, vector<32x32xf32>, vector<2x32xf32> -> vector<2x32xf32>
    %411 = vector.broadcast %369 : vector<1x32xf32> to vector<2x32xf32>
    %412 = arith.addf %410, %411 : vector<2x32xf32>
    %cst_130 = arith.constant dense<0.000000e+00> : vector<2x32xf32>
    %413 = tpu.matmul %409, %365, %cst_130 {dimension_numbers = #tpu.dot_dimension_numbers<[1], [0], [0], [1], [0, 0, 1, 1], [], []>} : vector<2x32xf32>, vector<32x32xf32>, vector<2x32xf32> -> vector<2x32xf32>
    %414 = vector.broadcast %371 : vector<1x32xf32> to vector<2x32xf32>
    %415 = arith.addf %413, %414 : vector<2x32xf32>
    %cst_131 = arith.constant dense<0.000000e+00> : vector<2x32xf32>
    %416 = tpu.matmul %409, %367, %cst_131 {dimension_numbers = #tpu.dot_dimension_numbers<[1], [0], [0], [1], [0, 0, 1, 1], [], []>} : vector<2x32xf32>, vector<32x32xf32>, vector<2x32xf32> -> vector<2x32xf32>
    %417 = vector.broadcast %373 : vector<1x32xf32> to vector<2x32xf32>
    %418 = arith.addf %416, %417 : vector<2x32xf32>
    %419 = vector.extract_strided_slice %345 {offsets = [1, 0, 0], sizes = [1, 2, 32], strides = [1, 1, 1]} : vector<8x2x32xf32> to vector<1x2x32xf32>
    %420 = vector.shape_cast %419 : vector<1x2x32xf32> to vector<2x32xf32>
    %421 = arith.addf %420, %412 : vector<2x32xf32>
    %422 = arith.negf %421 : vector<2x32xf32>
    %423 = math.exp %422 : vector<2x32xf32>
    %cst_132 = arith.constant 1.000000e+00 : f32
    %424 = vector.broadcast %cst_132 : f32 to vector<2x32xf32>
    %425 = arith.addf %424, %423 : vector<2x32xf32>
    %426 = arith.divf %424, %425 : vector<2x32xf32>
    %427 = vector.extract_strided_slice %353 {offsets = [1, 0, 0], sizes = [1, 2, 32], strides = [1, 1, 1]} : vector<8x2x32xf32> to vector<1x2x32xf32>
    %428 = vector.shape_cast %427 : vector<1x2x32xf32> to vector<2x32xf32>
    %429 = arith.addf %428, %415 : vector<2x32xf32>
    %430 = arith.negf %429 : vector<2x32xf32>
    %431 = math.exp %430 : vector<2x32xf32>
    %cst_133 = arith.constant 1.000000e+00 : f32
    %432 = vector.broadcast %cst_133 : f32 to vector<2x32xf32>
    %433 = arith.addf %432, %431 : vector<2x32xf32>
    %434 = arith.divf %432, %433 : vector<2x32xf32>
    %435 = vector.extract_strided_slice %361 {offsets = [1, 0, 0], sizes = [1, 2, 32], strides = [1, 1, 1]} : vector<8x2x32xf32> to vector<1x2x32xf32>
    %436 = vector.shape_cast %435 : vector<1x2x32xf32> to vector<2x32xf32>
    %437 = arith.mulf %426, %418 : vector<2x32xf32>
    %438 = arith.addf %436, %437 : vector<2x32xf32>
    %439 = math.tanh %438 : vector<2x32xf32>
    %cst_134 = arith.constant 1.000000e+00 : f32
    %440 = vector.broadcast %cst_134 : f32 to vector<2x32xf32>
    %441 = arith.subf %440, %434 : vector<2x32xf32>
    %442 = arith.mulf %441, %439 : vector<2x32xf32>
    %443 = arith.mulf %434, %409 : vector<2x32xf32>
    %444 = arith.addf %442, %443 : vector<2x32xf32>
    %cst_135 = arith.constant dense<0.000000e+00> : vector<2x32xf32>
    %445 = tpu.matmul %444, %363, %cst_135 {dimension_numbers = #tpu.dot_dimension_numbers<[1], [0], [0], [1], [0, 0, 1, 1], [], []>} : vector<2x32xf32>, vector<32x32xf32>, vector<2x32xf32> -> vector<2x32xf32>
    %446 = vector.broadcast %369 : vector<1x32xf32> to vector<2x32xf32>
    %447 = arith.addf %445, %446 : vector<2x32xf32>
    %cst_136 = arith.constant dense<0.000000e+00> : vector<2x32xf32>
    %448 = tpu.matmul %444, %365, %cst_136 {dimension_numbers = #tpu.dot_dimension_numbers<[1], [0], [0], [1], [0, 0, 1, 1], [], []>} : vector<2x32xf32>, vector<32x32xf32>, vector<2x32xf32> -> vector<2x32xf32>
    %449 = vector.broadcast %371 : vector<1x32xf32> to vector<2x32xf32>
    %450 = arith.addf %448, %449 : vector<2x32xf32>
    %cst_137 = arith.constant dense<0.000000e+00> : vector<2x32xf32>
    %451 = tpu.matmul %444, %367, %cst_137 {dimension_numbers = #tpu.dot_dimension_numbers<[1], [0], [0], [1], [0, 0, 1, 1], [], []>} : vector<2x32xf32>, vector<32x32xf32>, vector<2x32xf32> -> vector<2x32xf32>
    %452 = vector.broadcast %373 : vector<1x32xf32> to vector<2x32xf32>
    %453 = arith.addf %451, %452 : vector<2x32xf32>
    %454 = vector.extract_strided_slice %345 {offsets = [2, 0, 0], sizes = [1, 2, 32], strides = [1, 1, 1]} : vector<8x2x32xf32> to vector<1x2x32xf32>
    %455 = vector.shape_cast %454 : vector<1x2x32xf32> to vector<2x32xf32>
    %456 = arith.addf %455, %447 : vector<2x32xf32>
    %457 = arith.negf %456 : vector<2x32xf32>
    %458 = math.exp %457 : vector<2x32xf32>
    %cst_138 = arith.constant 1.000000e+00 : f32
    %459 = vector.broadcast %cst_138 : f32 to vector<2x32xf32>
    %460 = arith.addf %459, %458 : vector<2x32xf32>
    %461 = arith.divf %459, %460 : vector<2x32xf32>
    %462 = vector.extract_strided_slice %353 {offsets = [2, 0, 0], sizes = [1, 2, 32], strides = [1, 1, 1]} : vector<8x2x32xf32> to vector<1x2x32xf32>
    %463 = vector.shape_cast %462 : vector<1x2x32xf32> to vector<2x32xf32>
    %464 = arith.addf %463, %450 : vector<2x32xf32>
    %465 = arith.negf %464 : vector<2x32xf32>
    %466 = math.exp %465 : vector<2x32xf32>
    %cst_139 = arith.constant 1.000000e+00 : f32
    %467 = vector.broadcast %cst_139 : f32 to vector<2x32xf32>
    %468 = arith.addf %467, %466 : vector<2x32xf32>
    %469 = arith.divf %467, %468 : vector<2x32xf32>
    %470 = vector.extract_strided_slice %361 {offsets = [2, 0, 0], sizes = [1, 2, 32], strides = [1, 1, 1]} : vector<8x2x32xf32> to vector<1x2x32xf32>
    %471 = vector.shape_cast %470 : vector<1x2x32xf32> to vector<2x32xf32>
    %472 = arith.mulf %461, %453 : vector<2x32xf32>
    %473 = arith.addf %471, %472 : vector<2x32xf32>
    %474 = math.tanh %473 : vector<2x32xf32>
    %cst_140 = arith.constant 1.000000e+00 : f32
    %475 = vector.broadcast %cst_140 : f32 to vector<2x32xf32>
    %476 = arith.subf %475, %469 : vector<2x32xf32>
    %477 = arith.mulf %476, %474 : vector<2x32xf32>
    %478 = arith.mulf %469, %444 : vector<2x32xf32>
    %479 = arith.addf %477, %478 : vector<2x32xf32>
    %cst_141 = arith.constant dense<0.000000e+00> : vector<2x32xf32>
    %480 = tpu.matmul %479, %363, %cst_141 {dimension_numbers = #tpu.dot_dimension_numbers<[1], [0], [0], [1], [0, 0, 1, 1], [], []>} : vector<2x32xf32>, vector<32x32xf32>, vector<2x32xf32> -> vector<2x32xf32>
    %481 = vector.broadcast %369 : vector<1x32xf32> to vector<2x32xf32>
    %482 = arith.addf %480, %481 : vector<2x32xf32>
    %cst_142 = arith.constant dense<0.000000e+00> : vector<2x32xf32>
    %483 = tpu.matmul %479, %365, %cst_142 {dimension_numbers = #tpu.dot_dimension_numbers<[1], [0], [0], [1], [0, 0, 1, 1], [], []>} : vector<2x32xf32>, vector<32x32xf32>, vector<2x32xf32> -> vector<2x32xf32>
    %484 = vector.broadcast %371 : vector<1x32xf32> to vector<2x32xf32>
    %485 = arith.addf %483, %484 : vector<2x32xf32>
    %cst_143 = arith.constant dense<0.000000e+00> : vector<2x32xf32>
    %486 = tpu.matmul %479, %367, %cst_143 {dimension_numbers = #tpu.dot_dimension_numbers<[1], [0], [0], [1], [0, 0, 1, 1], [], []>} : vector<2x32xf32>, vector<32x32xf32>, vector<2x32xf32> -> vector<2x32xf32>
    %487 = vector.broadcast %373 : vector<1x32xf32> to vector<2x32xf32>
    %488 = arith.addf %486, %487 : vector<2x32xf32>
    %489 = vector.extract_strided_slice %345 {offsets = [3, 0, 0], sizes = [1, 2, 32], strides = [1, 1, 1]} : vector<8x2x32xf32> to vector<1x2x32xf32>
    %490 = vector.shape_cast %489 : vector<1x2x32xf32> to vector<2x32xf32>
    %491 = arith.addf %490, %482 : vector<2x32xf32>
    %492 = arith.negf %491 : vector<2x32xf32>
    %493 = math.exp %492 : vector<2x32xf32>
    %cst_144 = arith.constant 1.000000e+00 : f32
    %494 = vector.broadcast %cst_144 : f32 to vector<2x32xf32>
    %495 = arith.addf %494, %493 : vector<2x32xf32>
    %496 = arith.divf %494, %495 : vector<2x32xf32>
    %497 = vector.extract_strided_slice %353 {offsets = [3, 0, 0], sizes = [1, 2, 32], strides = [1, 1, 1]} : vector<8x2x32xf32> to vector<1x2x32xf32>
    %498 = vector.shape_cast %497 : vector<1x2x32xf32> to vector<2x32xf32>
    %499 = arith.addf %498, %485 : vector<2x32xf32>
    %500 = arith.negf %499 : vector<2x32xf32>
    %501 = math.exp %500 : vector<2x32xf32>
    %cst_145 = arith.constant 1.000000e+00 : f32
    %502 = vector.broadcast %cst_145 : f32 to vector<2x32xf32>
    %503 = arith.addf %502, %501 : vector<2x32xf32>
    %504 = arith.divf %502, %503 : vector<2x32xf32>
    %505 = vector.extract_strided_slice %361 {offsets = [3, 0, 0], sizes = [1, 2, 32], strides = [1, 1, 1]} : vector<8x2x32xf32> to vector<1x2x32xf32>
    %506 = vector.shape_cast %505 : vector<1x2x32xf32> to vector<2x32xf32>
    %507 = arith.mulf %496, %488 : vector<2x32xf32>
    %508 = arith.addf %506, %507 : vector<2x32xf32>
    %509 = math.tanh %508 : vector<2x32xf32>
    %cst_146 = arith.constant 1.000000e+00 : f32
    %510 = vector.broadcast %cst_146 : f32 to vector<2x32xf32>
    %511 = arith.subf %510, %504 : vector<2x32xf32>
    %512 = arith.mulf %511, %509 : vector<2x32xf32>
    %513 = arith.mulf %504, %479 : vector<2x32xf32>
    %514 = arith.addf %512, %513 : vector<2x32xf32>
    %cst_147 = arith.constant dense<0.000000e+00> : vector<2x32xf32>
    %515 = tpu.matmul %514, %363, %cst_147 {dimension_numbers = #tpu.dot_dimension_numbers<[1], [0], [0], [1], [0, 0, 1, 1], [], []>} : vector<2x32xf32>, vector<32x32xf32>, vector<2x32xf32> -> vector<2x32xf32>
    %516 = vector.broadcast %369 : vector<1x32xf32> to vector<2x32xf32>
    %517 = arith.addf %515, %516 : vector<2x32xf32>
    %cst_148 = arith.constant dense<0.000000e+00> : vector<2x32xf32>
    %518 = tpu.matmul %514, %365, %cst_148 {dimension_numbers = #tpu.dot_dimension_numbers<[1], [0], [0], [1], [0, 0, 1, 1], [], []>} : vector<2x32xf32>, vector<32x32xf32>, vector<2x32xf32> -> vector<2x32xf32>
    %519 = vector.broadcast %371 : vector<1x32xf32> to vector<2x32xf32>
    %520 = arith.addf %518, %519 : vector<2x32xf32>
    %cst_149 = arith.constant dense<0.000000e+00> : vector<2x32xf32>
    %521 = tpu.matmul %514, %367, %cst_149 {dimension_numbers = #tpu.dot_dimension_numbers<[1], [0], [0], [1], [0, 0, 1, 1], [], []>} : vector<2x32xf32>, vector<32x32xf32>, vector<2x32xf32> -> vector<2x32xf32>
    %522 = vector.broadcast %373 : vector<1x32xf32> to vector<2x32xf32>
    %523 = arith.addf %521, %522 : vector<2x32xf32>
    %524 = vector.extract_strided_slice %345 {offsets = [4, 0, 0], sizes = [1, 2, 32], strides = [1, 1, 1]} : vector<8x2x32xf32> to vector<1x2x32xf32>
    %525 = vector.shape_cast %524 : vector<1x2x32xf32> to vector<2x32xf32>
    %526 = arith.addf %525, %517 : vector<2x32xf32>
    %527 = arith.negf %526 : vector<2x32xf32>
    %528 = math.exp %527 : vector<2x32xf32>
    %cst_150 = arith.constant 1.000000e+00 : f32
    %529 = vector.broadcast %cst_150 : f32 to vector<2x32xf32>
    %530 = arith.addf %529, %528 : vector<2x32xf32>
    %531 = arith.divf %529, %530 : vector<2x32xf32>
    %532 = vector.extract_strided_slice %353 {offsets = [4, 0, 0], sizes = [1, 2, 32], strides = [1, 1, 1]} : vector<8x2x32xf32> to vector<1x2x32xf32>
    %533 = vector.shape_cast %532 : vector<1x2x32xf32> to vector<2x32xf32>
    %534 = arith.addf %533, %520 : vector<2x32xf32>
    %535 = arith.negf %534 : vector<2x32xf32>
    %536 = math.exp %535 : vector<2x32xf32>
    %cst_151 = arith.constant 1.000000e+00 : f32
    %537 = vector.broadcast %cst_151 : f32 to vector<2x32xf32>
    %538 = arith.addf %537, %536 : vector<2x32xf32>
    %539 = arith.divf %537, %538 : vector<2x32xf32>
    %540 = vector.extract_strided_slice %361 {offsets = [4, 0, 0], sizes = [1, 2, 32], strides = [1, 1, 1]} : vector<8x2x32xf32> to vector<1x2x32xf32>
    %541 = vector.shape_cast %540 : vector<1x2x32xf32> to vector<2x32xf32>
    %542 = arith.mulf %531, %523 : vector<2x32xf32>
    %543 = arith.addf %541, %542 : vector<2x32xf32>
    %544 = math.tanh %543 : vector<2x32xf32>
    %cst_152 = arith.constant 1.000000e+00 : f32
    %545 = vector.broadcast %cst_152 : f32 to vector<2x32xf32>
    %546 = arith.subf %545, %539 : vector<2x32xf32>
    %547 = arith.mulf %546, %544 : vector<2x32xf32>
    %548 = arith.mulf %539, %514 : vector<2x32xf32>
    %549 = arith.addf %547, %548 : vector<2x32xf32>
    %cst_153 = arith.constant dense<0.000000e+00> : vector<2x32xf32>
    %550 = tpu.matmul %549, %363, %cst_153 {dimension_numbers = #tpu.dot_dimension_numbers<[1], [0], [0], [1], [0, 0, 1, 1], [], []>} : vector<2x32xf32>, vector<32x32xf32>, vector<2x32xf32> -> vector<2x32xf32>
    %551 = vector.broadcast %369 : vector<1x32xf32> to vector<2x32xf32>
    %552 = arith.addf %550, %551 : vector<2x32xf32>
    %cst_154 = arith.constant dense<0.000000e+00> : vector<2x32xf32>
    %553 = tpu.matmul %549, %365, %cst_154 {dimension_numbers = #tpu.dot_dimension_numbers<[1], [0], [0], [1], [0, 0, 1, 1], [], []>} : vector<2x32xf32>, vector<32x32xf32>, vector<2x32xf32> -> vector<2x32xf32>
    %554 = vector.broadcast %371 : vector<1x32xf32> to vector<2x32xf32>
    %555 = arith.addf %553, %554 : vector<2x32xf32>
    %cst_155 = arith.constant dense<0.000000e+00> : vector<2x32xf32>
    %556 = tpu.matmul %549, %367, %cst_155 {dimension_numbers = #tpu.dot_dimension_numbers<[1], [0], [0], [1], [0, 0, 1, 1], [], []>} : vector<2x32xf32>, vector<32x32xf32>, vector<2x32xf32> -> vector<2x32xf32>
    %557 = vector.broadcast %373 : vector<1x32xf32> to vector<2x32xf32>
    %558 = arith.addf %556, %557 : vector<2x32xf32>
    %559 = vector.extract_strided_slice %345 {offsets = [5, 0, 0], sizes = [1, 2, 32], strides = [1, 1, 1]} : vector<8x2x32xf32> to vector<1x2x32xf32>
    %560 = vector.shape_cast %559 : vector<1x2x32xf32> to vector<2x32xf32>
    %561 = arith.addf %560, %552 : vector<2x32xf32>
    %562 = arith.negf %561 : vector<2x32xf32>
    %563 = math.exp %562 : vector<2x32xf32>
    %cst_156 = arith.constant 1.000000e+00 : f32
    %564 = vector.broadcast %cst_156 : f32 to vector<2x32xf32>
    %565 = arith.addf %564, %563 : vector<2x32xf32>
    %566 = arith.divf %564, %565 : vector<2x32xf32>
    %567 = vector.extract_strided_slice %353 {offsets = [5, 0, 0], sizes = [1, 2, 32], strides = [1, 1, 1]} : vector<8x2x32xf32> to vector<1x2x32xf32>
    %568 = vector.shape_cast %567 : vector<1x2x32xf32> to vector<2x32xf32>
    %569 = arith.addf %568, %555 : vector<2x32xf32>
    %570 = arith.negf %569 : vector<2x32xf32>
    %571 = math.exp %570 : vector<2x32xf32>
    %cst_157 = arith.constant 1.000000e+00 : f32
    %572 = vector.broadcast %cst_157 : f32 to vector<2x32xf32>
    %573 = arith.addf %572, %571 : vector<2x32xf32>
    %574 = arith.divf %572, %573 : vector<2x32xf32>
    %575 = vector.extract_strided_slice %361 {offsets = [5, 0, 0], sizes = [1, 2, 32], strides = [1, 1, 1]} : vector<8x2x32xf32> to vector<1x2x32xf32>
    %576 = vector.shape_cast %575 : vector<1x2x32xf32> to vector<2x32xf32>
    %577 = arith.mulf %566, %558 : vector<2x32xf32>
    %578 = arith.addf %576, %577 : vector<2x32xf32>
    %579 = math.tanh %578 : vector<2x32xf32>
    %cst_158 = arith.constant 1.000000e+00 : f32
    %580 = vector.broadcast %cst_158 : f32 to vector<2x32xf32>
    %581 = arith.subf %580, %574 : vector<2x32xf32>
    %582 = arith.mulf %581, %579 : vector<2x32xf32>
    %583 = arith.mulf %574, %549 : vector<2x32xf32>
    %584 = arith.addf %582, %583 : vector<2x32xf32>
    %cst_159 = arith.constant dense<0.000000e+00> : vector<2x32xf32>
    %585 = tpu.matmul %584, %363, %cst_159 {dimension_numbers = #tpu.dot_dimension_numbers<[1], [0], [0], [1], [0, 0, 1, 1], [], []>} : vector<2x32xf32>, vector<32x32xf32>, vector<2x32xf32> -> vector<2x32xf32>
    %586 = vector.broadcast %369 : vector<1x32xf32> to vector<2x32xf32>
    %587 = arith.addf %585, %586 : vector<2x32xf32>
    %cst_160 = arith.constant dense<0.000000e+00> : vector<2x32xf32>
    %588 = tpu.matmul %584, %365, %cst_160 {dimension_numbers = #tpu.dot_dimension_numbers<[1], [0], [0], [1], [0, 0, 1, 1], [], []>} : vector<2x32xf32>, vector<32x32xf32>, vector<2x32xf32> -> vector<2x32xf32>
    %589 = vector.broadcast %371 : vector<1x32xf32> to vector<2x32xf32>
    %590 = arith.addf %588, %589 : vector<2x32xf32>
    %cst_161 = arith.constant dense<0.000000e+00> : vector<2x32xf32>
    %591 = tpu.matmul %584, %367, %cst_161 {dimension_numbers = #tpu.dot_dimension_numbers<[1], [0], [0], [1], [0, 0, 1, 1], [], []>} : vector<2x32xf32>, vector<32x32xf32>, vector<2x32xf32> -> vector<2x32xf32>
    %592 = vector.broadcast %373 : vector<1x32xf32> to vector<2x32xf32>
    %593 = arith.addf %591, %592 : vector<2x32xf32>
    %594 = vector.extract_strided_slice %345 {offsets = [6, 0, 0], sizes = [1, 2, 32], strides = [1, 1, 1]} : vector<8x2x32xf32> to vector<1x2x32xf32>
    %595 = vector.shape_cast %594 : vector<1x2x32xf32> to vector<2x32xf32>
    %596 = arith.addf %595, %587 : vector<2x32xf32>
    %597 = arith.negf %596 : vector<2x32xf32>
    %598 = math.exp %597 : vector<2x32xf32>
    %cst_162 = arith.constant 1.000000e+00 : f32
    %599 = vector.broadcast %cst_162 : f32 to vector<2x32xf32>
    %600 = arith.addf %599, %598 : vector<2x32xf32>
    %601 = arith.divf %599, %600 : vector<2x32xf32>
    %602 = vector.extract_strided_slice %353 {offsets = [6, 0, 0], sizes = [1, 2, 32], strides = [1, 1, 1]} : vector<8x2x32xf32> to vector<1x2x32xf32>
    %603 = vector.shape_cast %602 : vector<1x2x32xf32> to vector<2x32xf32>
    %604 = arith.addf %603, %590 : vector<2x32xf32>
    %605 = arith.negf %604 : vector<2x32xf32>
    %606 = math.exp %605 : vector<2x32xf32>
    %cst_163 = arith.constant 1.000000e+00 : f32
    %607 = vector.broadcast %cst_163 : f32 to vector<2x32xf32>
    %608 = arith.addf %607, %606 : vector<2x32xf32>
    %609 = arith.divf %607, %608 : vector<2x32xf32>
    %610 = vector.extract_strided_slice %361 {offsets = [6, 0, 0], sizes = [1, 2, 32], strides = [1, 1, 1]} : vector<8x2x32xf32> to vector<1x2x32xf32>
    %611 = vector.shape_cast %610 : vector<1x2x32xf32> to vector<2x32xf32>
    %612 = arith.mulf %601, %593 : vector<2x32xf32>
    %613 = arith.addf %611, %612 : vector<2x32xf32>
    %614 = math.tanh %613 : vector<2x32xf32>
    %cst_164 = arith.constant 1.000000e+00 : f32
    %615 = vector.broadcast %cst_164 : f32 to vector<2x32xf32>
    %616 = arith.subf %615, %609 : vector<2x32xf32>
    %617 = arith.mulf %616, %614 : vector<2x32xf32>
    %618 = arith.mulf %609, %584 : vector<2x32xf32>
    %619 = arith.addf %617, %618 : vector<2x32xf32>
    %cst_165 = arith.constant dense<0.000000e+00> : vector<2x32xf32>
    %620 = tpu.matmul %619, %363, %cst_165 {dimension_numbers = #tpu.dot_dimension_numbers<[1], [0], [0], [1], [0, 0, 1, 1], [], []>} : vector<2x32xf32>, vector<32x32xf32>, vector<2x32xf32> -> vector<2x32xf32>
    %621 = vector.broadcast %369 : vector<1x32xf32> to vector<2x32xf32>
    %622 = arith.addf %620, %621 : vector<2x32xf32>
    %cst_166 = arith.constant dense<0.000000e+00> : vector<2x32xf32>
    %623 = tpu.matmul %619, %365, %cst_166 {dimension_numbers = #tpu.dot_dimension_numbers<[1], [0], [0], [1], [0, 0, 1, 1], [], []>} : vector<2x32xf32>, vector<32x32xf32>, vector<2x32xf32> -> vector<2x32xf32>
    %624 = vector.broadcast %371 : vector<1x32xf32> to vector<2x32xf32>
    %625 = arith.addf %623, %624 : vector<2x32xf32>
    %cst_167 = arith.constant dense<0.000000e+00> : vector<2x32xf32>
    %626 = tpu.matmul %619, %367, %cst_167 {dimension_numbers = #tpu.dot_dimension_numbers<[1], [0], [0], [1], [0, 0, 1, 1], [], []>} : vector<2x32xf32>, vector<32x32xf32>, vector<2x32xf32> -> vector<2x32xf32>
    %627 = vector.broadcast %373 : vector<1x32xf32> to vector<2x32xf32>
    %628 = arith.addf %626, %627 : vector<2x32xf32>
    %629 = vector.extract_strided_slice %345 {offsets = [7, 0, 0], sizes = [1, 2, 32], strides = [1, 1, 1]} : vector<8x2x32xf32> to vector<1x2x32xf32>
    %630 = vector.shape_cast %629 : vector<1x2x32xf32> to vector<2x32xf32>
    %631 = arith.addf %630, %622 : vector<2x32xf32>
    %632 = arith.negf %631 : vector<2x32xf32>
    %633 = math.exp %632 : vector<2x32xf32>
    %cst_168 = arith.constant 1.000000e+00 : f32
    %634 = vector.broadcast %cst_168 : f32 to vector<2x32xf32>
    %635 = arith.addf %634, %633 : vector<2x32xf32>
    %636 = arith.divf %634, %635 : vector<2x32xf32>
    %637 = vector.extract_strided_slice %353 {offsets = [7, 0, 0], sizes = [1, 2, 32], strides = [1, 1, 1]} : vector<8x2x32xf32> to vector<1x2x32xf32>
    %638 = vector.shape_cast %637 : vector<1x2x32xf32> to vector<2x32xf32>
    %639 = arith.addf %638, %625 : vector<2x32xf32>
    %640 = arith.negf %639 : vector<2x32xf32>
    %641 = math.exp %640 : vector<2x32xf32>
    %cst_169 = arith.constant 1.000000e+00 : f32
    %642 = vector.broadcast %cst_169 : f32 to vector<2x32xf32>
    %643 = arith.addf %642, %641 : vector<2x32xf32>
    %644 = arith.divf %642, %643 : vector<2x32xf32>
    %645 = vector.extract_strided_slice %361 {offsets = [7, 0, 0], sizes = [1, 2, 32], strides = [1, 1, 1]} : vector<8x2x32xf32> to vector<1x2x32xf32>
    %646 = vector.shape_cast %645 : vector<1x2x32xf32> to vector<2x32xf32>
    %647 = arith.mulf %636, %628 : vector<2x32xf32>
    %648 = arith.addf %646, %647 : vector<2x32xf32>
    %649 = math.tanh %648 : vector<2x32xf32>
    %cst_170 = arith.constant 1.000000e+00 : f32
    %650 = vector.broadcast %cst_170 : f32 to vector<2x32xf32>
    %651 = arith.subf %650, %644 : vector<2x32xf32>
    %652 = arith.mulf %651, %649 : vector<2x32xf32>
    %653 = arith.mulf %644, %619 : vector<2x32xf32>
    %654 = arith.addf %652, %653 : vector<2x32xf32>
    %655 = vector.shape_cast %409 : vector<2x32xf32> to vector<1x2x32xf32>
    %656 = vector.shape_cast %444 : vector<2x32xf32> to vector<1x2x32xf32>
    %657 = vector.shape_cast %479 : vector<2x32xf32> to vector<1x2x32xf32>
    %658 = vector.shape_cast %514 : vector<2x32xf32> to vector<1x2x32xf32>
    %659 = vector.shape_cast %549 : vector<2x32xf32> to vector<1x2x32xf32>
    %660 = vector.shape_cast %584 : vector<2x32xf32> to vector<1x2x32xf32>
    %661 = vector.shape_cast %619 : vector<2x32xf32> to vector<1x2x32xf32>
    %662 = vector.shape_cast %654 : vector<2x32xf32> to vector<1x2x32xf32>
    %663 = tpu.concatenate %655, %656, %657, %658, %659, %660, %661, %662 in 0 : vector<1x2x32xf32>, vector<1x2x32xf32>, vector<1x2x32xf32>, vector<1x2x32xf32>, vector<1x2x32xf32>, vector<1x2x32xf32>, vector<1x2x32xf32>, vector<1x2x32xf32> -> vector<8x2x32xf32>
    %c0_171 = arith.constant 0 : index
    %c0_172 = arith.constant 0 : index
    %664 = vector.load %arg9[%c0_171, %c0_172] : memref<1x32xf32, #tpu.memory_space<vmem>>, vector<1x32xf32>
    %665 = vector.shape_cast %664 : vector<1x32xf32> to vector<1x1x32xf32>
    %666 = vector.broadcast %665 : vector<1x1x32xf32> to vector<8x2x32xf32>
    %667 = arith.mulf %663, %666 : vector<8x2x32xf32>
    %cst_173 = arith.constant dense<0.000000e+00> : vector<8x2xf32>
    %668 = vector.multi_reduction <add>, %667, %cst_173 [2] : vector<8x2x32xf32> to vector<8x2xf32>
    %c0_174 = arith.constant 0 : index
    %c0_175 = arith.constant 0 : index
    %669 = vector.load %arg10[%c0_174, %c0_175] : memref<1x1xf32, #tpu.memory_space<vmem>>, vector<1x1xf32>
    %670 = vector.broadcast %669 : vector<1x1xf32> to vector<8x2xf32>
    %671 = arith.addf %668, %670 : vector<8x2xf32>
    %c0_176 = arith.constant 0 : index
    %c0_177 = arith.constant 0 : index
    %672 = vector.load %arg11[%c0_176, %c0_177] : memref<8x2xf32, #tpu.memory_space<vmem>>, vector<8x2xf32>
    tpu.vector_store %arg11[%c0_176, %c0_177], %671 {strides = array<i32>} : memref<8x2xf32, #tpu.memory_space<vmem>>, vector<8x2xf32>,
    return
  }
}

</mosaic_0001>

<llo_original>
// kernel: tpu_custom_call.1
$region0: #{tpu_custom_call.1}
  #allocation0 [shape = 'u32[]', space=smem, size = 0x4, offset = 0x4, fixed_abs, tag = 'smem constant byte address 0x4 - core index']
  #allocation1 [shape = 'u32[144,128]{1,0:T(1,128)}', space=vmem, size = 0x12000, scoped, tag = 'internal scratch']
  #allocation2 [shape = 'f32[1,1]{1,0:T(1,128)S(1)}', space=vmem, size = 0x200, scoped, tag = 'scoped memory for tpu_custom_call.1']
  %s0 = inlined_call_operand.vmem [shape: f32[8,2], index: 0, kind: input, shape index: {}]
  %s1 = inlined_call_operand.vmem [shape: f32[3,1,32], index: 1, kind: input, shape index: {}]
  %s2 = inlined_call_operand.vmem [shape: f32[3,1,32], index: 2, kind: input, shape index: {}]
  %s3 = inlined_call_operand.hbm [shape: f32[3,32,32], index: 3, kind: input, shape index: {}]
  %s4 = inlined_call_operand.vmem [shape: f32[3,1,32], index: 4, kind: input, shape index: {}]
  %s5 = inlined_call_operand.hbm [shape: f32[3,32,32], index: 5, kind: input, shape index: {}]
  %s6 = inlined_call_operand.vmem [shape: f32[3,1,32], index: 6, kind: input, shape index: {}]
  %s7 = inlined_call_operand.hbm [shape: f32[3,32,32], index: 7, kind: input, shape index: {}]
  %s8 = inlined_call_operand.vmem [shape: f32[3,1,32], index: 8, kind: input, shape index: {}]
  %s9 = inlined_call_operand.vmem [shape: f32[1,32], index: 9, kind: input, shape index: {}]
  %s10 = inlined_call_operand.<no memory space> [shape: f32[1,1], index: 10, kind: input, shape index: {}]
  %s11 = inlined_call_operand.vmem [shape: f32[8,2], index: 11, kind: output, shape index: {}]
  %s12 = sld [smem:[#allocation0]]
  $region66: #{tpu_custom_call.1} parent=0
    _
  %s14 = ssub.s32 1, %s12
  %s15 = scalar_select 0, %s14, %s12
  %v16 = vstv %s10
  %17 = vst [vmem:[#allocation2] sm:$0x1] %v16
  $region1: #{tpu_custom_call.1} parent=0
    #allocation3 [shape = 'u8[49152]{0}', space=vmem, size = 0xc000, scoped, tag = 'input window, operand 3, single buffered']
    #allocation4 [shape = 's32[1]{0}', space=sflag, size = 0x4, scoped, tag = 'scoped memory for tpu_custom_call.1']
    #allocation5 [shape = 'u8[49152]{0}', space=vmem, size = 0xc000, scoped, tag = 'input window, operand 5, single buffered']
    #allocation6 [shape = 's32[1]{0}', space=sflag, size = 0x4, scoped, tag = 'scoped memory for tpu_custom_call.1']
    #allocation7 [shape = 'u8[49152]{0}', space=vmem, size = 0xc000, scoped, tag = 'input window, operand 7, single buffered']
    %18 = vsyncpa [#allocation4], 0
    %19 = vsyncpa [#allocation6], 0
    // Predicated region
    $region2: #{tpu_custom_call.1} parent=1 // pred_check
      _
    $region3: #{tpu_custom_call.1} parent=1 // pred_check_branch
      %21 = sbr.rel (0) target = $region5
    $region4: #{tpu_custom_call.1} parent=1 // pred_region
      _
    $region5: #{tpu_custom_call.1} parent=1 // pred_fallthru
      _
    // Predicated region
    $region6: #{tpu_custom_call.1} parent=1 // pred_check
      _
    $region7: #{tpu_custom_call.1} parent=1 // pred_check_branch
      %23 = sbr.rel (0) target = $region9
    $region8: #{tpu_custom_call.1} parent=1 // pred_region
      _
    $region9: #{tpu_custom_call.1} parent=1 // pred_fallthru
      _
    // Predicated region
    $region10: #{tpu_custom_call.1} parent=1 // pred_check
      _
    $region11: #{tpu_custom_call.1} parent=1 // pred_check_branch
      %25 = sbr.rel (0) target = $region13
    $region12: #{tpu_custom_call.1} parent=1 // pred_region
      _
    $region13: #{tpu_custom_call.1} parent=1 // pred_fallthru
      _
    // Predicated region
    $region14: #{tpu_custom_call.1} parent=1 // pred_check
      _
    $region15: #{tpu_custom_call.1} parent=1 // pred_check_branch
      %27 = sbr.rel (0) target = $region17
    $region16: #{tpu_custom_call.1} parent=1 // pred_region
      %s29 = ssub.s32 1536, 1536
      %30 = vsyncadd [#allocation4], %s29
      %s31 = sshll.u32 [#allocation3], 4
      %s32 = int_to_ptr.vmem [resolvable:$true] %s31
      %37 = dma.hbm_to_vmem [thread:$0]  %s3, 1536, %s32, [#allocation4], 128, 128, 8
    $region17: #{tpu_custom_call.1} parent=1 // pred_fallthru
      _
    // Predicated region
    $region18: #{tpu_custom_call.1} parent=1 // pred_check
      _
    $region19: #{tpu_custom_call.1} parent=1 // pred_check_branch
      %39 = sbr.rel (0) target = $region21
    $region20: #{tpu_custom_call.1} parent=1 // pred_region
      _
    $region21: #{tpu_custom_call.1} parent=1 // pred_fallthru
      _
    // Predicated region
    $region22: #{tpu_custom_call.1} parent=1 // pred_check
      _
    $region23: #{tpu_custom_call.1} parent=1 // pred_check_branch
      %41 = sbr.rel (0) target = $region25
    $region24: #{tpu_custom_call.1} parent=1 // pred_region
      %s43 = ssub.s32 1536, 1536
      %44 = vsyncadd [#allocation6], %s43
      %s45 = sshll.u32 [#allocation5], 4
      %s46 = int_to_ptr.vmem [resolvable:$true] %s45
      %51 = dma.hbm_to_vmem [thread:$0]  %s5, 1536, %s46, [#allocation6], 128, 128, 8
    $region25: #{tpu_custom_call.1} parent=1 // pred_fallthru
      _
    // Predicated region
    $region26: #{tpu_custom_call.1} parent=1 // pred_check
      _
    $region27: #{tpu_custom_call.1} parent=1 // pred_check_branch
      %53 = sbr.rel (0) target = $region29
    $region28: #{tpu_custom_call.1} parent=1 // pred_region
      _
    $region29: #{tpu_custom_call.1} parent=1 // pred_fallthru
      _
    // Predicated region
    $region30: #{tpu_custom_call.1} parent=1 // pred_check
      _
    $region31: #{tpu_custom_call.1} parent=1 // pred_check_branch
      %55 = sbr.rel (0) target = $region33
    $region32: #{tpu_custom_call.1} parent=1 // pred_region
      %s57 = ssub.s32 1536, 1536
      %58 = vsyncadd [#allocation6], %s57
      %s59 = sshll.u32 [#allocation7], 4
      %s60 = int_to_ptr.vmem [resolvable:$true] %s59
      %65 = dma.hbm_to_vmem [thread:$0]  %s7, 1536, %s60, [#allocation6], 128, 128, 8
    $region33: #{tpu_custom_call.1} parent=1 // pred_fallthru
      _
    // Predicated region
    $region34: #{tpu_custom_call.1} parent=1 // pred_check
      _
    $region35: #{tpu_custom_call.1} parent=1 // pred_check_branch
      %67 = sbr.rel (0) target = $region37
    $region36: #{tpu_custom_call.1} parent=1 // pred_region
      _
    $region37: #{tpu_custom_call.1} parent=1 // pred_fallthru
      _
    // Predicated region
    $region38: #{tpu_custom_call.1} parent=1 // pred_check
      _
    $region39: #{tpu_custom_call.1} parent=1 // pred_check_branch
      %69 = sbr.rel (0) target = $region41
    $region40: #{tpu_custom_call.1} parent=1 // pred_region
      _
    $region41: #{tpu_custom_call.1} parent=1 // pred_fallthru
      _
    // Predicated region
    $region42: #{tpu_custom_call.1} parent=1 // pred_check
      _
    $region43: #{tpu_custom_call.1} parent=1 // pred_check_branch
      %71 = sbr.rel (0) target = $region45
    $region44: #{tpu_custom_call.1} parent=1 // pred_region
      _
    $region45: #{tpu_custom_call.1} parent=1 // pred_fallthru
      _
    // Predicated region
    $region46: #{tpu_custom_call.1} parent=1 // pred_check
      _
    $region47: #{tpu_custom_call.1} parent=1 // pred_check_branch
      %73 = sbr.rel (0) target = $region49
    $region48: #{tpu_custom_call.1} parent=1 // pred_region
      %74 = dma.done [#allocation4], 1536
    $region49: #{tpu_custom_call.1} parent=1 // pred_fallthru
      _
    // Predicated region
    $region50: #{tpu_custom_call.1} parent=1 // pred_check
      _
    $region51: #{tpu_custom_call.1} parent=1 // pred_check_branch
      %76 = sbr.rel (0) target = $region53
    $region52: #{tpu_custom_call.1} parent=1 // pred_region
      %77 = dma.done [#allocation6], 1536
    $region53: #{tpu_custom_call.1} parent=1 // pred_fallthru
      _
    // Predicated region
    $region54: #{tpu_custom_call.1} parent=1 // pred_check
      _
    $region55: #{tpu_custom_call.1} parent=1 // pred_check_branch
      %79 = sbr.rel (0) target = $region57
    $region56: #{tpu_custom_call.1} parent=1 // pred_region
      %80 = dma.done [#allocation6], 1536
    $region57: #{tpu_custom_call.1} parent=1 // pred_fallthru
      _
    %v81 = vld [vmem:[%s0] sm:$0xff]
    %v82 = vlaneseq
    %v83 = vshrl.u32 %v82, 7
    %v84 = vsub.s32 0, %v83
    %v85 = vrot.slane %v81, %v84
    %87 = vbcast.lane.b32.xlu0 %v85, 256
    %v88 = vpop.permute.xlu0 %87
    %v89 = vlaneseq
    %v90 = vshrl.u32 %v89, 7
    %v91 = vsub.s32 1, %v90
    %v92 = vrot.slane %v81, %v91
    %94 = vbcast.lane.b32.xlu0 %v92, 256
    %v95 = vpop.permute.xlu0 %94
    %v96 = vlaneseq
    %v97 = vshrl.u32 %v96, 7
    %v98 = vsub.s32 2, %v97
    %v99 = vrot.slane %v81, %v98
    %101 = vbcast.lane.b32.xlu0 %v99, 256
    %v102 = vpop.permute.xlu0 %101
    %v103 = vlaneseq
    %v104 = vshrl.u32 %v103, 7
    %v105 = vsub.s32 3, %v104
    %v106 = vrot.slane %v81, %v105
    %108 = vbcast.lane.b32.xlu0 %v106, 256
    %v109 = vpop.permute.xlu0 %108
    %v110 = vlaneseq
    %v111 = vshrl.u32 %v110, 7
    %v112 = vsub.s32 4, %v111
    %v113 = vrot.slane %v81, %v112
    %115 = vbcast.lane.b32.xlu0 %v113, 256
    %v116 = vpop.permute.xlu0 %115
    %v117 = vlaneseq
    %v118 = vshrl.u32 %v117, 7
    %v119 = vsub.s32 5, %v118
    %v120 = vrot.slane %v81, %v119
    %122 = vbcast.lane.b32.xlu0 %v120, 256
    %v123 = vpop.permute.xlu0 %122
    %v124 = vlaneseq
    %v125 = vshrl.u32 %v124, 7
    %v126 = vsub.s32 6, %v125
    %v127 = vrot.slane %v81, %v126
    %129 = vbcast.lane.b32.xlu0 %v127, 256
    %v130 = vpop.permute.xlu0 %129
    %v131 = vlaneseq
    %v132 = vshrl.u32 %v131, 7
    %v133 = vsub.s32 7, %v132
    %v134 = vrot.slane %v81, %v133
    %136 = vbcast.lane.b32.xlu0 %v134, 256
    %v137 = vpop.permute.xlu0 %136
    %v138 = vld [vmem:[%s1] sm:$0x1]
    %v140 = vlaneseq
    %v141 = vshrl.u32 %v140, 7
    %v142 = vsub.s32 0, %v141
    %v143 = vrot.slane %v138, %v142
    %v145 = vmul.f32 %v88, %v143
    %v146 = vmul.f32 %v95, %v143
    %v147 = vmul.f32 %v102, %v143
    %v148 = vmul.f32 %v109, %v143
    %v149 = vmul.f32 %v116, %v143
    %v150 = vmul.f32 %v123, %v143
    %v151 = vmul.f32 %v130, %v143
    %v152 = vmul.f32 %v137, %v143
    %v153 = vld [vmem:[%s2] sm:$0x1]
    %v155 = vlaneseq
    %v156 = vshrl.u32 %v155, 7
    %v157 = vsub.s32 0, %v156
    %v158 = vrot.slane %v153, %v157
    %v160 = vadd.f32 %v145, %v158
    %v161 = vadd.f32 %v146, %v158
    %v162 = vadd.f32 %v147, %v158
    %v163 = vadd.f32 %v148, %v158
    %v164 = vadd.f32 %v149, %v158
    %v165 = vadd.f32 %v150, %v158
    %v166 = vadd.f32 %v151, %v158
    %v167 = vadd.f32 %v152, %v158
    %s168 = scalar_lea.vmem %s1, 1
    %v169 = vld [vmem:[%s168] sm:$0x1]
    %v171 = vlaneseq
    %v172 = vshrl.u32 %v171, 7
    %v173 = vsub.s32 0, %v172
    %v174 = vrot.slane %v169, %v173
    %v176 = vmul.f32 %v88, %v174
    %v177 = vmul.f32 %v95, %v174
    %v178 = vmul.f32 %v102, %v174
    %v179 = vmul.f32 %v109, %v174
    %v180 = vmul.f32 %v116, %v174
    %v181 = vmul.f32 %v123, %v174
    %v182 = vmul.f32 %v130, %v174
    %v183 = vmul.f32 %v137, %v174
    %s184 = scalar_lea.vmem %s2, 1
    %v185 = vld [vmem:[%s184] sm:$0x1]
    %v187 = vlaneseq
    %v188 = vshrl.u32 %v187, 7
    %v189 = vsub.s32 0, %v188
    %v190 = vrot.slane %v185, %v189
    %v192 = vadd.f32 %v176, %v190
    %v193 = vadd.f32 %v177, %v190
    %v194 = vadd.f32 %v178, %v190
    %v195 = vadd.f32 %v179, %v190
    %v196 = vadd.f32 %v180, %v190
    %v197 = vadd.f32 %v181, %v190
    %v198 = vadd.f32 %v182, %v190
    %v199 = vadd.f32 %v183, %v190
    %s200 = scalar_lea.vmem %s1, 2
    %v201 = vld [vmem:[%s200] sm:$0x1]
    %v203 = vlaneseq
    %v204 = vshrl.u32 %v203, 7
    %v205 = vsub.s32 0, %v204
    %v206 = vrot.slane %v201, %v205
    %v208 = vmul.f32 %v88, %v206
    %v209 = vmul.f32 %v95, %v206
    %v210 = vmul.f32 %v102, %v206
    %v211 = vmul.f32 %v109, %v206
    %v212 = vmul.f32 %v116, %v206
    %v213 = vmul.f32 %v123, %v206
    %v214 = vmul.f32 %v130, %v206
    %v215 = vmul.f32 %v137, %v206
    %s216 = scalar_lea.vmem %s2, 2
    %v217 = vld [vmem:[%s216] sm:$0x1]
    %v219 = vlaneseq
    %v220 = vshrl.u32 %v219, 7
    %v221 = vsub.s32 0, %v220
    %v222 = vrot.slane %v217, %v221
    %v224 = vadd.f32 %v208, %v222
    %v225 = vadd.f32 %v209, %v222
    %v226 = vadd.f32 %v210, %v222
    %v227 = vadd.f32 %v211, %v222
    %v228 = vadd.f32 %v212, %v222
    %v229 = vadd.f32 %v213, %v222
    %v230 = vadd.f32 %v214, %v222
    %v231 = vadd.f32 %v215, %v222
    %v232 = vld [vmem:[#allocation3] sm:$0xff]
    %v233 = vld [vmem:[#allocation3 + $0x8] sm:$0xff]
    %v234 = vld [vmem:[#allocation3 + $0x10] sm:$0xff]
    %v235 = vld [vmem:[#allocation3 + $0x18] sm:$0xff]
    %s236 = scalar_lea.vmem [#allocation3], 32
    %v237 = vld [vmem:[%s236] sm:$0xff]
    %v238 = vld [vmem:[%s236 + $0x8] sm:$0xff]
    %v239 = vld [vmem:[%s236 + $0x10] sm:$0xff]
    %v240 = vld [vmem:[%s236 + $0x18] sm:$0xff]
    %s241 = scalar_lea.vmem [#allocation3], 64
    %v242 = vld [vmem:[%s241] sm:$0xff]
    %v243 = vld [vmem:[%s241 + $0x8] sm:$0xff]
    %v244 = vld [vmem:[%s241 + $0x10] sm:$0xff]
    %v245 = vld [vmem:[%s241 + $0x18] sm:$0xff]
    %v246 = vld [vmem:[%s4] sm:$0x1]
    %s247 = scalar_lea.vmem %s4, 1
    %v248 = vld [vmem:[%s247] sm:$0x1]
    %s249 = scalar_lea.vmem %s4, 2
    %v250 = vld [vmem:[%s249] sm:$0x1]
    %v252 = vlaneseq
    %v253 = vshrl.u32 %v252, 7
    %v254 = vsub.s32 0, %v253
    %v255 = vrot.slane %v246, %v254
    %vm257 = vcmask 261120
    %v259 = vsel %vm257, 0.0, 0
    %261 = vmatprep.subr.mxu0 0.0
    %262 = vmatpush1.msra.mxu0 %v232
    %263 = vmatprep.subr.mxu0 0.0
    %264 = vmatpush1.msra.mxu0 %v233
    %265 = vmatprep.subr.mxu0 0.0
    %266 = vmatpush1.msra.mxu0 %v234
    %267 = vmatprep.subr.mxu0 0.0
    %268 = vmatpush1.msra.mxu0 %v235
    %269 = vmatprep.subr.mxu0 0.0
    %270 = vmatpush1.msra.mxu0 0.0
    %271 = vmatprep.subr.mxu0 0.0
    %272 = vmatpush1.msra.mxu0 0.0
    %273 = vmatprep.subr.mxu0 0.0
    %274 = vmatpush1.msra.mxu0 0.0
    %275 = vmatprep.subr.mxu0 0.0
    %276 = vmatpush1.msra.mxu0 0.0
    %277 = vmatprep.subr.mxu0 0.0
    %278 = vmatpush1.msra.mxu0 0.0
    %279 = vmatprep.subr.mxu0 0.0
    %280 = vmatpush1.msra.mxu0 0.0
    %281 = vmatprep.subr.mxu0 0.0
    %282 = vmatpush1.msra.mxu0 0.0
    %283 = vmatprep.subr.mxu0 0.0
    %284 = vmatpush1.msra.mxu0 0.0
    %285 = vmatprep.subr.mxu0 0.0
    %286 = vmatpush1.msra.mxu0 0.0
    %287 = vmatprep.subr.mxu0 0.0
    %288 = vmatpush1.msra.mxu0 0.0
    %289 = vmatprep.subr.mxu0 0.0
    %290 = vmatpush1.msra.mxu0 0.0
    %291 = vmatprep.subr.mxu0 0.0
    %292 = vmatpush1.msra.mxu0 0.0
    %293 = vmatprep.subr.mxu0 0.0
    %294 = vmatpush1.msra.mxu0 0.0
    %295 = vmatprep.subr.mxu0 0.0
    %296 = vmatpush1.msra.mxu0 0.0
    %297 = vmatprep.subr.mxu0 0.0
    %298 = vmatpush1.msra.mxu0 0.0
    %299 = vmatprep.subr.mxu0 0.0
    %300 = vmatpush1.msra.mxu0 0.0
    %301 = vmatprep.subr.mxu0 0.0
    %302 = vmatpush1.msra.mxu0 0.0
    %303 = vmatprep.subr.mxu0 0.0
    %304 = vmatpush1.msra.mxu0 0.0
    %305 = vmatprep.subr.mxu0 0.0
    %306 = vmatpush1.msra.mxu0 0.0
    %307 = vmatprep.subr.mxu0 0.0
    %308 = vmatpush1.msra.mxu0 0.0
    %309 = vmatprep.subr.mxu0 0.0
    %310 = vmatpush1.msra.mxu0 0.0
    %311 = vmatprep.subr.mxu0 0.0
    %312 = vmatpush1.msra.mxu0 0.0
    %313 = vmatprep.subr.mxu0 0.0
    %314 = vmatpush1.msra.mxu0 0.0
    %315 = vmatprep.subr.mxu0 0.0
    %316 = vmatpush1.msra.mxu0 0.0
    %317 = vmatprep.subr.mxu0 0.0
    %318 = vmatpush1.msra.mxu0 0.0
    %319 = vmatprep.subr.mxu0 0.0
    %320 = vmatpush1.msra.mxu0 0.0
    %321 = vmatprep.subr.mxu0 0.0
    %322 = vmatpush1.msra.mxu0 0.0
    %323 = vmatprep.subr.mxu0 0.0
    %324 = vmatpush1.msra.mxu0 0.0
    %325 = vmatprep.mubr.f32.mxu0 0.0
    %326 = vmatmul.mubr.f32.gmra.mrb[0].mxu0 %v259
    %v327 = vpop.f32.mrb[0].mxu0
    %v328 = vadd.f32 %v255, %v327
    %v329 = vpop.f32.mrb[0].mxu0
    %330 = vdwg.mxu0
    %v332 = vlaneseq
    %v333 = vshrl.u32 %v332, 7
    %v334 = vsub.s32 0, %v333
    %v335 = vrot.slane %v248, %v334
    %337 = vmatprep.subr.mxu0 0.0
    %338 = vmatpush1.msra.mxu0 %v237
    %339 = vmatprep.subr.mxu0 0.0
    %340 = vmatpush1.msra.mxu0 %v238
    %341 = vmatprep.subr.mxu0 0.0
    %342 = vmatpush1.msra.mxu0 %v239
    %343 = vmatprep.subr.mxu0 0.0
    %344 = vmatpush1.msra.mxu0 %v240
    %345 = vmatprep.subr.mxu0 0.0
    %346 = vmatpush1.msra.mxu0 0.0
    %347 = vmatprep.subr.mxu0 0.0
    %348 = vmatpush1.msra.mxu0 0.0
    %349 = vmatprep.subr.mxu0 0.0
    %350 = vmatpush1.msra.mxu0 0.0
    %351 = vmatprep.subr.mxu0 0.0
    %352 = vmatpush1.msra.mxu0 0.0
    %353 = vmatprep.subr.mxu0 0.0
    %354 = vmatpush1.msra.mxu0 0.0
    %355 = vmatprep.subr.mxu0 0.0
    %356 = vmatpush1.msra.mxu0 0.0
    %357 = vmatprep.subr.mxu0 0.0
    %358 = vmatpush1.msra.mxu0 0.0
    %359 = vmatprep.subr.mxu0 0.0
    %360 = vmatpush1.msra.mxu0 0.0
    %361 = vmatprep.subr.mxu0 0.0
    %362 = vmatpush1.msra.mxu0 0.0
    %363 = vmatprep.subr.mxu0 0.0
    %364 = vmatpush1.msra.mxu0 0.0
    %365 = vmatprep.subr.mxu0 0.0
    %366 = vmatpush1.msra.mxu0 0.0
    %367 = vmatprep.subr.mxu0 0.0
    %368 = vmatpush1.msra.mxu0 0.0
    %369 = vmatprep.subr.mxu0 0.0
    %370 = vmatpush1.msra.mxu0 0.0
    %371 = vmatprep.subr.mxu0 0.0
    %372 = vmatpush1.msra.mxu0 0.0
    %373 = vmatprep.subr.mxu0 0.0
    %374 = vmatpush1.msra.mxu0 0.0
    %375 = vmatprep.subr.mxu0 0.0
    %376 = vmatpush1.msra.mxu0 0.0
    %377 = vmatprep.subr.mxu0 0.0
    %378 = vmatpush1.msra.mxu0 0.0
    %379 = vmatprep.subr.mxu0 0.0
    %380 = vmatpush1.msra.mxu0 0.0
    %381 = vmatprep.subr.mxu0 0.0
    %382 = vmatpush1.msra.mxu0 0.0
    %383 = vmatprep.subr.mxu0 0.0
    %384 = vmatpush1.msra.mxu0 0.0
    %385 = vmatprep.subr.mxu0 0.0
    %386 = vmatpush1.msra.mxu0 0.0
    %387 = vmatprep.subr.mxu0 0.0
    %388 = vmatpush1.msra.mxu0 0.0
    %389 = vmatprep.subr.mxu0 0.0
    %390 = vmatpush1.msra.mxu0 0.0
    %391 = vmatprep.subr.mxu0 0.0
    %392 = vmatpush1.msra.mxu0 0.0
    %393 = vmatprep.subr.mxu0 0.0
    %394 = vmatpush1.msra.mxu0 0.0
    %395 = vmatprep.subr.mxu0 0.0
    %396 = vmatpush1.msra.mxu0 0.0
    %397 = vmatprep.subr.mxu0 0.0
    %398 = vmatpush1.msra.mxu0 0.0
    %399 = vmatprep.subr.mxu0 0.0
    %400 = vmatpush1.msra.mxu0 0.0
    %401 = vmatprep.mubr.f32.mxu0 0.0
    %402 = vmatmul.mubr.f32.gmra.mrb[0].mxu0 %v259
    %v403 = vpop.f32.mrb[0].mxu0
    %v404 = vadd.f32 %v335, %v403
    %v405 = vpop.f32.mrb[0].mxu0
    %406 = vdwg.mxu0
    %v408 = vlaneseq
    %v409 = vshrl.u32 %v408, 7
    %v410 = vsub.s32 0, %v409
    %v411 = vrot.slane %v250, %v410
    %413 = vmatprep.subr.mxu0 0.0
    %414 = vmatpush1.msra.mxu0 %v242
    %415 = vmatprep.subr.mxu0 0.0
    %416 = vmatpush1.msra.mxu0 %v243
    %417 = vmatprep.subr.mxu0 0.0
    %418 = vmatpush1.msra.mxu0 %v244
    %419 = vmatprep.subr.mxu0 0.0
    %420 = vmatpush1.msra.mxu0 %v245
    %421 = vmatprep.subr.mxu0 0.0
    %422 = vmatpush1.msra.mxu0 0.0
    %423 = vmatprep.subr.mxu0 0.0
    %424 = vmatpush1.msra.mxu0 0.0
    %425 = vmatprep.subr.mxu0 0.0
    %426 = vmatpush1.msra.mxu0 0.0
    %427 = vmatprep.subr.mxu0 0.0
    %428 = vmatpush1.msra.mxu0 0.0
    %429 = vmatprep.subr.mxu0 0.0
    %430 = vmatpush1.msra.mxu0 0.0
    %431 = vmatprep.subr.mxu0 0.0
    %432 = vmatpush1.msra.mxu0 0.0
    %433 = vmatprep.subr.mxu0 0.0
    %434 = vmatpush1.msra.mxu0 0.0
    %435 = vmatprep.subr.mxu0 0.0
    %436 = vmatpush1.msra.mxu0 0.0
    %437 = vmatprep.subr.mxu0 0.0
    %438 = vmatpush1.msra.mxu0 0.0
    %439 = vmatprep.subr.mxu0 0.0
    %440 = vmatpush1.msra.mxu0 0.0
    %441 = vmatprep.subr.mxu0 0.0
    %442 = vmatpush1.msra.mxu0 0.0
    %443 = vmatprep.subr.mxu0 0.0
    %444 = vmatpush1.msra.mxu0 0.0
    %445 = vmatprep.subr.mxu0 0.0
    %446 = vmatpush1.msra.mxu0 0.0
    %447 = vmatprep.subr.mxu0 0.0
    %448 = vmatpush1.msra.mxu0 0.0
    %449 = vmatprep.subr.mxu0 0.0
    %450 = vmatpush1.msra.mxu0 0.0
    %451 = vmatprep.subr.mxu0 0.0
    %452 = vmatpush1.msra.mxu0 0.0
    %453 = vmatprep.subr.mxu0 0.0
    %454 = vmatpush1.msra.mxu0 0.0
    %455 = vmatprep.subr.mxu0 0.0
    %456 = vmatpush1.msra.mxu0 0.0
    %457 = vmatprep.subr.mxu0 0.0
    %458 = vmatpush1.msra.mxu0 0.0
    %459 = vmatprep.subr.mxu0 0.0
    %460 = vmatpush1.msra.mxu0 0.0
    %461 = vmatprep.subr.mxu0 0.0
    %462 = vmatpush1.msra.mxu0 0.0
    %463 = vmatprep.subr.mxu0 0.0
    %464 = vmatpush1.msra.mxu0 0.0
    %465 = vmatprep.subr.mxu0 0.0
    %466 = vmatpush1.msra.mxu0 0.0
    %467 = vmatprep.subr.mxu0 0.0
    %468 = vmatpush1.msra.mxu0 0.0
    %469 = vmatprep.subr.mxu0 0.0
    %470 = vmatpush1.msra.mxu0 0.0
    %471 = vmatprep.subr.mxu0 0.0
    %472 = vmatpush1.msra.mxu0 0.0
    %473 = vmatprep.subr.mxu0 0.0
    %474 = vmatpush1.msra.mxu0 0.0
    %475 = vmatprep.subr.mxu0 0.0
    %476 = vmatpush1.msra.mxu0 0.0
    %477 = vmatprep.mubr.f32.mxu0 0.0
    %478 = vmatmul.mubr.f32.gmra.mrb[0].mxu0 %v259
    %v479 = vpop.f32.mrb[0].mxu0
    %v480 = vadd.f32 %v411, %v479
    %v481 = vpop.f32.mrb[0].mxu0
    %482 = vdwg.mxu0
    %v483 = vadd.f32 %v160, %v328
    %v484 = vxor.u32 %v483, 2147483648
    %v485 = vmul.f32 %v484, 1.442695
    %v486 = vpow.pop %v485
    %v487 = vadd.f32 %v486, 1.0
    %v488 = vrcp.pop %v487
    %v489 = vmul.f32 1.0, %v488
    %v490 = vadd.f32 %v192, %v404
    %v491 = vxor.u32 %v490, 2147483648
    %v492 = vmul.f32 %v491, 1.442695
    %v493 = vpow.pop %v492
    %v494 = vadd.f32 %v493, 1.0
    %v495 = vrcp.pop %v494
    %v496 = vmul.f32 1.0, %v495
    %v497 = vmul.f32 %v489, %v480
    %v498 = vadd.f32 %v224, %v497
    %v499 = vtanh.pop %v498
    %v500 = vsub.f32 1.0, %v496
    %v501 = vmul.f32 %v500, %v499
    %v502 = vmul.f32 %v496, 0.0
    %v503 = vadd.f32 %v501, %v502
    %v505 = vsel %vm257, %v503, 0
    %507 = vmatprep.subr.mxu0 0.0
    %508 = vmatpush1.msra.mxu0 %v232
    %509 = vmatprep.subr.mxu0 0.0
    %510 = vmatpush1.msra.mxu0 %v233
    %511 = vmatprep.subr.mxu0 0.0
    %512 = vmatpush1.msra.mxu0 %v234
    %513 = vmatprep.subr.mxu0 0.0
    %514 = vmatpush1.msra.mxu0 %v235
    %515 = vmatprep.subr.mxu0 0.0
    %516 = vmatpush1.msra.mxu0 0.0
    %517 = vmatprep.subr.mxu0 0.0
    %518 = vmatpush1.msra.mxu0 0.0
    %519 = vmatprep.subr.mxu0 0.0
    %520 = vmatpush1.msra.mxu0 0.0
    %521 = vmatprep.subr.mxu0 0.0
    %522 = vmatpush1.msra.mxu0 0.0
    %523 = vmatprep.subr.mxu0 0.0
    %524 = vmatpush1.msra.mxu0 0.0
    %525 = vmatprep.subr.mxu0 0.0
    %526 = vmatpush1.msra.mxu0 0.0
    %527 = vmatprep.subr.mxu0 0.0
    %528 = vmatpush1.msra.mxu0 0.0
    %529 = vmatprep.subr.mxu0 0.0
    %530 = vmatpush1.msra.mxu0 0.0
    %531 = vmatprep.subr.mxu0 0.0
    %532 = vmatpush1.msra.mxu0 0.0
    %533 = vmatprep.subr.mxu0 0.0
    %534 = vmatpush1.msra.mxu0 0.0
    %535 = vmatprep.subr.mxu0 0.0
    %536 = vmatpush1.msra.mxu0 0.0
    %537 = vmatprep.subr.mxu0 0.0
    %538 = vmatpush1.msra.mxu0 0.0
    %539 = vmatprep.subr.mxu0 0.0
    %540 = vmatpush1.msra.mxu0 0.0
    %541 = vmatprep.subr.mxu0 0.0
    %542 = vmatpush1.msra.mxu0 0.0
    %543 = vmatprep.subr.mxu0 0.0
    %544 = vmatpush1.msra.mxu0 0.0
    %545 = vmatprep.subr.mxu0 0.0
    %546 = vmatpush1.msra.mxu0 0.0
    %547 = vmatprep.subr.mxu0 0.0
    %548 = vmatpush1.msra.mxu0 0.0
    %549 = vmatprep.subr.mxu0 0.0
    %550 = vmatpush1.msra.mxu0 0.0
    %551 = vmatprep.subr.mxu0 0.0
    %552 = vmatpush1.msra.mxu0 0.0
    %553 = vmatprep.subr.mxu0 0.0
    %554 = vmatpush1.msra.mxu0 0.0
    %555 = vmatprep.subr.mxu0 0.0
    %556 = vmatpush1.msra.mxu0 0.0
    %557 = vmatprep.subr.mxu0 0.0
    %558 = vmatpush1.msra.mxu0 0.0
    %559 = vmatprep.subr.mxu0 0.0
    %560 = vmatpush1.msra.mxu0 0.0
    %561 = vmatprep.subr.mxu0 0.0
    %562 = vmatpush1.msra.mxu0 0.0
    %563 = vmatprep.subr.mxu0 0.0
    %564 = vmatpush1.msra.mxu0 0.0
    %565 = vmatprep.subr.mxu0 0.0
    %566 = vmatpush1.msra.mxu0 0.0
    %567 = vmatprep.subr.mxu0 0.0
    %568 = vmatpush1.msra.mxu0 0.0
    %569 = vmatprep.subr.mxu0 0.0
    %570 = vmatpush1.msra.mxu0 0.0
    %571 = vmatprep.mubr.f32.mxu0 0.0
    %572 = vmatmul.mubr.f32.gmra.mrb[0].mxu0 %v505
    %v573 = vpop.f32.mrb[0].mxu0
    %v574 = vadd.f32 %v255, %v573
    %v575 = vpop.f32.mrb[0].mxu0
    %576 = vdwg.mxu0
    %577 = vmatprep.subr.mxu0 0.0
    %578 = vmatpush1.msra.mxu0 %v237
    %579 = vmatprep.subr.mxu0 0.0
    %580 = vmatpush1.msra.mxu0 %v238
    %581 = vmatprep.subr.mxu0 0.0
    %582 = vmatpush1.msra.mxu0 %v239
    %583 = vmatprep.subr.mxu0 0.0
    %584 = vmatpush1.msra.mxu0 %v240
    %585 = vmatprep.subr.mxu0 0.0
    %586 = vmatpush1.msra.mxu0 0.0
    %587 = vmatprep.subr.mxu0 0.0
    %588 = vmatpush1.msra.mxu0 0.0
    %589 = vmatprep.subr.mxu0 0.0
    %590 = vmatpush1.msra.mxu0 0.0
    %591 = vmatprep.subr.mxu0 0.0
    %592 = vmatpush1.msra.mxu0 0.0
    %593 = vmatprep.subr.mxu0 0.0
    %594 = vmatpush1.msra.mxu0 0.0
    %595 = vmatprep.subr.mxu0 0.0
    %596 = vmatpush1.msra.mxu0 0.0
    %597 = vmatprep.subr.mxu0 0.0
    %598 = vmatpush1.msra.mxu0 0.0
    %599 = vmatprep.subr.mxu0 0.0
    %600 = vmatpush1.msra.mxu0 0.0
    %601 = vmatprep.subr.mxu0 0.0
    %602 = vmatpush1.msra.mxu0 0.0
    %603 = vmatprep.subr.mxu0 0.0
    %604 = vmatpush1.msra.mxu0 0.0
    %605 = vmatprep.subr.mxu0 0.0
    %606 = vmatpush1.msra.mxu0 0.0
    %607 = vmatprep.subr.mxu0 0.0
    %608 = vmatpush1.msra.mxu0 0.0
    %609 = vmatprep.subr.mxu0 0.0
    %610 = vmatpush1.msra.mxu0 0.0
    %611 = vmatprep.subr.mxu0 0.0
    %612 = vmatpush1.msra.mxu0 0.0
    %613 = vmatprep.subr.mxu0 0.0
    %614 = vmatpush1.msra.mxu0 0.0
    %615 = vmatprep.subr.mxu0 0.0
    %616 = vmatpush1.msra.mxu0 0.0
    %617 = vmatprep.subr.mxu0 0.0
    %618 = vmatpush1.msra.mxu0 0.0
    %619 = vmatprep.subr.mxu0 0.0
    %620 = vmatpush1.msra.mxu0 0.0
    %621 = vmatprep.subr.mxu0 0.0
    %622 = vmatpush1.msra.mxu0 0.0
    %623 = vmatprep.subr.mxu0 0.0
    %624 = vmatpush1.msra.mxu0 0.0
    %625 = vmatprep.subr.mxu0 0.0
    %626 = vmatpush1.msra.mxu0 0.0
    %627 = vmatprep.subr.mxu0 0.0
    %628 = vmatpush1.msra.mxu0 0.0
    %629 = vmatprep.subr.mxu0 0.0
    %630 = vmatpush1.msra.mxu0 0.0
    %631 = vmatprep.subr.mxu0 0.0
    %632 = vmatpush1.msra.mxu0 0.0
    %633 = vmatprep.subr.mxu0 0.0
    %634 = vmatpush1.msra.mxu0 0.0
    %635 = vmatprep.subr.mxu0 0.0
    %636 = vmatpush1.msra.mxu0 0.0
    %637 = vmatprep.subr.mxu0 0.0
    %638 = vmatpush1.msra.mxu0 0.0
    %639 = vmatprep.subr.mxu0 0.0
    %640 = vmatpush1.msra.mxu0 0.0
    %641 = vmatprep.mubr.f32.mxu0 0.0
    %642 = vmatmul.mubr.f32.gmra.mrb[0].mxu0 %v505
    %v643 = vpop.f32.mrb[0].mxu0
    %v644 = vadd.f32 %v335, %v643
    %v645 = vpop.f32.mrb[0].mxu0
    %646 = vdwg.mxu0
    %647 = vmatprep.subr.mxu0 0.0
    %648 = vmatpush1.msra.mxu0 %v242
    %649 = vmatprep.subr.mxu0 0.0
    %650 = vmatpush1.msra.mxu0 %v243
    %651 = vmatprep.subr.mxu0 0.0
    %652 = vmatpush1.msra.mxu0 %v244
    %653 = vmatprep.subr.mxu0 0.0
    %654 = vmatpush1.msra.mxu0 %v245
    %655 = vmatprep.subr.mxu0 0.0
    %656 = vmatpush1.msra.mxu0 0.0
    %657 = vmatprep.subr.mxu0 0.0
    %658 = vmatpush1.msra.mxu0 0.0
    %659 = vmatprep.subr.mxu0 0.0
    %660 = vmatpush1.msra.mxu0 0.0
    %661 = vmatprep.subr.mxu0 0.0
    %662 = vmatpush1.msra.mxu0 0.0
    %663 = vmatprep.subr.mxu0 0.0
    %664 = vmatpush1.msra.mxu0 0.0
    %665 = vmatprep.subr.mxu0 0.0
    %666 = vmatpush1.msra.mxu0 0.0
    %667 = vmatprep.subr.mxu0 0.0
    %668 = vmatpush1.msra.mxu0 0.0
    %669 = vmatprep.subr.mxu0 0.0
    %670 = vmatpush1.msra.mxu0 0.0
    %671 = vmatprep.subr.mxu0 0.0
    %672 = vmatpush1.msra.mxu0 0.0
    %673 = vmatprep.subr.mxu0 0.0
    %674 = vmatpush1.msra.mxu0 0.0
    %675 = vmatprep.subr.mxu0 0.0
    %676 = vmatpush1.msra.mxu0 0.0
    %677 = vmatprep.subr.mxu0 0.0
    %678 = vmatpush1.msra.mxu0 0.0
    %679 = vmatprep.subr.mxu0 0.0
    %680 = vmatpush1.msra.mxu0 0.0
    %681 = vmatprep.subr.mxu0 0.0
    %682 = vmatpush1.msra.mxu0 0.0
    %683 = vmatprep.subr.mxu0 0.0
    %684 = vmatpush1.msra.mxu0 0.0
    %685 = vmatprep.subr.mxu0 0.0
    %686 = vmatpush1.msra.mxu0 0.0
    %687 = vmatprep.subr.mxu0 0.0
    %688 = vmatpush1.msra.mxu0 0.0
    %689 = vmatprep.subr.mxu0 0.0
    %690 = vmatpush1.msra.mxu0 0.0
    %691 = vmatprep.subr.mxu0 0.0
    %692 = vmatpush1.msra.mxu0 0.0
    %693 = vmatprep.subr.mxu0 0.0
    %694 = vmatpush1.msra.mxu0 0.0
    %695 = vmatprep.subr.mxu0 0.0
    %696 = vmatpush1.msra.mxu0 0.0
    %697 = vmatprep.subr.mxu0 0.0
    %698 = vmatpush1.msra.mxu0 0.0
    %699 = vmatprep.subr.mxu0 0.0
    %700 = vmatpush1.msra.mxu0 0.0
    %701 = vmatprep.subr.mxu0 0.0
    %702 = vmatpush1.msra.mxu0 0.0
    %703 = vmatprep.subr.mxu0 0.0
    %704 = vmatpush1.msra.mxu0 0.0
    %705 = vmatprep.subr.mxu0 0.0
    %706 = vmatpush1.msra.mxu0 0.0
    %707 = vmatprep.subr.mxu0 0.0
    %708 = vmatpush1.msra.mxu0 0.0
    %709 = vmatprep.subr.mxu0 0.0
    %710 = vmatpush1.msra.mxu0 0.0
    %711 = vmatprep.mubr.f32.mxu0 0.0
    %712 = vmatmul.mubr.f32.gmra.mrb[0].mxu0 %v505
    %v713 = vpop.f32.mrb[0].mxu0
    %v714 = vadd.f32 %v411, %v713
    %v715 = vpop.f32.mrb[0].mxu0
    %716 = vdwg.mxu0
    %v717 = vadd.f32 %v161, %v574
    %v718 = vxor.u32 %v717, 2147483648
    %v719 = vmul.f32 %v718, 1.442695
    %v720 = vpow.pop %v719
    %v721 = vadd.f32 %v720, 1.0
    %v722 = vrcp.pop %v721
    %v723 = vmul.f32 1.0, %v722
    %v724 = vadd.f32 %v193, %v644
    %v725 = vxor.u32 %v724, 2147483648
    %v726 = vmul.f32 %v725, 1.442695
    %v727 = vpow.pop %v726
    %v728 = vadd.f32 %v727, 1.0
    %v729 = vrcp.pop %v728
    %v730 = vmul.f32 1.0, %v729
    %v731 = vmul.f32 %v723, %v714
    %v732 = vadd.f32 %v225, %v731
    %v733 = vtanh.pop %v732
    %v734 = vsub.f32 1.0, %v730
    %v735 = vmul.f32 %v734, %v733
    %v736 = vmul.f32 %v730, %v503
    %v737 = vadd.f32 %v735, %v736
    %v739 = vsel %vm257, %v737, 0
    %741 = vmatprep.subr.mxu0 0.0
    %742 = vmatpush1.msra.mxu0 %v232
    %743 = vmatprep.subr.mxu0 0.0
    %744 = vmatpush1.msra.mxu0 %v233
    %745 = vmatprep.subr.mxu0 0.0
    %746 = vmatpush1.msra.mxu0 %v234
    %747 = vmatprep.subr.mxu0 0.0
    %748 = vmatpush1.msra.mxu0 %v235
    %749 = vmatprep.subr.mxu0 0.0
    %750 = vmatpush1.msra.mxu0 0.0
    %751 = vmatprep.subr.mxu0 0.0
    %752 = vmatpush1.msra.mxu0 0.0
    %753 = vmatprep.subr.mxu0 0.0
    %754 = vmatpush1.msra.mxu0 0.0
    %755 = vmatprep.subr.mxu0 0.0
    %756 = vmatpush1.msra.mxu0 0.0
    %757 = vmatprep.subr.mxu0 0.0
    %758 = vmatpush1.msra.mxu0 0.0
    %759 = vmatprep.subr.mxu0 0.0
    %760 = vmatpush1.msra.mxu0 0.0
    %761 = vmatprep.subr.mxu0 0.0
    %762 = vmatpush1.msra.mxu0 0.0
    %763 = vmatprep.subr.mxu0 0.0
    %764 = vmatpush1.msra.mxu0 0.0
    %765 = vmatprep.subr.mxu0 0.0
    %766 = vmatpush1.msra.mxu0 0.0
    %767 = vmatprep.subr.mxu0 0.0
    %768 = vmatpush1.msra.mxu0 0.0
    %769 = vmatprep.subr.mxu0 0.0
    %770 = vmatpush1.msra.mxu0 0.0
    %771 = vmatprep.subr.mxu0 0.0
    %772 = vmatpush1.msra.mxu0 0.0
    %773 = vmatprep.subr.mxu0 0.0
    %774 = vmatpush1.msra.mxu0 0.0
    %775 = vmatprep.subr.mxu0 0.0
    %776 = vmatpush1.msra.mxu0 0.0
    %777 = vmatprep.subr.mxu0 0.0
    %778 = vmatpush1.msra.mxu0 0.0
    %779 = vmatprep.subr.mxu0 0.0
    %780 = vmatpush1.msra.mxu0 0.0
    %781 = vmatprep.subr.mxu0 0.0
    %782 = vmatpush1.msra.mxu0 0.0
    %783 = vmatprep.subr.mxu0 0.0
    %784 = vmatpush1.msra.mxu0 0.0
    %785 = vmatprep.subr.mxu0 0.0
    %786 = vmatpush1.msra.mxu0 0.0
    %787 = vmatprep.subr.mxu0 0.0
    %788 = vmatpush1.msra.mxu0 0.0
    %789 = vmatprep.subr.mxu0 0.0
    %790 = vmatpush1.msra.mxu0 0.0
    %791 = vmatprep.subr.mxu0 0.0
    %792 = vmatpush1.msra.mxu0 0.0
    %793 = vmatprep.subr.mxu0 0.0
    %794 = vmatpush1.msra.mxu0 0.0
    %795 = vmatprep.subr.mxu0 0.0
    %796 = vmatpush1.msra.mxu0 0.0
    %797 = vmatprep.subr.mxu0 0.0
    %798 = vmatpush1.msra.mxu0 0.0
    %799 = vmatprep.subr.mxu0 0.0
    %800 = vmatpush1.msra.mxu0 0.0
    %801 = vmatprep.subr.mxu0 0.0
    %802 = vmatpush1.msra.mxu0 0.0
    %803 = vmatprep.subr.mxu0 0.0
    %804 = vmatpush1.msra.mxu0 0.0
    %805 = vmatprep.mubr.f32.mxu0 0.0
    %806 = vmatmul.mubr.f32.gmra.mrb[0].mxu0 %v739
    %v807 = vpop.f32.mrb[0].mxu0
    %v808 = vadd.f32 %v255, %v807
    %v809 = vpop.f32.mrb[0].mxu0
    %810 = vdwg.mxu0
    %811 = vmatprep.subr.mxu0 0.0
    %812 = vmatpush1.msra.mxu0 %v237
    %813 = vmatprep.subr.mxu0 0.0
    %814 = vmatpush1.msra.mxu0 %v238
    %815 = vmatprep.subr.mxu0 0.0
    %816 = vmatpush1.msra.mxu0 %v239
    %817 = vmatprep.subr.mxu0 0.0
    %818 = vmatpush1.msra.mxu0 %v240
    %819 = vmatprep.subr.mxu0 0.0
    %820 = vmatpush1.msra.mxu0 0.0
    %821 = vmatprep.subr.mxu0 0.0
    %822 = vmatpush1.msra.mxu0 0.0
    %823 = vmatprep.subr.mxu0 0.0
    %824 = vmatpush1.msra.mxu0 0.0
    %825 = vmatprep.subr.mxu0 0.0
    %826 = vmatpush1.msra.mxu0 0.0
    %827 = vmatprep.subr.mxu0 0.0
    %828 = vmatpush1.msra.mxu0 0.0
    %829 = vmatprep.subr.mxu0 0.0
    %830 = vmatpush1.msra.mxu0 0.0
    %831 = vmatprep.subr.mxu0 0.0
    %832 = vmatpush1.msra.mxu0 0.0
    %833 = vmatprep.subr.mxu0 0.0
    %834 = vmatpush1.msra.mxu0 0.0
    %835 = vmatprep.subr.mxu0 0.0
    %836 = vmatpush1.msra.mxu0 0.0
    %837 = vmatprep.subr.mxu0 0.0
    %838 = vmatpush1.msra.mxu0 0.0
    %839 = vmatprep.subr.mxu0 0.0
    %840 = vmatpush1.msra.mxu0 0.0
    %841 = vmatprep.subr.mxu0 0.0
    %842 = vmatpush1.msra.mxu0 0.0
    %843 = vmatprep.subr.mxu0 0.0
    %844 = vmatpush1.msra.mxu0 0.0
    %845 = vmatprep.subr.mxu0 0.0
    %846 = vmatpush1.msra.mxu0 0.0
    %847 = vmatprep.subr.mxu0 0.0
    %848 = vmatpush1.msra.mxu0 0.0
    %849 = vmatprep.subr.mxu0 0.0
    %850 = vmatpush1.msra.mxu0 0.0
    %851 = vmatprep.subr.mxu0 0.0
    %852 = vmatpush1.msra.mxu0 0.0
    %853 = vmatprep.subr.mxu0 0.0
    %854 = vmatpush1.msra.mxu0 0.0
    %855 = vmatprep.subr.mxu0 0.0
    %856 = vmatpush1.msra.mxu0 0.0
    %857 = vmatprep.subr.mxu0 0.0
    %858 = vmatpush1.msra.mxu0 0.0
    %859 = vmatprep.subr.mxu0 0.0
    %860 = vmatpush1.msra.mxu0 0.0
    %861 = vmatprep.subr.mxu0 0.0
    %862 = vmatpush1.msra.mxu0 0.0
    %863 = vmatprep.subr.mxu0 0.0
    %864 = vmatpush1.msra.mxu0 0.0
    %865 = vmatprep.subr.mxu0 0.0
    %866 = vmatpush1.msra.mxu0 0.0
    %867 = vmatprep.subr.mxu0 0.0
    %868 = vmatpush1.msra.mxu0 0.0
    %869 = vmatprep.subr.mxu0 0.0
    %870 = vmatpush1.msra.mxu0 0.0
    %871 = vmatprep.subr.mxu0 0.0
    %872 = vmatpush1.msra.mxu0 0.0
    %873 = vmatprep.subr.mxu0 0.0
    %874 = vmatpush1.msra.mxu0 0.0
    %875 = vmatprep.mubr.f32.mxu0 0.0
    %876 = vmatmul.mubr.f32.gmra.mrb[0].mxu0 %v739
    %v877 = vpop.f32.mrb[0].mxu0
    %v878 = vadd.f32 %v335, %v877
    %v879 = vpop.f32.mrb[0].mxu0
    %880 = vdwg.mxu0
    %881 = vmatprep.subr.mxu0 0.0
    %882 = vmatpush1.msra.mxu0 %v242
    %883 = vmatprep.subr.mxu0 0.0
    %884 = vmatpush1.msra.mxu0 %v243
    %885 = vmatprep.subr.mxu0 0.0
    %886 = vmatpush1.msra.mxu0 %v244
    %887 = vmatprep.subr.mxu0 0.0
    %888 = vmatpush1.msra.mxu0 %v245
    %889 = vmatprep.subr.mxu0 0.0
    %890 = vmatpush1.msra.mxu0 0.0
    %891 = vmatprep.subr.mxu0 0.0
    %892 = vmatpush1.msra.mxu0 0.0
    %893 = vmatprep.subr.mxu0 0.0
    %894 = vmatpush1.msra.mxu0 0.0
    %895 = vmatprep.subr.mxu0 0.0
    %896 = vmatpush1.msra.mxu0 0.0
    %897 = vmatprep.subr.mxu0 0.0
    %898 = vmatpush1.msra.mxu0 0.0
    %899 = vmatprep.subr.mxu0 0.0
    %900 = vmatpush1.msra.mxu0 0.0
    %901 = vmatprep.subr.mxu0 0.0
    %902 = vmatpush1.msra.mxu0 0.0
    %903 = vmatprep.subr.mxu0 0.0
    %904 = vmatpush1.msra.mxu0 0.0
    %905 = vmatprep.subr.mxu0 0.0
    %906 = vmatpush1.msra.mxu0 0.0
    %907 = vmatprep.subr.mxu0 0.0
    %908 = vmatpush1.msra.mxu0 0.0
    %909 = vmatprep.subr.mxu0 0.0
    %910 = vmatpush1.msra.mxu0 0.0
    %911 = vmatprep.subr.mxu0 0.0
    %912 = vmatpush1.msra.mxu0 0.0
    %913 = vmatprep.subr.mxu0 0.0
    %914 = vmatpush1.msra.mxu0 0.0
    %915 = vmatprep.subr.mxu0 0.0
    %916 = vmatpush1.msra.mxu0 0.0
    %917 = vmatprep.subr.mxu0 0.0
    %918 = vmatpush1.msra.mxu0 0.0
    %919 = vmatprep.subr.mxu0 0.0
    %920 = vmatpush1.msra.mxu0 0.0
    %921 = vmatprep.subr.mxu0 0.0
    %922 = vmatpush1.msra.mxu0 0.0
    %923 = vmatprep.subr.mxu0 0.0
    %924 = vmatpush1.msra.mxu0 0.0
    %925 = vmatprep.subr.mxu0 0.0
    %926 = vmatpush1.msra.mxu0 0.0
    %927 = vmatprep.subr.mxu0 0.0
    %928 = vmatpush1.msra.mxu0 0.0
    %929 = vmatprep.subr.mxu0 0.0
    %930 = vmatpush1.msra.mxu0 0.0
    %931 = vmatprep.subr.mxu0 0.0
    %932 = vmatpush1.msra.mxu0 0.0
    %933 = vmatprep.subr.mxu0 0.0
    %934 = vmatpush1.msra.mxu0 0.0
    %935 = vmatprep.subr.mxu0 0.0
    %936 = vmatpush1.msra.mxu0 0.0
    %937 = vmatprep.subr.mxu0 0.0
    %938 = vmatpush1.msra.mxu0 0.0
    %939 = vmatprep.subr.mxu0 0.0
    %940 = vmatpush1.msra.mxu0 0.0
    %941 = vmatprep.subr.mxu0 0.0
    %942 = vmatpush1.msra.mxu0 0.0
    %943 = vmatprep.subr.mxu0 0.0
    %944 = vmatpush1.msra.mxu0 0.0
    %945 = vmatprep.mubr.f32.mxu0 0.0
    %946 = vmatmul.mubr.f32.gmra.mrb[0].mxu0 %v739
    %v947 = vpop.f32.mrb[0].mxu0
    %v948 = vadd.f32 %v411, %v947
    %v949 = vpop.f32.mrb[0].mxu0
    %950 = vdwg.mxu0
    %v951 = vadd.f32 %v162, %v808
    %v952 = vxor.u32 %v951, 2147483648
    %v953 = vmul.f32 %v952, 1.442695
    %v954 = vpow.pop %v953
    %v955 = vadd.f32 %v954, 1.0
    %v956 = vrcp.pop %v955
    %v957 = vmul.f32 1.0, %v956
    %v958 = vadd.f32 %v194, %v878
    %v959 = vxor.u32 %v958, 2147483648
    %v960 = vmul.f32 %v959, 1.442695
    %v961 = vpow.pop %v960
    %v962 = vadd.f32 %v961, 1.0
    %v963 = vrcp.pop %v962
    %v964 = vmul.f32 1.0, %v963
    %v965 = vmul.f32 %v957, %v948
    %v966 = vadd.f32 %v226, %v965
    %v967 = vtanh.pop %v966
    %v968 = vsub.f32 1.0, %v964
    %v969 = vmul.f32 %v968, %v967
    %v970 = vmul.f32 %v964, %v737
    %v971 = vadd.f32 %v969, %v970
    %v973 = vsel %vm257, %v971, 0
    %975 = vmatprep.subr.mxu0 0.0
    %976 = vmatpush1.msra.mxu0 %v232
    %977 = vmatprep.subr.mxu0 0.0
    %978 = vmatpush1.msra.mxu0 %v233
    %979 = vmatprep.subr.mxu0 0.0
    %980 = vmatpush1.msra.mxu0 %v234
    %981 = vmatprep.subr.mxu0 0.0
    %982 = vmatpush1.msra.mxu0 %v235
    %983 = vmatprep.subr.mxu0 0.0
    %984 = vmatpush1.msra.mxu0 0.0
    %985 = vmatprep.subr.mxu0 0.0
    %986 = vmatpush1.msra.mxu0 0.0
    %987 = vmatprep.subr.mxu0 0.0
    %988 = vmatpush1.msra.mxu0 0.0
    %989 = vmatprep.subr.mxu0 0.0
    %990 = vmatpush1.msra.mxu0 0.0
    %991 = vmatprep.subr.mxu0 0.0
    %992 = vmatpush1.msra.mxu0 0.0
    %993 = vmatprep.subr.mxu0 0.0
    %994 = vmatpush1.msra.mxu0 0.0
    %995 = vmatprep.subr.mxu0 0.0
    %996 = vmatpush1.msra.mxu0 0.0
    %997 = vmatprep.subr.mxu0 0.0
    %998 = vmatpush1.msra.mxu0 0.0
    %999 = vmatprep.subr.mxu0 0.0
    %1000 = vmatpush1.msra.mxu0 0.0
    %1001 = vmatprep.subr.mxu0 0.0
    %1002 = vmatpush1.msra.mxu0 0.0
    %1003 = vmatprep.subr.mxu0 0.0
    %1004 = vmatpush1.msra.mxu0 0.0
    %1005 = vmatprep.subr.mxu0 0.0
    %1006 = vmatpush1.msra.mxu0 0.0
    %1007 = vmatprep.subr.mxu0 0.0
    %1008 = vmatpush1.msra.mxu0 0.0
    %1009 = vmatprep.subr.mxu0 0.0
    %1010 = vmatpush1.msra.mxu0 0.0
    %1011 = vmatprep.subr.mxu0 0.0
    %1012 = vmatpush1.msra.mxu0 0.0
    %1013 = vmatprep.subr.mxu0 0.0
    %1014 = vmatpush1.msra.mxu0 0.0
    %1015 = vmatprep.subr.mxu0 0.0
    %1016 = vmatpush1.msra.mxu0 0.0
    %1017 = vmatprep.subr.mxu0 0.0
    %1018 = vmatpush1.msra.mxu0 0.0
    %1019 = vmatprep.subr.mxu0 0.0
    %1020 = vmatpush1.msra.mxu0 0.0
    %1021 = vmatprep.subr.mxu0 0.0
    %1022 = vmatpush1.msra.mxu0 0.0
    %1023 = vmatprep.subr.mxu0 0.0
    %1024 = vmatpush1.msra.mxu0 0.0
    %1025 = vmatprep.subr.mxu0 0.0
    %1026 = vmatpush1.msra.mxu0 0.0
    %1027 = vmatprep.subr.mxu0 0.0
    %1028 = vmatpush1.msra.mxu0 0.0
    %1029 = vmatprep.subr.mxu0 0.0
    %1030 = vmatpush1.msra.mxu0 0.0
    %1031 = vmatprep.subr.mxu0 0.0
    %1032 = vmatpush1.msra.mxu0 0.0
    %1033 = vmatprep.subr.mxu0 0.0
    %1034 = vmatpush1.msra.mxu0 0.0
    %1035 = vmatprep.subr.mxu0 0.0
    %1036 = vmatpush1.msra.mxu0 0.0
    %1037 = vmatprep.subr.mxu0 0.0
    %1038 = vmatpush1.msra.mxu0 0.0
    %1039 = vmatprep.mubr.f32.mxu0 0.0
    %1040 = vmatmul.mubr.f32.gmra.mrb[0].mxu0 %v973
    %v1041 = vpop.f32.mrb[0].mxu0
    %v1042 = vadd.f32 %v255, %v1041
    %v1043 = vpop.f32.mrb[0].mxu0
    %1044 = vdwg.mxu0
    %1045 = vmatprep.subr.mxu0 0.0
    %1046 = vmatpush1.msra.mxu0 %v237
    %1047 = vmatprep.subr.mxu0 0.0
    %1048 = vmatpush1.msra.mxu0 %v238
    %1049 = vmatprep.subr.mxu0 0.0
    %1050 = vmatpush1.msra.mxu0 %v239
    %1051 = vmatprep.subr.mxu0 0.0
    %1052 = vmatpush1.msra.mxu0 %v240
    %1053 = vmatprep.subr.mxu0 0.0
    %1054 = vmatpush1.msra.mxu0 0.0
    %1055 = vmatprep.subr.mxu0 0.0
    %1056 = vmatpush1.msra.mxu0 0.0
    %1057 = vmatprep.subr.mxu0 0.0
    %1058 = vmatpush1.msra.mxu0 0.0
    %1059 = vmatprep.subr.mxu0 0.0
    %1060 = vmatpush1.msra.mxu0 0.0
    %1061 = vmatprep.subr.mxu0 0.0
    %1062 = vmatpush1.msra.mxu0 0.0
    %1063 = vmatprep.subr.mxu0 0.0
    %1064 = vmatpush1.msra.mxu0 0.0
    %1065 = vmatprep.subr.mxu0 0.0
    %1066 = vmatpush1.msra.mxu0 0.0
    %1067 = vmatprep.subr.mxu0 0.0
    %1068 = vmatpush1.msra.mxu0 0.0
    %1069 = vmatprep.subr.mxu0 0.0
    %1070 = vmatpush1.msra.mxu0 0.0
    %1071 = vmatprep.subr.mxu0 0.0
    %1072 = vmatpush1.msra.mxu0 0.0
    %1073 = vmatprep.subr.mxu0 0.0
    %1074 = vmatpush1.msra.mxu0 0.0
    %1075 = vmatprep.subr.mxu0 0.0
    %1076 = vmatpush1.msra.mxu0 0.0
    %1077 = vmatprep.subr.mxu0 0.0
    %1078 = vmatpush1.msra.mxu0 0.0
    %1079 = vmatprep.subr.mxu0 0.0
    %1080 = vmatpush1.msra.mxu0 0.0
    %1081 = vmatprep.subr.mxu0 0.0
    %1082 = vmatpush1.msra.mxu0 0.0
    %1083 = vmatprep.subr.mxu0 0.0
    %1084 = vmatpush1.msra.mxu0 0.0
    %1085 = vmatprep.subr.mxu0 0.0
    %1086 = vmatpush1.msra.mxu0 0.0
    %1087 = vmatprep.subr.mxu0 0.0
    %1088 = vmatpush1.msra.mxu0 0.0
    %1089 = vmatprep.subr.mxu0 0.0
    %1090 = vmatpush1.msra.mxu0 0.0
    %1091 = vmatprep.subr.mxu0 0.0
    %1092 = vmatpush1.msra.mxu0 0.0
    %1093 = vmatprep.subr.mxu0 0.0
    %1094 = vmatpush1.msra.mxu0 0.0
    %1095 = vmatprep.subr.mxu0 0.0
    %1096 = vmatpush1.msra.mxu0 0.0
    %1097 = vmatprep.subr.mxu0 0.0
    %1098 = vmatpush1.msra.mxu0 0.0
    %1099 = vmatprep.subr.mxu0 0.0
    %1100 = vmatpush1.msra.mxu0 0.0
    %1101 = vmatprep.subr.mxu0 0.0
    %1102 = vmatpush1.msra.mxu0 0.0
    %1103 = vmatprep.subr.mxu0 0.0
    %1104 = vmatpush1.msra.mxu0 0.0
    %1105 = vmatprep.subr.mxu0 0.0
    %1106 = vmatpush1.msra.mxu0 0.0
    %1107 = vmatprep.subr.mxu0 0.0
    %1108 = vmatpush1.msra.mxu0 0.0
    %1109 = vmatprep.mubr.f32.mxu0 0.0
    %1110 = vmatmul.mubr.f32.gmra.mrb[0].mxu0 %v973
    %v1111 = vpop.f32.mrb[0].mxu0
    %v1112 = vadd.f32 %v335, %v1111
    %v1113 = vpop.f32.mrb[0].mxu0
    %1114 = vdwg.mxu0
    %1115 = vmatprep.subr.mxu0 0.0
    %1116 = vmatpush1.msra.mxu0 %v242
    %1117 = vmatprep.subr.mxu0 0.0
    %1118 = vmatpush1.msra.mxu0 %v243
    %1119 = vmatprep.subr.mxu0 0.0
    %1120 = vmatpush1.msra.mxu0 %v244
    %1121 = vmatprep.subr.mxu0 0.0
    %1122 = vmatpush1.msra.mxu0 %v245
    %1123 = vmatprep.subr.mxu0 0.0
    %1124 = vmatpush1.msra.mxu0 0.0
    %1125 = vmatprep.subr.mxu0 0.0
    %1126 = vmatpush1.msra.mxu0 0.0
    %1127 = vmatprep.subr.mxu0 0.0
    %1128 = vmatpush1.msra.mxu0 0.0
    %1129 = vmatprep.subr.mxu0 0.0
    %1130 = vmatpush1.msra.mxu0 0.0
    %1131 = vmatprep.subr.mxu0 0.0
    %1132 = vmatpush1.msra.mxu0 0.0
    %1133 = vmatprep.subr.mxu0 0.0
    %1134 = vmatpush1.msra.mxu0 0.0
    %1135 = vmatprep.subr.mxu0 0.0
    %1136 = vmatpush1.msra.mxu0 0.0
    %1137 = vmatprep.subr.mxu0 0.0
    %1138 = vmatpush1.msra.mxu0 0.0
    %1139 = vmatprep.subr.mxu0 0.0
    %1140 = vmatpush1.msra.mxu0 0.0
    %1141 = vmatprep.subr.mxu0 0.0
    %1142 = vmatpush1.msra.mxu0 0.0
    %1143 = vmatprep.subr.mxu0 0.0
    %1144 = vmatpush1.msra.mxu0 0.0
    %1145 = vmatprep.subr.mxu0 0.0
    %1146 = vmatpush1.msra.mxu0 0.0
    %1147 = vmatprep.subr.mxu0 0.0
    %1148 = vmatpush1.msra.mxu0 0.0
    %1149 = vmatprep.subr.mxu0 0.0
    %1150 = vmatpush1.msra.mxu0 0.0
    %1151 = vmatprep.subr.mxu0 0.0
    %1152 = vmatpush1.msra.mxu0 0.0
    %1153 = vmatprep.subr.mxu0 0.0
    %1154 = vmatpush1.msra.mxu0 0.0
    %1155 = vmatprep.subr.mxu0 0.0
    %1156 = vmatpush1.msra.mxu0 0.0
    %1157 = vmatprep.subr.mxu0 0.0
    %1158 = vmatpush1.msra.mxu0 0.0
    %1159 = vmatprep.subr.mxu0 0.0
    %1160 = vmatpush1.msra.mxu0 0.0
    %1161 = vmatprep.subr.mxu0 0.0
    %1162 = vmatpush1.msra.mxu0 0.0
    %1163 = vmatprep.subr.mxu0 0.0
    %1164 = vmatpush1.msra.mxu0 0.0
    %1165 = vmatprep.subr.mxu0 0.0
    %1166 = vmatpush1.msra.mxu0 0.0
    %1167 = vmatprep.subr.mxu0 0.0
    %1168 = vmatpush1.msra.mxu0 0.0
    %1169 = vmatprep.subr.mxu0 0.0
    %1170 = vmatpush1.msra.mxu0 0.0
    %1171 = vmatprep.subr.mxu0 0.0
    %1172 = vmatpush1.msra.mxu0 0.0
    %1173 = vmatprep.subr.mxu0 0.0
    %1174 = vmatpush1.msra.mxu0 0.0
    %1175 = vmatprep.subr.mxu0 0.0
    %1176 = vmatpush1.msra.mxu0 0.0
    %1177 = vmatprep.subr.mxu0 0.0
    %1178 = vmatpush1.msra.mxu0 0.0
    %1179 = vmatprep.mubr.f32.mxu0 0.0
    %1180 = vmatmul.mubr.f32.gmra.mrb[0].mxu0 %v973
    %v1181 = vpop.f32.mrb[0].mxu0
    %v1182 = vadd.f32 %v411, %v1181
    %v1183 = vpop.f32.mrb[0].mxu0
    %1184 = vdwg.mxu0
    %v1185 = vadd.f32 %v163, %v1042
    %v1186 = vxor.u32 %v1185, 2147483648
    %v1187 = vmul.f32 %v1186, 1.442695
    %v1188 = vpow.pop %v1187
    %v1189 = vadd.f32 %v1188, 1.0
    %v1190 = vrcp.pop %v1189
    %v1191 = vmul.f32 1.0, %v1190
    %v1192 = vadd.f32 %v195, %v1112
    %v1193 = vxor.u32 %v1192, 2147483648
    %v1194 = vmul.f32 %v1193, 1.442695
    %v1195 = vpow.pop %v1194
    %v1196 = vadd.f32 %v1195, 1.0
    %v1197 = vrcp.pop %v1196
    %v1198 = vmul.f32 1.0, %v1197
    %v1199 = vmul.f32 %v1191, %v1182
    %v1200 = vadd.f32 %v227, %v1199
    %v1201 = vtanh.pop %v1200
    %v1202 = vsub.f32 1.0, %v1198
    %v1203 = vmul.f32 %v1202, %v1201
    %v1204 = vmul.f32 %v1198, %v971
    %v1205 = vadd.f32 %v1203, %v1204
    %v1207 = vsel %vm257, %v1205, 0
    %1209 = vmatprep.subr.mxu0 0.0
    %1210 = vmatpush1.msra.mxu0 %v232
    %1211 = vmatprep.subr.mxu0 0.0
    %1212 = vmatpush1.msra.mxu0 %v233
    %1213 = vmatprep.subr.mxu0 0.0
    %1214 = vmatpush1.msra.mxu0 %v234
    %1215 = vmatprep.subr.mxu0 0.0
    %1216 = vmatpush1.msra.mxu0 %v235
    %1217 = vmatprep.subr.mxu0 0.0
    %1218 = vmatpush1.msra.mxu0 0.0
    %1219 = vmatprep.subr.mxu0 0.0
    %1220 = vmatpush1.msra.mxu0 0.0
    %1221 = vmatprep.subr.mxu0 0.0
    %1222 = vmatpush1.msra.mxu0 0.0
    %1223 = vmatprep.subr.mxu0 0.0
    %1224 = vmatpush1.msra.mxu0 0.0
    %1225 = vmatprep.subr.mxu0 0.0
    %1226 = vmatpush1.msra.mxu0 0.0
    %1227 = vmatprep.subr.mxu0 0.0
    %1228 = vmatpush1.msra.mxu0 0.0
    %1229 = vmatprep.subr.mxu0 0.0
    %1230 = vmatpush1.msra.mxu0 0.0
    %1231 = vmatprep.subr.mxu0 0.0
    %1232 = vmatpush1.msra.mxu0 0.0
    %1233 = vmatprep.subr.mxu0 0.0
    %1234 = vmatpush1.msra.mxu0 0.0
    %1235 = vmatprep.subr.mxu0 0.0
    %1236 = vmatpush1.msra.mxu0 0.0
    %1237 = vmatprep.subr.mxu0 0.0
    %1238 = vmatpush1.msra.mxu0 0.0
    %1239 = vmatprep.subr.mxu0 0.0
    %1240 = vmatpush1.msra.mxu0 0.0
    %1241 = vmatprep.subr.mxu0 0.0
    %1242 = vmatpush1.msra.mxu0 0.0
    %1243 = vmatprep.subr.mxu0 0.0
    %1244 = vmatpush1.msra.mxu0 0.0
    %1245 = vmatprep.subr.mxu0 0.0
    %1246 = vmatpush1.msra.mxu0 0.0
    %1247 = vmatprep.subr.mxu0 0.0
    %1248 = vmatpush1.msra.mxu0 0.0
    %1249 = vmatprep.subr.mxu0 0.0
    %1250 = vmatpush1.msra.mxu0 0.0
    %1251 = vmatprep.subr.mxu0 0.0
    %1252 = vmatpush1.msra.mxu0 0.0
    %1253 = vmatprep.subr.mxu0 0.0
    %1254 = vmatpush1.msra.mxu0 0.0
    %1255 = vmatprep.subr.mxu0 0.0
    %1256 = vmatpush1.msra.mxu0 0.0
    %1257 = vmatprep.subr.mxu0 0.0
    %1258 = vmatpush1.msra.mxu0 0.0
    %1259 = vmatprep.subr.mxu0 0.0
    %1260 = vmatpush1.msra.mxu0 0.0
    %1261 = vmatprep.subr.mxu0 0.0
    %1262 = vmatpush1.msra.mxu0 0.0
    %1263 = vmatprep.subr.mxu0 0.0
    %1264 = vmatpush1.msra.mxu0 0.0
    %1265 = vmatprep.subr.mxu0 0.0
    %1266 = vmatpush1.msra.mxu0 0.0
    %1267 = vmatprep.subr.mxu0 0.0
    %1268 = vmatpush1.msra.mxu0 0.0
    %1269 = vmatprep.subr.mxu0 0.0
    %1270 = vmatpush1.msra.mxu0 0.0
    %1271 = vmatprep.subr.mxu0 0.0
    %1272 = vmatpush1.msra.mxu0 0.0
    %1273 = vmatprep.mubr.f32.mxu0 0.0
    %1274 = vmatmul.mubr.f32.gmra.mrb[0].mxu0 %v1207
    %v1275 = vpop.f32.mrb[0].mxu0
    %v1276 = vadd.f32 %v255, %v1275
    %v1277 = vpop.f32.mrb[0].mxu0
    %1278 = vdwg.mxu0
    %1279 = vmatprep.subr.mxu0 0.0
    %1280 = vmatpush1.msra.mxu0 %v237
    %1281 = vmatprep.subr.mxu0 0.0
    %1282 = vmatpush1.msra.mxu0 %v238
    %1283 = vmatprep.subr.mxu0 0.0
    %1284 = vmatpush1.msra.mxu0 %v239
    %1285 = vmatprep.subr.mxu0 0.0
    %1286 = vmatpush1.msra.mxu0 %v240
    %1287 = vmatprep.subr.mxu0 0.0
    %1288 = vmatpush1.msra.mxu0 0.0
    %1289 = vmatprep.subr.mxu0 0.0
    %1290 = vmatpush1.msra.mxu0 0.0
    %1291 = vmatprep.subr.mxu0 0.0
    %1292 = vmatpush1.msra.mxu0 0.0
    %1293 = vmatprep.subr.mxu0 0.0
    %1294 = vmatpush1.msra.mxu0 0.0
    %1295 = vmatprep.subr.mxu0 0.0
    %1296 = vmatpush1.msra.mxu0 0.0
    %1297 = vmatprep.subr.mxu0 0.0
    %1298 = vmatpush1.msra.mxu0 0.0
    %1299 = vmatprep.subr.mxu0 0.0
    %1300 = vmatpush1.msra.mxu0 0.0
    %1301 = vmatprep.subr.mxu0 0.0
    %1302 = vmatpush1.msra.mxu0 0.0
    %1303 = vmatprep.subr.mxu0 0.0
    %1304 = vmatpush1.msra.mxu0 0.0
    %1305 = vmatprep.subr.mxu0 0.0
    %1306 = vmatpush1.msra.mxu0 0.0
    %1307 = vmatprep.subr.mxu0 0.0
    %1308 = vmatpush1.msra.mxu0 0.0
    %1309 = vmatprep.subr.mxu0 0.0
    %1310 = vmatpush1.msra.mxu0 0.0
    %1311 = vmatprep.subr.mxu0 0.0
    %1312 = vmatpush1.msra.mxu0 0.0
    %1313 = vmatprep.subr.mxu0 0.0
    %1314 = vmatpush1.msra.mxu0 0.0
    %1315 = vmatprep.subr.mxu0 0.0
    %1316 = vmatpush1.msra.mxu0 0.0
    %1317 = vmatprep.subr.mxu0 0.0
    %1318 = vmatpush1.msra.mxu0 0.0
    %1319 = vmatprep.subr.mxu0 0.0
    %1320 = vmatpush1.msra.mxu0 0.0
    %1321 = vmatprep.subr.mxu0 0.0
    %1322 = vmatpush1.msra.mxu0 0.0
    %1323 = vmatprep.subr.mxu0 0.0
    %1324 = vmatpush1.msra.mxu0 0.0
    %1325 = vmatprep.subr.mxu0 0.0
    %1326 = vmatpush1.msra.mxu0 0.0
    %1327 = vmatprep.subr.mxu0 0.0
    %1328 = vmatpush1.msra.mxu0 0.0
    %1329 = vmatprep.subr.mxu0 0.0
    %1330 = vmatpush1.msra.mxu0 0.0
    %1331 = vmatprep.subr.mxu0 0.0
    %1332 = vmatpush1.msra.mxu0 0.0
    %1333 = vmatprep.subr.mxu0 0.0
    %1334 = vmatpush1.msra.mxu0 0.0
    %1335 = vmatprep.subr.mxu0 0.0
    %1336 = vmatpush1.msra.mxu0 0.0
    %1337 = vmatprep.subr.mxu0 0.0
    %1338 = vmatpush1.msra.mxu0 0.0
    %1339 = vmatprep.subr.mxu0 0.0
    %1340 = vmatpush1.msra.mxu0 0.0
    %1341 = vmatprep.subr.mxu0 0.0
    %1342 = vmatpush1.msra.mxu0 0.0
    %1343 = vmatprep.mubr.f32.mxu0 0.0
    %1344 = vmatmul.mubr.f32.gmra.mrb[0].mxu0 %v1207
    %v1345 = vpop.f32.mrb[0].mxu0
    %v1346 = vadd.f32 %v335, %v1345
    %v1347 = vpop.f32.mrb[0].mxu0
    %1348 = vdwg.mxu0
    %1349 = vmatprep.subr.mxu0 0.0
    %1350 = vmatpush1.msra.mxu0 %v242
    %1351 = vmatprep.subr.mxu0 0.0
    %1352 = vmatpush1.msra.mxu0 %v243
    %1353 = vmatprep.subr.mxu0 0.0
    %1354 = vmatpush1.msra.mxu0 %v244
    %1355 = vmatprep.subr.mxu0 0.0
    %1356 = vmatpush1.msra.mxu0 %v245
    %1357 = vmatprep.subr.mxu0 0.0
    %1358 = vmatpush1.msra.mxu0 0.0
    %1359 = vmatprep.subr.mxu0 0.0
    %1360 = vmatpush1.msra.mxu0 0.0
    %1361 = vmatprep.subr.mxu0 0.0
    %1362 = vmatpush1.msra.mxu0 0.0
    %1363 = vmatprep.subr.mxu0 0.0
    %1364 = vmatpush1.msra.mxu0 0.0
    %1365 = vmatprep.subr.mxu0 0.0
    %1366 = vmatpush1.msra.mxu0 0.0
    %1367 = vmatprep.subr.mxu0 0.0
    %1368 = vmatpush1.msra.mxu0 0.0
    %1369 = vmatprep.subr.mxu0 0.0
    %1370 = vmatpush1.msra.mxu0 0.0
    %1371 = vmatprep.subr.mxu0 0.0
    %1372 = vmatpush1.msra.mxu0 0.0
    %1373 = vmatprep.subr.mxu0 0.0
    %1374 = vmatpush1.msra.mxu0 0.0
    %1375 = vmatprep.subr.mxu0 0.0
    %1376 = vmatpush1.msra.mxu0 0.0
    %1377 = vmatprep.subr.mxu0 0.0
    %1378 = vmatpush1.msra.mxu0 0.0
    %1379 = vmatprep.subr.mxu0 0.0
    %1380 = vmatpush1.msra.mxu0 0.0
    %1381 = vmatprep.subr.mxu0 0.0
    %1382 = vmatpush1.msra.mxu0 0.0
    %1383 = vmatprep.subr.mxu0 0.0
    %1384 = vmatpush1.msra.mxu0 0.0
    %1385 = vmatprep.subr.mxu0 0.0
    %1386 = vmatpush1.msra.mxu0 0.0
    %1387 = vmatprep.subr.mxu0 0.0
    %1388 = vmatpush1.msra.mxu0 0.0
    %1389 = vmatprep.subr.mxu0 0.0
    %1390 = vmatpush1.msra.mxu0 0.0
    %1391 = vmatprep.subr.mxu0 0.0
    %1392 = vmatpush1.msra.mxu0 0.0
    %1393 = vmatprep.subr.mxu0 0.0
    %1394 = vmatpush1.msra.mxu0 0.0
    %1395 = vmatprep.subr.mxu0 0.0
    %1396 = vmatpush1.msra.mxu0 0.0
    %1397 = vmatprep.subr.mxu0 0.0
    %1398 = vmatpush1.msra.mxu0 0.0
    %1399 = vmatprep.subr.mxu0 0.0
    %1400 = vmatpush1.msra.mxu0 0.0
    %1401 = vmatprep.subr.mxu0 0.0
    %1402 = vmatpush1.msra.mxu0 0.0
    %1403 = vmatprep.subr.mxu0 0.0
    %1404 = vmatpush1.msra.mxu0 0.0
    %1405 = vmatprep.subr.mxu0 0.0
    %1406 = vmatpush1.msra.mxu0 0.0
    %1407 = vmatprep.subr.mxu0 0.0
    %1408 = vmatpush1.msra.mxu0 0.0
    %1409 = vmatprep.subr.mxu0 0.0
    %1410 = vmatpush1.msra.mxu0 0.0
    %1411 = vmatprep.subr.mxu0 0.0
    %1412 = vmatpush1.msra.mxu0 0.0
    %1413 = vmatprep.mubr.f32.mxu0 0.0
    %1414 = vmatmul.mubr.f32.gmra.mrb[0].mxu0 %v1207
    %v1415 = vpop.f32.mrb[0].mxu0
    %v1416 = vadd.f32 %v411, %v1415
    %v1417 = vpop.f32.mrb[0].mxu0
    %1418 = vdwg.mxu0
    %v1419 = vadd.f32 %v164, %v1276
    %v1420 = vxor.u32 %v1419, 2147483648
    %v1421 = vmul.f32 %v1420, 1.442695
    %v1422 = vpow.pop %v1421
    %v1423 = vadd.f32 %v1422, 1.0
    %v1424 = vrcp.pop %v1423
    %v1425 = vmul.f32 1.0, %v1424
    %v1426 = vadd.f32 %v196, %v1346
    %v1427 = vxor.u32 %v1426, 2147483648
    %v1428 = vmul.f32 %v1427, 1.442695
    %v1429 = vpow.pop %v1428
    %v1430 = vadd.f32 %v1429, 1.0
    %v1431 = vrcp.pop %v1430
    %v1432 = vmul.f32 1.0, %v1431
    %v1433 = vmul.f32 %v1425, %v1416
    %v1434 = vadd.f32 %v228, %v1433
    %v1435 = vtanh.pop %v1434
    %v1436 = vsub.f32 1.0, %v1432
    %v1437 = vmul.f32 %v1436, %v1435
    %v1438 = vmul.f32 %v1432, %v1205
    %v1439 = vadd.f32 %v1437, %v1438
    %v1441 = vsel %vm257, %v1439, 0
    %1443 = vmatprep.subr.mxu0 0.0
    %1444 = vmatpush1.msra.mxu0 %v232
    %1445 = vmatprep.subr.mxu0 0.0
    %1446 = vmatpush1.msra.mxu0 %v233
    %1447 = vmatprep.subr.mxu0 0.0
    %1448 = vmatpush1.msra.mxu0 %v234
    %1449 = vmatprep.subr.mxu0 0.0
    %1450 = vmatpush1.msra.mxu0 %v235
    %1451 = vmatprep.subr.mxu0 0.0
    %1452 = vmatpush1.msra.mxu0 0.0
    %1453 = vmatprep.subr.mxu0 0.0
    %1454 = vmatpush1.msra.mxu0 0.0
    %1455 = vmatprep.subr.mxu0 0.0
    %1456 = vmatpush1.msra.mxu0 0.0
    %1457 = vmatprep.subr.mxu0 0.0
    %1458 = vmatpush1.msra.mxu0 0.0
    %1459 = vmatprep.subr.mxu0 0.0
    %1460 = vmatpush1.msra.mxu0 0.0
    %1461 = vmatprep.subr.mxu0 0.0
    %1462 = vmatpush1.msra.mxu0 0.0
    %1463 = vmatprep.subr.mxu0 0.0
    %1464 = vmatpush1.msra.mxu0 0.0
    %1465 = vmatprep.subr.mxu0 0.0
    %1466 = vmatpush1.msra.mxu0 0.0
    %1467 = vmatprep.subr.mxu0 0.0
    %1468 = vmatpush1.msra.mxu0 0.0
    %1469 = vmatprep.subr.mxu0 0.0
    %1470 = vmatpush1.msra.mxu0 0.0
    %1471 = vmatprep.subr.mxu0 0.0
    %1472 = vmatpush1.msra.mxu0 0.0
    %1473 = vmatprep.subr.mxu0 0.0
    %1474 = vmatpush1.msra.mxu0 0.0
    %1475 = vmatprep.subr.mxu0 0.0
    %1476 = vmatpush1.msra.mxu0 0.0
    %1477 = vmatprep.subr.mxu0 0.0
    %1478 = vmatpush1.msra.mxu0 0.0
    %1479 = vmatprep.subr.mxu0 0.0
    %1480 = vmatpush1.msra.mxu0 0.0
    %1481 = vmatprep.subr.mxu0 0.0
    %1482 = vmatpush1.msra.mxu0 0.0
    %1483 = vmatprep.subr.mxu0 0.0
    %1484 = vmatpush1.msra.mxu0 0.0
    %1485 = vmatprep.subr.mxu0 0.0
    %1486 = vmatpush1.msra.mxu0 0.0
    %1487 = vmatprep.subr.mxu0 0.0
    %1488 = vmatpush1.msra.mxu0 0.0
    %1489 = vmatprep.subr.mxu0 0.0
    %1490 = vmatpush1.msra.mxu0 0.0
    %1491 = vmatprep.subr.mxu0 0.0
    %1492 = vmatpush1.msra.mxu0 0.0
    %1493 = vmatprep.subr.mxu0 0.0
    %1494 = vmatpush1.msra.mxu0 0.0
    %1495 = vmatprep.subr.mxu0 0.0
    %1496 = vmatpush1.msra.mxu0 0.0
    %1497 = vmatprep.subr.mxu0 0.0
    %1498 = vmatpush1.msra.mxu0 0.0
    %1499 = vmatprep.subr.mxu0 0.0
    %1500 = vmatpush1.msra.mxu0 0.0
    %1501 = vmatprep.subr.mxu0 0.0
    %1502 = vmatpush1.msra.mxu0 0.0
    %1503 = vmatprep.subr.mxu0 0.0
    %1504 = vmatpush1.msra.mxu0 0.0
    %1505 = vmatprep.subr.mxu0 0.0
    %1506 = vmatpush1.msra.mxu0 0.0
    %1507 = vmatprep.mubr.f32.mxu0 0.0
    %1508 = vmatmul.mubr.f32.gmra.mrb[0].mxu0 %v1441
    %v1509 = vpop.f32.mrb[0].mxu0
    %v1510 = vadd.f32 %v255, %v1509
    %v1511 = vpop.f32.mrb[0].mxu0
    %1512 = vdwg.mxu0
    %1513 = vmatprep.subr.mxu0 0.0
    %1514 = vmatpush1.msra.mxu0 %v237
    %1515 = vmatprep.subr.mxu0 0.0
    %1516 = vmatpush1.msra.mxu0 %v238
    %1517 = vmatprep.subr.mxu0 0.0
    %1518 = vmatpush1.msra.mxu0 %v239
    %1519 = vmatprep.subr.mxu0 0.0
    %1520 = vmatpush1.msra.mxu0 %v240
    %1521 = vmatprep.subr.mxu0 0.0
    %1522 = vmatpush1.msra.mxu0 0.0
    %1523 = vmatprep.subr.mxu0 0.0
    %1524 = vmatpush1.msra.mxu0 0.0
    %1525 = vmatprep.subr.mxu0 0.0
    %1526 = vmatpush1.msra.mxu0 0.0
    %1527 = vmatprep.subr.mxu0 0.0
    %1528 = vmatpush1.msra.mxu0 0.0
    %1529 = vmatprep.subr.mxu0 0.0
    %1530 = vmatpush1.msra.mxu0 0.0
    %1531 = vmatprep.subr.mxu0 0.0
    %1532 = vmatpush1.msra.mxu0 0.0
    %1533 = vmatprep.subr.mxu0 0.0
    %1534 = vmatpush1.msra.mxu0 0.0
    %1535 = vmatprep.subr.mxu0 0.0
    %1536 = vmatpush1.msra.mxu0 0.0
    %1537 = vmatprep.subr.mxu0 0.0
    %1538 = vmatpush1.msra.mxu0 0.0
    %1539 = vmatprep.subr.mxu0 0.0
    %1540 = vmatpush1.msra.mxu0 0.0
    %1541 = vmatprep.subr.mxu0 0.0
    %1542 = vmatpush1.msra.mxu0 0.0
    %1543 = vmatprep.subr.mxu0 0.0
    %1544 = vmatpush1.msra.mxu0 0.0
    %1545 = vmatprep.subr.mxu0 0.0
    %1546 = vmatpush1.msra.mxu0 0.0
    %1547 = vmatprep.subr.mxu0 0.0
    %1548 = vmatpush1.msra.mxu0 0.0
    %1549 = vmatprep.subr.mxu0 0.0
    %1550 = vmatpush1.msra.mxu0 0.0
    %1551 = vmatprep.subr.mxu0 0.0
    %1552 = vmatpush1.msra.mxu0 0.0
    %1553 = vmatprep.subr.mxu0 0.0
    %1554 = vmatpush1.msra.mxu0 0.0
    %1555 = vmatprep.subr.mxu0 0.0
    %1556 = vmatpush1.msra.mxu0 0.0
    %1557 = vmatprep.subr.mxu0 0.0
    %1558 = vmatpush1.msra.mxu0 0.0
    %1559 = vmatprep.subr.mxu0 0.0
    %1560 = vmatpush1.msra.mxu0 0.0
    %1561 = vmatprep.subr.mxu0 0.0
    %1562 = vmatpush1.msra.mxu0 0.0
    %1563 = vmatprep.subr.mxu0 0.0
    %1564 = vmatpush1.msra.mxu0 0.0
    %1565 = vmatprep.subr.mxu0 0.0
    %1566 = vmatpush1.msra.mxu0 0.0
    %1567 = vmatprep.subr.mxu0 0.0
    %1568 = vmatpush1.msra.mxu0 0.0
    %1569 = vmatprep.subr.mxu0 0.0
    %1570 = vmatpush1.msra.mxu0 0.0
    %1571 = vmatprep.subr.mxu0 0.0
    %1572 = vmatpush1.msra.mxu0 0.0
    %1573 = vmatprep.subr.mxu0 0.0
    %1574 = vmatpush1.msra.mxu0 0.0
    %1575 = vmatprep.subr.mxu0 0.0
    %1576 = vmatpush1.msra.mxu0 0.0
    %1577 = vmatprep.mubr.f32.mxu0 0.0
    %1578 = vmatmul.mubr.f32.gmra.mrb[0].mxu0 %v1441
    %v1579 = vpop.f32.mrb[0].mxu0
    %v1580 = vadd.f32 %v335, %v1579
    %v1581 = vpop.f32.mrb[0].mxu0
    %1582 = vdwg.mxu0
    %1583 = vmatprep.subr.mxu0 0.0
    %1584 = vmatpush1.msra.mxu0 %v242
    %1585 = vmatprep.subr.mxu0 0.0
    %1586 = vmatpush1.msra.mxu0 %v243
    %1587 = vmatprep.subr.mxu0 0.0
    %1588 = vmatpush1.msra.mxu0 %v244
    %1589 = vmatprep.subr.mxu0 0.0
    %1590 = vmatpush1.msra.mxu0 %v245
    %1591 = vmatprep.subr.mxu0 0.0
    %1592 = vmatpush1.msra.mxu0 0.0
    %1593 = vmatprep.subr.mxu0 0.0
    %1594 = vmatpush1.msra.mxu0 0.0
    %1595 = vmatprep.subr.mxu0 0.0
    %1596 = vmatpush1.msra.mxu0 0.0
    %1597 = vmatprep.subr.mxu0 0.0
    %1598 = vmatpush1.msra.mxu0 0.0
    %1599 = vmatprep.subr.mxu0 0.0
    %1600 = vmatpush1.msra.mxu0 0.0
    %1601 = vmatprep.subr.mxu0 0.0
    %1602 = vmatpush1.msra.mxu0 0.0
    %1603 = vmatprep.subr.mxu0 0.0
    %1604 = vmatpush1.msra.mxu0 0.0
    %1605 = vmatprep.subr.mxu0 0.0
    %1606 = vmatpush1.msra.mxu0 0.0
    %1607 = vmatprep.subr.mxu0 0.0
    %1608 = vmatpush1.msra.mxu0 0.0
    %1609 = vmatprep.subr.mxu0 0.0
    %1610 = vmatpush1.msra.mxu0 0.0
    %1611 = vmatprep.subr.mxu0 0.0
    %1612 = vmatpush1.msra.mxu0 0.0
    %1613 = vmatprep.subr.mxu0 0.0
    %1614 = vmatpush1.msra.mxu0 0.0
    %1615 = vmatprep.subr.mxu0 0.0
    %1616 = vmatpush1.msra.mxu0 0.0
    %1617 = vmatprep.subr.mxu0 0.0
    %1618 = vmatpush1.msra.mxu0 0.0
    %1619 = vmatprep.subr.mxu0 0.0
    %1620 = vmatpush1.msra.mxu0 0.0
    %1621 = vmatprep.subr.mxu0 0.0
    %1622 = vmatpush1.msra.mxu0 0.0
    %1623 = vmatprep.subr.mxu0 0.0
    %1624 = vmatpush1.msra.mxu0 0.0
    %1625 = vmatprep.subr.mxu0 0.0
    %1626 = vmatpush1.msra.mxu0 0.0
    %1627 = vmatprep.subr.mxu0 0.0
    %1628 = vmatpush1.msra.mxu0 0.0
    %1629 = vmatprep.subr.mxu0 0.0
    %1630 = vmatpush1.msra.mxu0 0.0
    %1631 = vmatprep.subr.mxu0 0.0
    %1632 = vmatpush1.msra.mxu0 0.0
    %1633 = vmatprep.subr.mxu0 0.0
    %1634 = vmatpush1.msra.mxu0 0.0
    %1635 = vmatprep.subr.mxu0 0.0
    %1636 = vmatpush1.msra.mxu0 0.0
    %1637 = vmatprep.subr.mxu0 0.0
    %1638 = vmatpush1.msra.mxu0 0.0
    %1639 = vmatprep.subr.mxu0 0.0
    %1640 = vmatpush1.msra.mxu0 0.0
    %1641 = vmatprep.subr.mxu0 0.0
    %1642 = vmatpush1.msra.mxu0 0.0
    %1643 = vmatprep.subr.mxu0 0.0
    %1644 = vmatpush1.msra.mxu0 0.0
    %1645 = vmatprep.subr.mxu0 0.0
    %1646 = vmatpush1.msra.mxu0 0.0
    %1647 = vmatprep.mubr.f32.mxu0 0.0
    %1648 = vmatmul.mubr.f32.gmra.mrb[0].mxu0 %v1441
    %v1649 = vpop.f32.mrb[0].mxu0
    %v1650 = vadd.f32 %v411, %v1649
    %v1651 = vpop.f32.mrb[0].mxu0
    %1652 = vdwg.mxu0
    %v1653 = vadd.f32 %v165, %v1510
    %v1654 = vxor.u32 %v1653, 2147483648
    %v1655 = vmul.f32 %v1654, 1.442695
    %v1656 = vpow.pop %v1655
    %v1657 = vadd.f32 %v1656, 1.0
    %v1658 = vrcp.pop %v1657
    %v1659 = vmul.f32 1.0, %v1658
    %v1660 = vadd.f32 %v197, %v1580
    %v1661 = vxor.u32 %v1660, 2147483648
    %v1662 = vmul.f32 %v1661, 1.442695
    %v1663 = vpow.pop %v1662
    %v1664 = vadd.f32 %v1663, 1.0
    %v1665 = vrcp.pop %v1664
    %v1666 = vmul.f32 1.0, %v1665
    %v1667 = vmul.f32 %v1659, %v1650
    %v1668 = vadd.f32 %v229, %v1667
    %v1669 = vtanh.pop %v1668
    %v1670 = vsub.f32 1.0, %v1666
    %v1671 = vmul.f32 %v1670, %v1669
    %v1672 = vmul.f32 %v1666, %v1439
    %v1673 = vadd.f32 %v1671, %v1672
    %v1675 = vsel %vm257, %v1673, 0
    %1677 = vmatprep.subr.mxu0 0.0
    %1678 = vmatpush1.msra.mxu0 %v232
    %1679 = vmatprep.subr.mxu0 0.0
    %1680 = vmatpush1.msra.mxu0 %v233
    %1681 = vmatprep.subr.mxu0 0.0
    %1682 = vmatpush1.msra.mxu0 %v234
    %1683 = vmatprep.subr.mxu0 0.0
    %1684 = vmatpush1.msra.mxu0 %v235
    %1685 = vmatprep.subr.mxu0 0.0
    %1686 = vmatpush1.msra.mxu0 0.0
    %1687 = vmatprep.subr.mxu0 0.0
    %1688 = vmatpush1.msra.mxu0 0.0
    %1689 = vmatprep.subr.mxu0 0.0
    %1690 = vmatpush1.msra.mxu0 0.0
    %1691 = vmatprep.subr.mxu0 0.0
    %1692 = vmatpush1.msra.mxu0 0.0
    %1693 = vmatprep.subr.mxu0 0.0
    %1694 = vmatpush1.msra.mxu0 0.0
    %1695 = vmatprep.subr.mxu0 0.0
    %1696 = vmatpush1.msra.mxu0 0.0
    %1697 = vmatprep.subr.mxu0 0.0
    %1698 = vmatpush1.msra.mxu0 0.0
    %1699 = vmatprep.subr.mxu0 0.0
    %1700 = vmatpush1.msra.mxu0 0.0
    %1701 = vmatprep.subr.mxu0 0.0
    %1702 = vmatpush1.msra.mxu0 0.0
    %1703 = vmatprep.subr.mxu0 0.0
    %1704 = vmatpush1.msra.mxu0 0.0
    %1705 = vmatprep.subr.mxu0 0.0
    %1706 = vmatpush1.msra.mxu0 0.0
    %1707 = vmatprep.subr.mxu0 0.0
    %1708 = vmatpush1.msra.mxu0 0.0
    %1709 = vmatprep.subr.mxu0 0.0
    %1710 = vmatpush1.msra.mxu0 0.0
    %1711 = vmatprep.subr.mxu0 0.0
    %1712 = vmatpush1.msra.mxu0 0.0
    %1713 = vmatprep.subr.mxu0 0.0
    %1714 = vmatpush1.msra.mxu0 0.0
    %1715 = vmatprep.subr.mxu0 0.0
    %1716 = vmatpush1.msra.mxu0 0.0
    %1717 = vmatprep.subr.mxu0 0.0
    %1718 = vmatpush1.msra.mxu0 0.0
    %1719 = vmatprep.subr.mxu0 0.0
    %1720 = vmatpush1.msra.mxu0 0.0
    %1721 = vmatprep.subr.mxu0 0.0
    %1722 = vmatpush1.msra.mxu0 0.0
    %1723 = vmatprep.subr.mxu0 0.0
    %1724 = vmatpush1.msra.mxu0 0.0
    %1725 = vmatprep.subr.mxu0 0.0
    %1726 = vmatpush1.msra.mxu0 0.0
    %1727 = vmatprep.subr.mxu0 0.0
    %1728 = vmatpush1.msra.mxu0 0.0
    %1729 = vmatprep.subr.mxu0 0.0
    %1730 = vmatpush1.msra.mxu0 0.0
    %1731 = vmatprep.subr.mxu0 0.0
    %1732 = vmatpush1.msra.mxu0 0.0
    %1733 = vmatprep.subr.mxu0 0.0
    %1734 = vmatpush1.msra.mxu0 0.0
    %1735 = vmatprep.subr.mxu0 0.0
    %1736 = vmatpush1.msra.mxu0 0.0
    %1737 = vmatprep.subr.mxu0 0.0
    %1738 = vmatpush1.msra.mxu0 0.0
    %1739 = vmatprep.subr.mxu0 0.0
    %1740 = vmatpush1.msra.mxu0 0.0
    %1741 = vmatprep.mubr.f32.mxu0 0.0
    %1742 = vmatmul.mubr.f32.gmra.mrb[0].mxu0 %v1675
    %v1743 = vpop.f32.mrb[0].mxu0
    %v1744 = vadd.f32 %v255, %v1743
    %v1745 = vpop.f32.mrb[0].mxu0
    %1746 = vdwg.mxu0
    %1747 = vmatprep.subr.mxu0 0.0
    %1748 = vmatpush1.msra.mxu0 %v237
    %1749 = vmatprep.subr.mxu0 0.0
    %1750 = vmatpush1.msra.mxu0 %v238
    %1751 = vmatprep.subr.mxu0 0.0
    %1752 = vmatpush1.msra.mxu0 %v239
    %1753 = vmatprep.subr.mxu0 0.0
    %1754 = vmatpush1.msra.mxu0 %v240
    %1755 = vmatprep.subr.mxu0 0.0
    %1756 = vmatpush1.msra.mxu0 0.0
    %1757 = vmatprep.subr.mxu0 0.0
    %1758 = vmatpush1.msra.mxu0 0.0
    %1759 = vmatprep.subr.mxu0 0.0
    %1760 = vmatpush1.msra.mxu0 0.0
    %1761 = vmatprep.subr.mxu0 0.0
    %1762 = vmatpush1.msra.mxu0 0.0
    %1763 = vmatprep.subr.mxu0 0.0
    %1764 = vmatpush1.msra.mxu0 0.0
    %1765 = vmatprep.subr.mxu0 0.0
    %1766 = vmatpush1.msra.mxu0 0.0
    %1767 = vmatprep.subr.mxu0 0.0
    %1768 = vmatpush1.msra.mxu0 0.0
    %1769 = vmatprep.subr.mxu0 0.0
    %1770 = vmatpush1.msra.mxu0 0.0
    %1771 = vmatprep.subr.mxu0 0.0
    %1772 = vmatpush1.msra.mxu0 0.0
    %1773 = vmatprep.subr.mxu0 0.0
    %1774 = vmatpush1.msra.mxu0 0.0
    %1775 = vmatprep.subr.mxu0 0.0
    %1776 = vmatpush1.msra.mxu0 0.0
    %1777 = vmatprep.subr.mxu0 0.0
    %1778 = vmatpush1.msra.mxu0 0.0
    %1779 = vmatprep.subr.mxu0 0.0
    %1780 = vmatpush1.msra.mxu0 0.0
    %1781 = vmatprep.subr.mxu0 0.0
    %1782 = vmatpush1.msra.mxu0 0.0
    %1783 = vmatprep.subr.mxu0 0.0
    %1784 = vmatpush1.msra.mxu0 0.0
    %1785 = vmatprep.subr.mxu0 0.0
    %1786 = vmatpush1.msra.mxu0 0.0
    %1787 = vmatprep.subr.mxu0 0.0
    %1788 = vmatpush1.msra.mxu0 0.0
    %1789 = vmatprep.subr.mxu0 0.0
    %1790 = vmatpush1.msra.mxu0 0.0
    %1791 = vmatprep.subr.mxu0 0.0
    %1792 = vmatpush1.msra.mxu0 0.0
    %1793 = vmatprep.subr.mxu0 0.0
    %1794 = vmatpush1.msra.mxu0 0.0
    %1795 = vmatprep.subr.mxu0 0.0
    %1796 = vmatpush1.msra.mxu0 0.0
    %1797 = vmatprep.subr.mxu0 0.0
    %1798 = vmatpush1.msra.mxu0 0.0
    %1799 = vmatprep.subr.mxu0 0.0
    %1800 = vmatpush1.msra.mxu0 0.0
    %1801 = vmatprep.subr.mxu0 0.0
    %1802 = vmatpush1.msra.mxu0 0.0
    %1803 = vmatprep.subr.mxu0 0.0
    %1804 = vmatpush1.msra.mxu0 0.0
    %1805 = vmatprep.subr.mxu0 0.0
    %1806 = vmatpush1.msra.mxu0 0.0
    %1807 = vmatprep.subr.mxu0 0.0
    %1808 = vmatpush1.msra.mxu0 0.0
    %1809 = vmatprep.subr.mxu0 0.0
    %1810 = vmatpush1.msra.mxu0 0.0
    %1811 = vmatprep.mubr.f32.mxu0 0.0
    %1812 = vmatmul.mubr.f32.gmra.mrb[0].mxu0 %v1675
    %v1813 = vpop.f32.mrb[0].mxu0
    %v1814 = vadd.f32 %v335, %v1813
    %v1815 = vpop.f32.mrb[0].mxu0
    %1816 = vdwg.mxu0
    %1817 = vmatprep.subr.mxu0 0.0
    %1818 = vmatpush1.msra.mxu0 %v242
    %1819 = vmatprep.subr.mxu0 0.0
    %1820 = vmatpush1.msra.mxu0 %v243
    %1821 = vmatprep.subr.mxu0 0.0
    %1822 = vmatpush1.msra.mxu0 %v244
    %1823 = vmatprep.subr.mxu0 0.0
    %1824 = vmatpush1.msra.mxu0 %v245
    %1825 = vmatprep.subr.mxu0 0.0
    %1826 = vmatpush1.msra.mxu0 0.0
    %1827 = vmatprep.subr.mxu0 0.0
    %1828 = vmatpush1.msra.mxu0 0.0
    %1829 = vmatprep.subr.mxu0 0.0
    %1830 = vmatpush1.msra.mxu0 0.0
    %1831 = vmatprep.subr.mxu0 0.0
    %1832 = vmatpush1.msra.mxu0 0.0
    %1833 = vmatprep.subr.mxu0 0.0
    %1834 = vmatpush1.msra.mxu0 0.0
    %1835 = vmatprep.subr.mxu0 0.0
    %1836 = vmatpush1.msra.mxu0 0.0
    %1837 = vmatprep.subr.mxu0 0.0
    %1838 = vmatpush1.msra.mxu0 0.0
    %1839 = vmatprep.subr.mxu0 0.0
    %1840 = vmatpush1.msra.mxu0 0.0
    %1841 = vmatprep.subr.mxu0 0.0
    %1842 = vmatpush1.msra.mxu0 0.0
    %1843 = vmatprep.subr.mxu0 0.0
    %1844 = vmatpush1.msra.mxu0 0.0
    %1845 = vmatprep.subr.mxu0 0.0
    %1846 = vmatpush1.msra.mxu0 0.0
    %1847 = vmatprep.subr.mxu0 0.0
    %1848 = vmatpush1.msra.mxu0 0.0
    %1849 = vmatprep.subr.mxu0 0.0
    %1850 = vmatpush1.msra.mxu0 0.0
    %1851 = vmatprep.subr.mxu0 0.0
    %1852 = vmatpush1.msra.mxu0 0.0
    %1853 = vmatprep.subr.mxu0 0.0
    %1854 = vmatpush1.msra.mxu0 0.0
    %1855 = vmatprep.subr.mxu0 0.0
    %1856 = vmatpush1.msra.mxu0 0.0
    %1857 = vmatprep.subr.mxu0 0.0
    %1858 = vmatpush1.msra.mxu0 0.0
    %1859 = vmatprep.subr.mxu0 0.0
    %1860 = vmatpush1.msra.mxu0 0.0
    %1861 = vmatprep.subr.mxu0 0.0
    %1862 = vmatpush1.msra.mxu0 0.0
    %1863 = vmatprep.subr.mxu0 0.0
    %1864 = vmatpush1.msra.mxu0 0.0
    %1865 = vmatprep.subr.mxu0 0.0
    %1866 = vmatpush1.msra.mxu0 0.0
    %1867 = vmatprep.subr.mxu0 0.0
    %1868 = vmatpush1.msra.mxu0 0.0
    %1869 = vmatprep.subr.mxu0 0.0
    %1870 = vmatpush1.msra.mxu0 0.0
    %1871 = vmatprep.subr.mxu0 0.0
    %1872 = vmatpush1.msra.mxu0 0.0
    %1873 = vmatprep.subr.mxu0 0.0
    %1874 = vmatpush1.msra.mxu0 0.0
    %1875 = vmatprep.subr.mxu0 0.0
    %1876 = vmatpush1.msra.mxu0 0.0
    %1877 = vmatprep.subr.mxu0 0.0
    %1878 = vmatpush1.msra.mxu0 0.0
    %1879 = vmatprep.subr.mxu0 0.0
    %1880 = vmatpush1.msra.mxu0 0.0
    %1881 = vmatprep.mubr.f32.mxu0 0.0
    %1882 = vmatmul.mubr.f32.gmra.mrb[0].mxu0 %v1675
    %v1883 = vpop.f32.mrb[0].mxu0
    %v1884 = vadd.f32 %v411, %v1883
    %v1885 = vpop.f32.mrb[0].mxu0
    %1886 = vdwg.mxu0
    %v1887 = vadd.f32 %v166, %v1744
    %v1888 = vxor.u32 %v1887, 2147483648
    %v1889 = vmul.f32 %v1888, 1.442695
    %v1890 = vpow.pop %v1889
    %v1891 = vadd.f32 %v1890, 1.0
    %v1892 = vrcp.pop %v1891
    %v1893 = vmul.f32 1.0, %v1892
    %v1894 = vadd.f32 %v198, %v1814
    %v1895 = vxor.u32 %v1894, 2147483648
    %v1896 = vmul.f32 %v1895, 1.442695
    %v1897 = vpow.pop %v1896
    %v1898 = vadd.f32 %v1897, 1.0
    %v1899 = vrcp.pop %v1898
    %v1900 = vmul.f32 1.0, %v1899
    %v1901 = vmul.f32 %v1893, %v1884
    %v1902 = vadd.f32 %v230, %v1901
    %v1903 = vtanh.pop %v1902
    %v1904 = vsub.f32 1.0, %v1900
    %v1905 = vmul.f32 %v1904, %v1903
    %v1906 = vmul.f32 %v1900, %v1673
    %v1907 = vadd.f32 %v1905, %v1906
    %v1909 = vsel %vm257, %v1907, 0
    %1911 = vmatprep.subr.mxu0 0.0
    %1912 = vmatpush1.msra.mxu0 %v232
    %1913 = vmatprep.subr.mxu0 0.0
    %1914 = vmatpush1.msra.mxu0 %v233
    %1915 = vmatprep.subr.mxu0 0.0
    %1916 = vmatpush1.msra.mxu0 %v234
    %1917 = vmatprep.subr.mxu0 0.0
    %1918 = vmatpush1.msra.mxu0 %v235
    %1919 = vmatprep.subr.mxu0 0.0
    %1920 = vmatpush1.msra.mxu0 0.0
    %1921 = vmatprep.subr.mxu0 0.0
    %1922 = vmatpush1.msra.mxu0 0.0
    %1923 = vmatprep.subr.mxu0 0.0
    %1924 = vmatpush1.msra.mxu0 0.0
    %1925 = vmatprep.subr.mxu0 0.0
    %1926 = vmatpush1.msra.mxu0 0.0
    %1927 = vmatprep.subr.mxu0 0.0
    %1928 = vmatpush1.msra.mxu0 0.0
    %1929 = vmatprep.subr.mxu0 0.0
    %1930 = vmatpush1.msra.mxu0 0.0
    %1931 = vmatprep.subr.mxu0 0.0
    %1932 = vmatpush1.msra.mxu0 0.0
    %1933 = vmatprep.subr.mxu0 0.0
    %1934 = vmatpush1.msra.mxu0 0.0
    %1935 = vmatprep.subr.mxu0 0.0
    %1936 = vmatpush1.msra.mxu0 0.0
    %1937 = vmatprep.subr.mxu0 0.0
    %1938 = vmatpush1.msra.mxu0 0.0
    %1939 = vmatprep.subr.mxu0 0.0
    %1940 = vmatpush1.msra.mxu0 0.0
    %1941 = vmatprep.subr.mxu0 0.0
    %1942 = vmatpush1.msra.mxu0 0.0
    %1943 = vmatprep.subr.mxu0 0.0
    %1944 = vmatpush1.msra.mxu0 0.0
    %1945 = vmatprep.subr.mxu0 0.0
    %1946 = vmatpush1.msra.mxu0 0.0
    %1947 = vmatprep.subr.mxu0 0.0
    %1948 = vmatpush1.msra.mxu0 0.0
    %1949 = vmatprep.subr.mxu0 0.0
    %1950 = vmatpush1.msra.mxu0 0.0
    %1951 = vmatprep.subr.mxu0 0.0
    %1952 = vmatpush1.msra.mxu0 0.0
    %1953 = vmatprep.subr.mxu0 0.0
    %1954 = vmatpush1.msra.mxu0 0.0
    %1955 = vmatprep.subr.mxu0 0.0
    %1956 = vmatpush1.msra.mxu0 0.0
    %1957 = vmatprep.subr.mxu0 0.0
    %1958 = vmatpush1.msra.mxu0 0.0
    %1959 = vmatprep.subr.mxu0 0.0
    %1960 = vmatpush1.msra.mxu0 0.0
    %1961 = vmatprep.subr.mxu0 0.0
    %1962 = vmatpush1.msra.mxu0 0.0
    %1963 = vmatprep.subr.mxu0 0.0
    %1964 = vmatpush1.msra.mxu0 0.0
    %1965 = vmatprep.subr.mxu0 0.0
    %1966 = vmatpush1.msra.mxu0 0.0
    %1967 = vmatprep.subr.mxu0 0.0
    %1968 = vmatpush1.msra.mxu0 0.0
    %1969 = vmatprep.subr.mxu0 0.0
    %1970 = vmatpush1.msra.mxu0 0.0
    %1971 = vmatprep.subr.mxu0 0.0
    %1972 = vmatpush1.msra.mxu0 0.0
    %1973 = vmatprep.subr.mxu0 0.0
    %1974 = vmatpush1.msra.mxu0 0.0
    %1975 = vmatprep.mubr.f32.mxu0 0.0
    %1976 = vmatmul.mubr.f32.gmra.mrb[0].mxu0 %v1909
    %v1977 = vpop.f32.mrb[0].mxu0
    %v1978 = vadd.f32 %v255, %v1977
    %v1979 = vpop.f32.mrb[0].mxu0
    %1980 = vdwg.mxu0
    %1981 = vmatprep.subr.mxu0 0.0
    %1982 = vmatpush1.msra.mxu0 %v237
    %1983 = vmatprep.subr.mxu0 0.0
    %1984 = vmatpush1.msra.mxu0 %v238
    %1985 = vmatprep.subr.mxu0 0.0
    %1986 = vmatpush1.msra.mxu0 %v239
    %1987 = vmatprep.subr.mxu0 0.0
    %1988 = vmatpush1.msra.mxu0 %v240
    %1989 = vmatprep.subr.mxu0 0.0
    %1990 = vmatpush1.msra.mxu0 0.0
    %1991 = vmatprep.subr.mxu0 0.0
    %1992 = vmatpush1.msra.mxu0 0.0
    %1993 = vmatprep.subr.mxu0 0.0
    %1994 = vmatpush1.msra.mxu0 0.0
    %1995 = vmatprep.subr.mxu0 0.0
    %1996 = vmatpush1.msra.mxu0 0.0
    %1997 = vmatprep.subr.mxu0 0.0
    %1998 = vmatpush1.msra.mxu0 0.0
    %1999 = vmatprep.subr.mxu0 0.0
    %2000 = vmatpush1.msra.mxu0 0.0
    %2001 = vmatprep.subr.mxu0 0.0
    %2002 = vmatpush1.msra.mxu0 0.0
    %2003 = vmatprep.subr.mxu0 0.0
    %2004 = vmatpush1.msra.mxu0 0.0
    %2005 = vmatprep.subr.mxu0 0.0
    %2006 = vmatpush1.msra.mxu0 0.0
    %2007 = vmatprep.subr.mxu0 0.0
    %2008 = vmatpush1.msra.mxu0 0.0
    %2009 = vmatprep.subr.mxu0 0.0
    %2010 = vmatpush1.msra.mxu0 0.0
    %2011 = vmatprep.subr.mxu0 0.0
    %2012 = vmatpush1.msra.mxu0 0.0
    %2013 = vmatprep.subr.mxu0 0.0
    %2014 = vmatpush1.msra.mxu0 0.0
    %2015 = vmatprep.subr.mxu0 0.0
    %2016 = vmatpush1.msra.mxu0 0.0
    %2017 = vmatprep.subr.mxu0 0.0
    %2018 = vmatpush1.msra.mxu0 0.0
    %2019 = vmatprep.subr.mxu0 0.0
    %2020 = vmatpush1.msra.mxu0 0.0
    %2021 = vmatprep.subr.mxu0 0.0
    %2022 = vmatpush1.msra.mxu0 0.0
    %2023 = vmatprep.subr.mxu0 0.0
    %2024 = vmatpush1.msra.mxu0 0.0
    %2025 = vmatprep.subr.mxu0 0.0
    %2026 = vmatpush1.msra.mxu0 0.0
    %2027 = vmatprep.subr.mxu0 0.0
    %2028 = vmatpush1.msra.mxu0 0.0
    %2029 = vmatprep.subr.mxu0 0.0
    %2030 = vmatpush1.msra.mxu0 0.0
    %2031 = vmatprep.subr.mxu0 0.0
    %2032 = vmatpush1.msra.mxu0 0.0
    %2033 = vmatprep.subr.mxu0 0.0
    %2034 = vmatpush1.msra.mxu0 0.0
    %2035 = vmatprep.subr.mxu0 0.0
    %2036 = vmatpush1.msra.mxu0 0.0
    %2037 = vmatprep.subr.mxu0 0.0
    %2038 = vmatpush1.msra.mxu0 0.0
    %2039 = vmatprep.subr.mxu0 0.0
    %2040 = vmatpush1.msra.mxu0 0.0
    %2041 = vmatprep.subr.mxu0 0.0
    %2042 = vmatpush1.msra.mxu0 0.0
    %2043 = vmatprep.subr.mxu0 0.0
    %2044 = vmatpush1.msra.mxu0 0.0
    %2045 = vmatprep.mubr.f32.mxu0 0.0
    %2046 = vmatmul.mubr.f32.gmra.mrb[0].mxu0 %v1909
    %v2047 = vpop.f32.mrb[0].mxu0
    %v2048 = vadd.f32 %v335, %v2047
    %v2049 = vpop.f32.mrb[0].mxu0
    %2050 = vdwg.mxu0
    %2051 = vmatprep.subr.mxu0 0.0
    %2052 = vmatpush1.msra.mxu0 %v242
    %2053 = vmatprep.subr.mxu0 0.0
    %2054 = vmatpush1.msra.mxu0 %v243
    %2055 = vmatprep.subr.mxu0 0.0
    %2056 = vmatpush1.msra.mxu0 %v244
    %2057 = vmatprep.subr.mxu0 0.0
    %2058 = vmatpush1.msra.mxu0 %v245
    %2059 = vmatprep.subr.mxu0 0.0
    %2060 = vmatpush1.msra.mxu0 0.0
    %2061 = vmatprep.subr.mxu0 0.0
    %2062 = vmatpush1.msra.mxu0 0.0
    %2063 = vmatprep.subr.mxu0 0.0
    %2064 = vmatpush1.msra.mxu0 0.0
    %2065 = vmatprep.subr.mxu0 0.0
    %2066 = vmatpush1.msra.mxu0 0.0
    %2067 = vmatprep.subr.mxu0 0.0
    %2068 = vmatpush1.msra.mxu0 0.0
    %2069 = vmatprep.subr.mxu0 0.0
    %2070 = vmatpush1.msra.mxu0 0.0
    %2071 = vmatprep.subr.mxu0 0.0
    %2072 = vmatpush1.msra.mxu0 0.0
    %2073 = vmatprep.subr.mxu0 0.0
    %2074 = vmatpush1.msra.mxu0 0.0
    %2075 = vmatprep.subr.mxu0 0.0
    %2076 = vmatpush1.msra.mxu0 0.0
    %2077 = vmatprep.subr.mxu0 0.0
    %2078 = vmatpush1.msra.mxu0 0.0
    %2079 = vmatprep.subr.mxu0 0.0
    %2080 = vmatpush1.msra.mxu0 0.0
    %2081 = vmatprep.subr.mxu0 0.0
    %2082 = vmatpush1.msra.mxu0 0.0
    %2083 = vmatprep.subr.mxu0 0.0
    %2084 = vmatpush1.msra.mxu0 0.0
    %2085 = vmatprep.subr.mxu0 0.0
    %2086 = vmatpush1.msra.mxu0 0.0
    %2087 = vmatprep.subr.mxu0 0.0
    %2088 = vmatpush1.msra.mxu0 0.0
    %2089 = vmatprep.subr.mxu0 0.0
    %2090 = vmatpush1.msra.mxu0 0.0
    %2091 = vmatprep.subr.mxu0 0.0
    %2092 = vmatpush1.msra.mxu0 0.0
    %2093 = vmatprep.subr.mxu0 0.0
    %2094 = vmatpush1.msra.mxu0 0.0
    %2095 = vmatprep.subr.mxu0 0.0
    %2096 = vmatpush1.msra.mxu0 0.0
    %2097 = vmatprep.subr.mxu0 0.0
    %2098 = vmatpush1.msra.mxu0 0.0
    %2099 = vmatprep.subr.mxu0 0.0
    %2100 = vmatpush1.msra.mxu0 0.0
    %2101 = vmatprep.subr.mxu0 0.0
    %2102 = vmatpush1.msra.mxu0 0.0
    %2103 = vmatprep.subr.mxu0 0.0
    %2104 = vmatpush1.msra.mxu0 0.0
    %2105 = vmatprep.subr.mxu0 0.0
    %2106 = vmatpush1.msra.mxu0 0.0
    %2107 = vmatprep.subr.mxu0 0.0
    %2108 = vmatpush1.msra.mxu0 0.0
    %2109 = vmatprep.subr.mxu0 0.0
    %2110 = vmatpush1.msra.mxu0 0.0
    %2111 = vmatprep.subr.mxu0 0.0
    %2112 = vmatpush1.msra.mxu0 0.0
    %2113 = vmatprep.subr.mxu0 0.0
    %2114 = vmatpush1.msra.mxu0 0.0
    %2115 = vmatprep.mubr.f32.mxu0 0.0
    %2116 = vmatmul.mubr.f32.gmra.mrb[0].mxu0 %v1909
    %v2117 = vpop.f32.mrb[0].mxu0
    %v2118 = vadd.f32 %v411, %v2117
    %v2119 = vpop.f32.mrb[0].mxu0
    %2120 = vdwg.mxu0
    %v2121 = vadd.f32 %v167, %v1978
    %v2122 = vxor.u32 %v2121, 2147483648
    %v2123 = vmul.f32 %v2122, 1.442695
    %v2124 = vpow.pop %v2123
    %v2125 = vadd.f32 %v2124, 1.0
    %v2126 = vrcp.pop %v2125
    %v2127 = vmul.f32 1.0, %v2126
    %v2128 = vadd.f32 %v199, %v2048
    %v2129 = vxor.u32 %v2128, 2147483648
    %v2130 = vmul.f32 %v2129, 1.442695
    %v2131 = vpow.pop %v2130
    %v2132 = vadd.f32 %v2131, 1.0
    %v2133 = vrcp.pop %v2132
    %v2134 = vmul.f32 1.0, %v2133
    %v2135 = vmul.f32 %v2127, %v2118
    %v2136 = vadd.f32 %v231, %v2135
    %v2137 = vtanh.pop %v2136
    %v2138 = vsub.f32 1.0, %v2134
    %v2139 = vmul.f32 %v2138, %v2137
    %v2140 = vmul.f32 %v2134, %v1907
    %v2141 = vadd.f32 %v2139, %v2140
    %v2142 = vld [vmem:[#allocation5] sm:$0xff]
    %v2143 = vld [vmem:[#allocation5 + $0x8] sm:$0xff]
    %v2144 = vld [vmem:[#allocation5 + $0x10] sm:$0xff]
    %v2145 = vld [vmem:[#allocation5 + $0x18] sm:$0xff]
    %v2146 = vld [vmem:[%s6] sm:$0x1]
    %v2148 = vlaneseq
    %v2149 = vshrl.u32 %v2148, 7
    %v2150 = vsub.s32 0, %v2149
    %v2151 = vrot.slane %v2146, %v2150
    %v2154 = vcombine.low %v503, %v737
    %v2155 = vcombine.low %v971, %v1205
    %v2157 = vunpack.c.l.s4 1983009808
    %v2158 = vunpack.c.0.s8 %v2157
    %v2159 = vlaneseq
    %v2160 = vshrl.u32 %v2159, 7
    %v2161 = vsub.s32 %v2158, %v2160
    %v2162 = vrot.slane %v2154, %v2161
    %v2164 = vunpack.c.l.s4 1983009808
    %v2165 = vunpack.c.0.s8 %v2164
    %v2166 = vlaneseq
    %v2167 = vshrl.u32 %v2166, 7
    %v2168 = vsub.s32 %v2165, %v2167
    %v2169 = vrot.slane %v2155, %v2168
    %v2170 = vcombine.low %v2162, %v2169
    %v2171 = vcombine.low %v1439, %v1673
    %v2172 = vcombine.low %v1907, %v2141
    %v2174 = vunpack.c.l.s4 1983009808
    %v2175 = vunpack.c.0.s8 %v2174
    %v2176 = vlaneseq
    %v2177 = vshrl.u32 %v2176, 7
    %v2178 = vsub.s32 %v2175, %v2177
    %v2179 = vrot.slane %v2171, %v2178
    %v2181 = vunpack.c.l.s4 1983009808
    %v2182 = vunpack.c.0.s8 %v2181
    %v2183 = vlaneseq
    %v2184 = vshrl.u32 %v2183, 7
    %v2185 = vsub.s32 %v2182, %v2184
    %v2186 = vrot.slane %v2172, %v2185
    %v2187 = vcombine.low %v2179, %v2186
    %v2188 = vsel %vm257, %v2170, 0
    %v2190 = vsel %vm257, %v2187, 0
    %2192 = vmatprep.subr.mxu0 0.0
    %2193 = vmatpush1.msra.mxu0 %v2142
    %2194 = vmatprep.subr.mxu0 0.0
    %2195 = vmatpush1.msra.mxu0 %v2143
    %2196 = vmatprep.subr.mxu0 0.0
    %2197 = vmatpush1.msra.mxu0 %v2144
    %2198 = vmatprep.subr.mxu0 0.0
    %2199 = vmatpush1.msra.mxu0 %v2145
    %2200 = vmatprep.subr.mxu0 0.0
    %2201 = vmatpush1.msra.mxu0 0.0
    %2202 = vmatprep.subr.mxu0 0.0
    %2203 = vmatpush1.msra.mxu0 0.0
    %2204 = vmatprep.subr.mxu0 0.0
    %2205 = vmatpush1.msra.mxu0 0.0
    %2206 = vmatprep.subr.mxu0 0.0
    %2207 = vmatpush1.msra.mxu0 0.0
    %2208 = vmatprep.subr.mxu0 0.0
    %2209 = vmatpush1.msra.mxu0 0.0
    %2210 = vmatprep.subr.mxu0 0.0
    %2211 = vmatpush1.msra.mxu0 0.0
    %2212 = vmatprep.subr.mxu0 0.0
    %2213 = vmatpush1.msra.mxu0 0.0
    %2214 = vmatprep.subr.mxu0 0.0
    %2215 = vmatpush1.msra.mxu0 0.0
    %2216 = vmatprep.subr.mxu0 0.0
    %2217 = vmatpush1.msra.mxu0 0.0
    %2218 = vmatprep.subr.mxu0 0.0
    %2219 = vmatpush1.msra.mxu0 0.0
    %2220 = vmatprep.subr.mxu0 0.0
    %2221 = vmatpush1.msra.mxu0 0.0
    %2222 = vmatprep.subr.mxu0 0.0
    %2223 = vmatpush1.msra.mxu0 0.0
    %2224 = vmatprep.subr.mxu0 0.0
    %2225 = vmatpush1.msra.mxu0 0.0
    %2226 = vmatprep.subr.mxu0 0.0
    %2227 = vmatpush1.msra.mxu0 0.0
    %2228 = vmatprep.subr.mxu0 0.0
    %2229 = vmatpush1.msra.mxu0 0.0
    %2230 = vmatprep.subr.mxu0 0.0
    %2231 = vmatpush1.msra.mxu0 0.0
    %2232 = vmatprep.subr.mxu0 0.0
    %2233 = vmatpush1.msra.mxu0 0.0
    %2234 = vmatprep.subr.mxu0 0.0
    %2235 = vmatpush1.msra.mxu0 0.0
    %2236 = vmatprep.subr.mxu0 0.0
    %2237 = vmatpush1.msra.mxu0 0.0
    %2238 = vmatprep.subr.mxu0 0.0
    %2239 = vmatpush1.msra.mxu0 0.0
    %2240 = vmatprep.subr.mxu0 0.0
    %2241 = vmatpush1.msra.mxu0 0.0
    %2242 = vmatprep.subr.mxu0 0.0
    %2243 = vmatpush1.msra.mxu0 0.0
    %2244 = vmatprep.subr.mxu0 0.0
    %2245 = vmatpush1.msra.mxu0 0.0
    %2246 = vmatprep.subr.mxu0 0.0
    %2247 = vmatpush1.msra.mxu0 0.0
    %2248 = vmatprep.subr.mxu0 0.0
    %2249 = vmatpush1.msra.mxu0 0.0
    %2250 = vmatprep.subr.mxu0 0.0
    %2251 = vmatpush1.msra.mxu0 0.0
    %2252 = vmatprep.subr.mxu0 0.0
    %2253 = vmatpush1.msra.mxu0 0.0
    %2254 = vmatprep.subr.mxu0 0.0
    %2255 = vmatpush1.msra.mxu0 0.0
    %2256 = vmatprep.mubr.f32.mxu0 0.0
    %2257 = vmatmul.mubr.f32.gmra.mrb[0].mxu0 %v2188
    %v2258 = vpop.f32.mrb[0].mxu0
    %v2259 = vadd.f32 %v2151, %v2258
    %v2260 = vpop.f32.mrb[0].mxu0
    %2261 = vmatprep.mubr.f32.mxu0 0.0
    %2262 = vmatmul.mubr.f32.gmra.mrb[0].mxu0 %v2190
    %v2263 = vpop.f32.mrb[0].mxu0
    %v2264 = vadd.f32 %v2151, %v2263
    %v2265 = vpop.f32.mrb[0].mxu0
    %2266 = vdwg.mxu0
    %v2269 = vcombine.high %v2259, %v2259
    %v2271 = vunpack.c.l.s4 1983009808
    %v2272 = vunpack.c.0.s8 %v2271
    %v2273 = vlaneseq
    %v2274 = vshrl.u32 %v2273, 7
    %v2275 = vsub.s32 %v2272, %v2274
    %v2276 = vrot.slane %v2259, %v2275
    %v2278 = vunpack.c.l.s4 1983009808
    %v2279 = vunpack.c.0.s8 %v2278
    %v2280 = vlaneseq
    %v2281 = vshrl.u32 %v2280, 7
    %v2282 = vsub.s32 %v2279, %v2281
    %v2283 = vrot.slane %v2269, %v2282
    %v2284 = vcombine.high %v2276, %v2276
    %v2285 = vcombine.high %v2283, %v2283
    %v2286 = vcombine.high %v2264, %v2264
    %v2288 = vunpack.c.l.s4 1983009808
    %v2289 = vunpack.c.0.s8 %v2288
    %v2290 = vlaneseq
    %v2291 = vshrl.u32 %v2290, 7
    %v2292 = vsub.s32 %v2289, %v2291
    %v2293 = vrot.slane %v2264, %v2292
    %v2295 = vunpack.c.l.s4 1983009808
    %v2296 = vunpack.c.0.s8 %v2295
    %v2297 = vlaneseq
    %v2298 = vshrl.u32 %v2297, 7
    %v2299 = vsub.s32 %v2296, %v2298
    %v2300 = vrot.slane %v2286, %v2299
    %v2301 = vcombine.high %v2293, %v2293
    %v2302 = vcombine.high %v2300, %v2300
    %s2311 = scalar_lea.vmem [#allocation5], 32
    %v2312 = vld [vmem:[%s2311] sm:$0xff]
    %v2313 = vld [vmem:[%s2311 + $0x8] sm:$0xff]
    %v2314 = vld [vmem:[%s2311 + $0x10] sm:$0xff]
    %v2315 = vld [vmem:[%s2311 + $0x18] sm:$0xff]
    %s2316 = scalar_lea.vmem %s6, 1
    %v2317 = vld [vmem:[%s2316] sm:$0x1]
    %v2319 = vlaneseq
    %v2320 = vshrl.u32 %v2319, 7
    %v2321 = vsub.s32 0, %v2320
    %v2322 = vrot.slane %v2317, %v2321
    %2324 = vmatprep.subr.mxu0 0.0
    %2325 = vmatpush1.msra.mxu0 %v2312
    %2326 = vmatprep.subr.mxu0 0.0
    %2327 = vmatpush1.msra.mxu0 %v2313
    %2328 = vmatprep.subr.mxu0 0.0
    %2329 = vmatpush1.msra.mxu0 %v2314
    %2330 = vmatprep.subr.mxu0 0.0
    %2331 = vmatpush1.msra.mxu0 %v2315
    %2332 = vmatprep.subr.mxu0 0.0
    %2333 = vmatpush1.msra.mxu0 0.0
    %2334 = vmatprep.subr.mxu0 0.0
    %2335 = vmatpush1.msra.mxu0 0.0
    %2336 = vmatprep.subr.mxu0 0.0
    %2337 = vmatpush1.msra.mxu0 0.0
    %2338 = vmatprep.subr.mxu0 0.0
    %2339 = vmatpush1.msra.mxu0 0.0
    %2340 = vmatprep.subr.mxu0 0.0
    %2341 = vmatpush1.msra.mxu0 0.0
    %2342 = vmatprep.subr.mxu0 0.0
    %2343 = vmatpush1.msra.mxu0 0.0
    %2344 = vmatprep.subr.mxu0 0.0
    %2345 = vmatpush1.msra.mxu0 0.0
    %2346 = vmatprep.subr.mxu0 0.0
    %2347 = vmatpush1.msra.mxu0 0.0
    %2348 = vmatprep.subr.mxu0 0.0
    %2349 = vmatpush1.msra.mxu0 0.0
    %2350 = vmatprep.subr.mxu0 0.0
    %2351 = vmatpush1.msra.mxu0 0.0
    %2352 = vmatprep.subr.mxu0 0.0
    %2353 = vmatpush1.msra.mxu0 0.0
    %2354 = vmatprep.subr.mxu0 0.0
    %2355 = vmatpush1.msra.mxu0 0.0
    %2356 = vmatprep.subr.mxu0 0.0
    %2357 = vmatpush1.msra.mxu0 0.0
    %2358 = vmatprep.subr.mxu0 0.0
    %2359 = vmatpush1.msra.mxu0 0.0
    %2360 = vmatprep.subr.mxu0 0.0
    %2361 = vmatpush1.msra.mxu0 0.0
    %2362 = vmatprep.subr.mxu0 0.0
    %2363 = vmatpush1.msra.mxu0 0.0
    %2364 = vmatprep.subr.mxu0 0.0
    %2365 = vmatpush1.msra.mxu0 0.0
    %2366 = vmatprep.subr.mxu0 0.0
    %2367 = vmatpush1.msra.mxu0 0.0
    %2368 = vmatprep.subr.mxu0 0.0
    %2369 = vmatpush1.msra.mxu0 0.0
    %2370 = vmatprep.subr.mxu0 0.0
    %2371 = vmatpush1.msra.mxu0 0.0
    %2372 = vmatprep.subr.mxu0 0.0
    %2373 = vmatpush1.msra.mxu0 0.0
    %2374 = vmatprep.subr.mxu0 0.0
    %2375 = vmatpush1.msra.mxu0 0.0
    %2376 = vmatprep.subr.mxu0 0.0
    %2377 = vmatpush1.msra.mxu0 0.0
    %2378 = vmatprep.subr.mxu0 0.0
    %2379 = vmatpush1.msra.mxu0 0.0
    %2380 = vmatprep.subr.mxu0 0.0
    %2381 = vmatpush1.msra.mxu0 0.0
    %2382 = vmatprep.subr.mxu0 0.0
    %2383 = vmatpush1.msra.mxu0 0.0
    %2384 = vmatprep.subr.mxu0 0.0
    %2385 = vmatpush1.msra.mxu0 0.0
    %2386 = vmatprep.subr.mxu0 0.0
    %2387 = vmatpush1.msra.mxu0 0.0
    %2388 = vmatprep.mubr.f32.mxu0 0.0
    %2389 = vmatmul.mubr.f32.gmra.mrb[0].mxu0 %v2188
    %v2390 = vpop.f32.mrb[0].mxu0
    %v2391 = vadd.f32 %v2322, %v2390
    %v2392 = vpop.f32.mrb[0].mxu0
    %2393 = vmatprep.mubr.f32.mxu0 0.0
    %2394 = vmatmul.mubr.f32.gmra.mrb[0].mxu0 %v2190
    %v2395 = vpop.f32.mrb[0].mxu0
    %v2396 = vadd.f32 %v2322, %v2395
    %v2397 = vpop.f32.mrb[0].mxu0
    %2398 = vdwg.mxu0
    %v2401 = vcombine.high %v2391, %v2391
    %v2403 = vunpack.c.l.s4 1983009808
    %v2404 = vunpack.c.0.s8 %v2403
    %v2405 = vlaneseq
    %v2406 = vshrl.u32 %v2405, 7
    %v2407 = vsub.s32 %v2404, %v2406
    %v2408 = vrot.slane %v2391, %v2407
    %v2410 = vunpack.c.l.s4 1983009808
    %v2411 = vunpack.c.0.s8 %v2410
    %v2412 = vlaneseq
    %v2413 = vshrl.u32 %v2412, 7
    %v2414 = vsub.s32 %v2411, %v2413
    %v2415 = vrot.slane %v2401, %v2414
    %v2416 = vcombine.high %v2408, %v2408
    %v2417 = vcombine.high %v2415, %v2415
    %v2418 = vcombine.high %v2396, %v2396
    %v2420 = vunpack.c.l.s4 1983009808
    %v2421 = vunpack.c.0.s8 %v2420
    %v2422 = vlaneseq
    %v2423 = vshrl.u32 %v2422, 7
    %v2424 = vsub.s32 %v2421, %v2423
    %v2425 = vrot.slane %v2396, %v2424
    %v2427 = vunpack.c.l.s4 1983009808
    %v2428 = vunpack.c.0.s8 %v2427
    %v2429 = vlaneseq
    %v2430 = vshrl.u32 %v2429, 7
    %v2431 = vsub.s32 %v2428, %v2430
    %v2432 = vrot.slane %v2418, %v2431
    %v2433 = vcombine.high %v2425, %v2425
    %v2434 = vcombine.high %v2432, %v2432
    %s2443 = scalar_lea.vmem [#allocation5], 64
    %v2444 = vld [vmem:[%s2443] sm:$0xff]
    %v2445 = vld [vmem:[%s2443 + $0x8] sm:$0xff]
    %v2446 = vld [vmem:[%s2443 + $0x10] sm:$0xff]
    %v2447 = vld [vmem:[%s2443 + $0x18] sm:$0xff]
    %s2448 = scalar_lea.vmem %s6, 2
    %v2449 = vld [vmem:[%s2448] sm:$0x1]
    %v2451 = vlaneseq
    %v2452 = vshrl.u32 %v2451, 7
    %v2453 = vsub.s32 0, %v2452
    %v2454 = vrot.slane %v2449, %v2453
    %2456 = vmatprep.subr.mxu0 0.0
    %2457 = vmatpush1.msra.mxu0 %v2444
    %2458 = vmatprep.subr.mxu0 0.0
    %2459 = vmatpush1.msra.mxu0 %v2445
    %2460 = vmatprep.subr.mxu0 0.0
    %2461 = vmatpush1.msra.mxu0 %v2446
    %2462 = vmatprep.subr.mxu0 0.0
    %2463 = vmatpush1.msra.mxu0 %v2447
    %2464 = vmatprep.subr.mxu0 0.0
    %2465 = vmatpush1.msra.mxu0 0.0
    %2466 = vmatprep.subr.mxu0 0.0
    %2467 = vmatpush1.msra.mxu0 0.0
    %2468 = vmatprep.subr.mxu0 0.0
    %2469 = vmatpush1.msra.mxu0 0.0
    %2470 = vmatprep.subr.mxu0 0.0
    %2471 = vmatpush1.msra.mxu0 0.0
    %2472 = vmatprep.subr.mxu0 0.0
    %2473 = vmatpush1.msra.mxu0 0.0
    %2474 = vmatprep.subr.mxu0 0.0
    %2475 = vmatpush1.msra.mxu0 0.0
    %2476 = vmatprep.subr.mxu0 0.0
    %2477 = vmatpush1.msra.mxu0 0.0
    %2478 = vmatprep.subr.mxu0 0.0
    %2479 = vmatpush1.msra.mxu0 0.0
    %2480 = vmatprep.subr.mxu0 0.0
    %2481 = vmatpush1.msra.mxu0 0.0
    %2482 = vmatprep.subr.mxu0 0.0
    %2483 = vmatpush1.msra.mxu0 0.0
    %2484 = vmatprep.subr.mxu0 0.0
    %2485 = vmatpush1.msra.mxu0 0.0
    %2486 = vmatprep.subr.mxu0 0.0
    %2487 = vmatpush1.msra.mxu0 0.0
    %2488 = vmatprep.subr.mxu0 0.0
    %2489 = vmatpush1.msra.mxu0 0.0
    %2490 = vmatprep.subr.mxu0 0.0
    %2491 = vmatpush1.msra.mxu0 0.0
    %2492 = vmatprep.subr.mxu0 0.0
    %2493 = vmatpush1.msra.mxu0 0.0
    %2494 = vmatprep.subr.mxu0 0.0
    %2495 = vmatpush1.msra.mxu0 0.0
    %2496 = vmatprep.subr.mxu0 0.0
    %2497 = vmatpush1.msra.mxu0 0.0
    %2498 = vmatprep.subr.mxu0 0.0
    %2499 = vmatpush1.msra.mxu0 0.0
    %2500 = vmatprep.subr.mxu0 0.0
    %2501 = vmatpush1.msra.mxu0 0.0
    %2502 = vmatprep.subr.mxu0 0.0
    %2503 = vmatpush1.msra.mxu0 0.0
    %2504 = vmatprep.subr.mxu0 0.0
    %2505 = vmatpush1.msra.mxu0 0.0
    %2506 = vmatprep.subr.mxu0 0.0
    %2507 = vmatpush1.msra.mxu0 0.0
    %2508 = vmatprep.subr.mxu0 0.0
    %2509 = vmatpush1.msra.mxu0 0.0
    %2510 = vmatprep.subr.mxu0 0.0
    %2511 = vmatpush1.msra.mxu0 0.0
    %2512 = vmatprep.subr.mxu0 0.0
    %2513 = vmatpush1.msra.mxu0 0.0
    %2514 = vmatprep.subr.mxu0 0.0
    %2515 = vmatpush1.msra.mxu0 0.0
    %2516 = vmatprep.subr.mxu0 0.0
    %2517 = vmatpush1.msra.mxu0 0.0
    %2518 = vmatprep.subr.mxu0 0.0
    %2519 = vmatpush1.msra.mxu0 0.0
    %2520 = vmatprep.mubr.f32.mxu0 0.0
    %2521 = vmatmul.mubr.f32.gmra.mrb[0].mxu0 %v2188
    %v2522 = vpop.f32.mrb[0].mxu0
    %v2523 = vadd.f32 %v2454, %v2522
    %v2524 = vpop.f32.mrb[0].mxu0
    %2525 = vmatprep.mubr.f32.mxu0 0.0
    %2526 = vmatmul.mubr.f32.gmra.mrb[0].mxu0 %v2190
    %v2527 = vpop.f32.mrb[0].mxu0
    %v2528 = vadd.f32 %v2454, %v2527
    %v2529 = vpop.f32.mrb[0].mxu0
    %2530 = vdwg.mxu0
    %v2533 = vcombine.high %v2523, %v2523
    %v2535 = vunpack.c.l.s4 1983009808
    %v2536 = vunpack.c.0.s8 %v2535
    %v2537 = vlaneseq
    %v2538 = vshrl.u32 %v2537, 7
    %v2539 = vsub.s32 %v2536, %v2538
    %v2540 = vrot.slane %v2523, %v2539
    %v2542 = vunpack.c.l.s4 1983009808
    %v2543 = vunpack.c.0.s8 %v2542
    %v2544 = vlaneseq
    %v2545 = vshrl.u32 %v2544, 7
    %v2546 = vsub.s32 %v2543, %v2545
    %v2547 = vrot.slane %v2533, %v2546
    %v2548 = vcombine.high %v2540, %v2540
    %v2549 = vcombine.high %v2547, %v2547
    %v2550 = vcombine.high %v2528, %v2528
    %v2552 = vunpack.c.l.s4 1983009808
    %v2553 = vunpack.c.0.s8 %v2552
    %v2554 = vlaneseq
    %v2555 = vshrl.u32 %v2554, 7
    %v2556 = vsub.s32 %v2553, %v2555
    %v2557 = vrot.slane %v2528, %v2556
    %v2559 = vunpack.c.l.s4 1983009808
    %v2560 = vunpack.c.0.s8 %v2559
    %v2561 = vlaneseq
    %v2562 = vshrl.u32 %v2561, 7
    %v2563 = vsub.s32 %v2560, %v2562
    %v2564 = vrot.slane %v2550, %v2563
    %v2565 = vcombine.high %v2557, %v2557
    %v2566 = vcombine.high %v2564, %v2564
    %v2575 = vld [vmem:[#allocation7] sm:$0xff]
    %v2576 = vld [vmem:[#allocation7 + $0x8] sm:$0xff]
    %v2577 = vld [vmem:[#allocation7 + $0x10] sm:$0xff]
    %v2578 = vld [vmem:[#allocation7 + $0x18] sm:$0xff]
    %s2579 = scalar_lea.vmem [#allocation7], 32
    %v2580 = vld [vmem:[%s2579] sm:$0xff]
    %v2581 = vld [vmem:[%s2579 + $0x8] sm:$0xff]
    %v2582 = vld [vmem:[%s2579 + $0x10] sm:$0xff]
    %v2583 = vld [vmem:[%s2579 + $0x18] sm:$0xff]
    %s2584 = scalar_lea.vmem [#allocation7], 64
    %v2585 = vld [vmem:[%s2584] sm:$0xff]
    %v2586 = vld [vmem:[%s2584 + $0x8] sm:$0xff]
    %v2587 = vld [vmem:[%s2584 + $0x10] sm:$0xff]
    %v2588 = vld [vmem:[%s2584 + $0x18] sm:$0xff]
    %v2589 = vld [vmem:[%s8] sm:$0x1]
    %s2590 = scalar_lea.vmem %s8, 1
    %v2591 = vld [vmem:[%s2590] sm:$0x1]
    %s2592 = scalar_lea.vmem %s8, 2
    %v2593 = vld [vmem:[%s2592] sm:$0x1]
    %v2595 = vlaneseq
    %v2596 = vshrl.u32 %v2595, 7
    %v2597 = vsub.s32 0, %v2596
    %v2598 = vrot.slane %v2589, %v2597
    %2600 = vmatprep.subr.mxu0 0.0
    %2601 = vmatpush1.msra.mxu0 %v2575
    %2602 = vmatprep.subr.mxu0 0.0
    %2603 = vmatpush1.msra.mxu0 %v2576
    %2604 = vmatprep.subr.mxu0 0.0
    %2605 = vmatpush1.msra.mxu0 %v2577
    %2606 = vmatprep.subr.mxu0 0.0
    %2607 = vmatpush1.msra.mxu0 %v2578
    %2608 = vmatprep.subr.mxu0 0.0
    %2609 = vmatpush1.msra.mxu0 0.0
    %2610 = vmatprep.subr.mxu0 0.0
    %2611 = vmatpush1.msra.mxu0 0.0
    %2612 = vmatprep.subr.mxu0 0.0
    %2613 = vmatpush1.msra.mxu0 0.0
    %2614 = vmatprep.subr.mxu0 0.0
    %2615 = vmatpush1.msra.mxu0 0.0
    %2616 = vmatprep.subr.mxu0 0.0
    %2617 = vmatpush1.msra.mxu0 0.0
    %2618 = vmatprep.subr.mxu0 0.0
    %2619 = vmatpush1.msra.mxu0 0.0
    %2620 = vmatprep.subr.mxu0 0.0
    %2621 = vmatpush1.msra.mxu0 0.0
    %2622 = vmatprep.subr.mxu0 0.0
    %2623 = vmatpush1.msra.mxu0 0.0
    %2624 = vmatprep.subr.mxu0 0.0
    %2625 = vmatpush1.msra.mxu0 0.0
    %2626 = vmatprep.subr.mxu0 0.0
    %2627 = vmatpush1.msra.mxu0 0.0
    %2628 = vmatprep.subr.mxu0 0.0
    %2629 = vmatpush1.msra.mxu0 0.0
    %2630 = vmatprep.subr.mxu0 0.0
    %2631 = vmatpush1.msra.mxu0 0.0
    %2632 = vmatprep.subr.mxu0 0.0
    %2633 = vmatpush1.msra.mxu0 0.0
    %2634 = vmatprep.subr.mxu0 0.0
    %2635 = vmatpush1.msra.mxu0 0.0
    %2636 = vmatprep.subr.mxu0 0.0
    %2637 = vmatpush1.msra.mxu0 0.0
    %2638 = vmatprep.subr.mxu0 0.0
    %2639 = vmatpush1.msra.mxu0 0.0
    %2640 = vmatprep.subr.mxu0 0.0
    %2641 = vmatpush1.msra.mxu0 0.0
    %2642 = vmatprep.subr.mxu0 0.0
    %2643 = vmatpush1.msra.mxu0 0.0
    %2644 = vmatprep.subr.mxu0 0.0
    %2645 = vmatpush1.msra.mxu0 0.0
    %2646 = vmatprep.subr.mxu0 0.0
    %2647 = vmatpush1.msra.mxu0 0.0
    %2648 = vmatprep.subr.mxu0 0.0
    %2649 = vmatpush1.msra.mxu0 0.0
    %2650 = vmatprep.subr.mxu0 0.0
    %2651 = vmatpush1.msra.mxu0 0.0
    %2652 = vmatprep.subr.mxu0 0.0
    %2653 = vmatpush1.msra.mxu0 0.0
    %2654 = vmatprep.subr.mxu0 0.0
    %2655 = vmatpush1.msra.mxu0 0.0
    %2656 = vmatprep.subr.mxu0 0.0
    %2657 = vmatpush1.msra.mxu0 0.0
    %2658 = vmatprep.subr.mxu0 0.0
    %2659 = vmatpush1.msra.mxu0 0.0
    %2660 = vmatprep.subr.mxu0 0.0
    %2661 = vmatpush1.msra.mxu0 0.0
    %2662 = vmatprep.subr.mxu0 0.0
    %2663 = vmatpush1.msra.mxu0 0.0
    %2664 = vmatprep.mubr.f32.mxu0 0.0
    %2665 = vmatmul.mubr.f32.gmra.mrb[0].mxu0 %v259
    %v2666 = vpop.f32.mrb[0].mxu0
    %v2667 = vadd.f32 %v2598, %v2666
    %v2668 = vpop.f32.mrb[0].mxu0
    %2669 = vdwg.mxu0
    %v2671 = vlaneseq
    %v2672 = vshrl.u32 %v2671, 7
    %v2673 = vsub.s32 0, %v2672
    %v2674 = vrot.slane %v2591, %v2673
    %2676 = vmatprep.subr.mxu0 0.0
    %2677 = vmatpush1.msra.mxu0 %v2580
    %2678 = vmatprep.subr.mxu0 0.0
    %2679 = vmatpush1.msra.mxu0 %v2581
    %2680 = vmatprep.subr.mxu0 0.0
    %2681 = vmatpush1.msra.mxu0 %v2582
    %2682 = vmatprep.subr.mxu0 0.0
    %2683 = vmatpush1.msra.mxu0 %v2583
    %2684 = vmatprep.subr.mxu0 0.0
    %2685 = vmatpush1.msra.mxu0 0.0
    %2686 = vmatprep.subr.mxu0 0.0
    %2687 = vmatpush1.msra.mxu0 0.0
    %2688 = vmatprep.subr.mxu0 0.0
    %2689 = vmatpush1.msra.mxu0 0.0
    %2690 = vmatprep.subr.mxu0 0.0
    %2691 = vmatpush1.msra.mxu0 0.0
    %2692 = vmatprep.subr.mxu0 0.0
    %2693 = vmatpush1.msra.mxu0 0.0
    %2694 = vmatprep.subr.mxu0 0.0
    %2695 = vmatpush1.msra.mxu0 0.0
    %2696 = vmatprep.subr.mxu0 0.0
    %2697 = vmatpush1.msra.mxu0 0.0
    %2698 = vmatprep.subr.mxu0 0.0
    %2699 = vmatpush1.msra.mxu0 0.0
    %2700 = vmatprep.subr.mxu0 0.0
    %2701 = vmatpush1.msra.mxu0 0.0
    %2702 = vmatprep.subr.mxu0 0.0
    %2703 = vmatpush1.msra.mxu0 0.0
    %2704 = vmatprep.subr.mxu0 0.0
    %2705 = vmatpush1.msra.mxu0 0.0
    %2706 = vmatprep.subr.mxu0 0.0
    %2707 = vmatpush1.msra.mxu0 0.0
    %2708 = vmatprep.subr.mxu0 0.0
    %2709 = vmatpush1.msra.mxu0 0.0
    %2710 = vmatprep.subr.mxu0 0.0
    %2711 = vmatpush1.msra.mxu0 0.0
    %2712 = vmatprep.subr.mxu0 0.0
    %2713 = vmatpush1.msra.mxu0 0.0
    %2714 = vmatprep.subr.mxu0 0.0
    %2715 = vmatpush1.msra.mxu0 0.0
    %2716 = vmatprep.subr.mxu0 0.0
    %2717 = vmatpush1.msra.mxu0 0.0
    %2718 = vmatprep.subr.mxu0 0.0
    %2719 = vmatpush1.msra.mxu0 0.0
    %2720 = vmatprep.subr.mxu0 0.0
    %2721 = vmatpush1.msra.mxu0 0.0
    %2722 = vmatprep.subr.mxu0 0.0
    %2723 = vmatpush1.msra.mxu0 0.0
    %2724 = vmatprep.subr.mxu0 0.0
    %2725 = vmatpush1.msra.mxu0 0.0
    %2726 = vmatprep.subr.mxu0 0.0
    %2727 = vmatpush1.msra.mxu0 0.0
    %2728 = vmatprep.subr.mxu0 0.0
    %2729 = vmatpush1.msra.mxu0 0.0
    %2730 = vmatprep.subr.mxu0 0.0
    %2731 = vmatpush1.msra.mxu0 0.0
    %2732 = vmatprep.subr.mxu0 0.0
    %2733 = vmatpush1.msra.mxu0 0.0
    %2734 = vmatprep.subr.mxu0 0.0
    %2735 = vmatpush1.msra.mxu0 0.0
    %2736 = vmatprep.subr.mxu0 0.0
    %2737 = vmatpush1.msra.mxu0 0.0
    %2738 = vmatprep.subr.mxu0 0.0
    %2739 = vmatpush1.msra.mxu0 0.0
    %2740 = vmatprep.mubr.f32.mxu0 0.0
    %2741 = vmatmul.mubr.f32.gmra.mrb[0].mxu0 %v259
    %v2742 = vpop.f32.mrb[0].mxu0
    %v2743 = vadd.f32 %v2674, %v2742
    %v2744 = vpop.f32.mrb[0].mxu0
    %2745 = vdwg.mxu0
    %v2747 = vlaneseq
    %v2748 = vshrl.u32 %v2747, 7
    %v2749 = vsub.s32 0, %v2748
    %v2750 = vrot.slane %v2593, %v2749
    %2752 = vmatprep.subr.mxu0 0.0
    %2753 = vmatpush1.msra.mxu0 %v2585
    %2754 = vmatprep.subr.mxu0 0.0
    %2755 = vmatpush1.msra.mxu0 %v2586
    %2756 = vmatprep.subr.mxu0 0.0
    %2757 = vmatpush1.msra.mxu0 %v2587
    %2758 = vmatprep.subr.mxu0 0.0
    %2759 = vmatpush1.msra.mxu0 %v2588
    %2760 = vmatprep.subr.mxu0 0.0
    %2761 = vmatpush1.msra.mxu0 0.0
    %2762 = vmatprep.subr.mxu0 0.0
    %2763 = vmatpush1.msra.mxu0 0.0
    %2764 = vmatprep.subr.mxu0 0.0
    %2765 = vmatpush1.msra.mxu0 0.0
    %2766 = vmatprep.subr.mxu0 0.0
    %2767 = vmatpush1.msra.mxu0 0.0
    %2768 = vmatprep.subr.mxu0 0.0
    %2769 = vmatpush1.msra.mxu0 0.0
    %2770 = vmatprep.subr.mxu0 0.0
    %2771 = vmatpush1.msra.mxu0 0.0
    %2772 = vmatprep.subr.mxu0 0.0
    %2773 = vmatpush1.msra.mxu0 0.0
    %2774 = vmatprep.subr.mxu0 0.0
    %2775 = vmatpush1.msra.mxu0 0.0
    %2776 = vmatprep.subr.mxu0 0.0
    %2777 = vmatpush1.msra.mxu0 0.0
    %2778 = vmatprep.subr.mxu0 0.0
    %2779 = vmatpush1.msra.mxu0 0.0
    %2780 = vmatprep.subr.mxu0 0.0
    %2781 = vmatpush1.msra.mxu0 0.0
    %2782 = vmatprep.subr.mxu0 0.0
    %2783 = vmatpush1.msra.mxu0 0.0
    %2784 = vmatprep.subr.mxu0 0.0
    %2785 = vmatpush1.msra.mxu0 0.0
    %2786 = vmatprep.subr.mxu0 0.0
    %2787 = vmatpush1.msra.mxu0 0.0
    %2788 = vmatprep.subr.mxu0 0.0
    %2789 = vmatpush1.msra.mxu0 0.0
    %2790 = vmatprep.subr.mxu0 0.0
    %2791 = vmatpush1.msra.mxu0 0.0
    %2792 = vmatprep.subr.mxu0 0.0
    %2793 = vmatpush1.msra.mxu0 0.0
    %2794 = vmatprep.subr.mxu0 0.0
    %2795 = vmatpush1.msra.mxu0 0.0
    %2796 = vmatprep.subr.mxu0 0.0
    %2797 = vmatpush1.msra.mxu0 0.0
    %2798 = vmatprep.subr.mxu0 0.0
    %2799 = vmatpush1.msra.mxu0 0.0
    %2800 = vmatprep.subr.mxu0 0.0
    %2801 = vmatpush1.msra.mxu0 0.0
    %2802 = vmatprep.subr.mxu0 0.0
    %2803 = vmatpush1.msra.mxu0 0.0
    %2804 = vmatprep.subr.mxu0 0.0
    %2805 = vmatpush1.msra.mxu0 0.0
    %2806 = vmatprep.subr.mxu0 0.0
    %2807 = vmatpush1.msra.mxu0 0.0
    %2808 = vmatprep.subr.mxu0 0.0
    %2809 = vmatpush1.msra.mxu0 0.0
    %2810 = vmatprep.subr.mxu0 0.0
    %2811 = vmatpush1.msra.mxu0 0.0
    %2812 = vmatprep.subr.mxu0 0.0
    %2813 = vmatpush1.msra.mxu0 0.0
    %2814 = vmatprep.subr.mxu0 0.0
    %2815 = vmatpush1.msra.mxu0 0.0
    %2816 = vmatprep.mubr.f32.mxu0 0.0
    %2817 = vmatmul.mubr.f32.gmra.mrb[0].mxu0 %v259
    %v2818 = vpop.f32.mrb[0].mxu0
    %v2819 = vadd.f32 %v2750, %v2818
    %v2820 = vpop.f32.mrb[0].mxu0
    %2821 = vdwg.mxu0
    %v2822 = vadd.f32 %v2276, %v2667
    %v2823 = vxor.u32 %v2822, 2147483648
    %v2824 = vmul.f32 %v2823, 1.442695
    %v2825 = vpow.pop %v2824
    %v2826 = vadd.f32 %v2825, 1.0
    %v2827 = vrcp.pop %v2826
    %v2828 = vmul.f32 1.0, %v2827
    %v2829 = vadd.f32 %v2408, %v2743
    %v2830 = vxor.u32 %v2829, 2147483648
    %v2831 = vmul.f32 %v2830, 1.442695
    %v2832 = vpow.pop %v2831
    %v2833 = vadd.f32 %v2832, 1.0
    %v2834 = vrcp.pop %v2833
    %v2835 = vmul.f32 1.0, %v2834
    %v2836 = vmul.f32 %v2828, %v2819
    %v2837 = vadd.f32 %v2540, %v2836
    %v2838 = vtanh.pop %v2837
    %v2839 = vsub.f32 1.0, %v2835
    %v2840 = vmul.f32 %v2839, %v2838
    %v2841 = vmul.f32 %v2835, 0.0
    %v2842 = vadd.f32 %v2840, %v2841
    %v2844 = vsel %vm257, %v2842, 0
    %2846 = vmatprep.subr.mxu0 0.0
    %2847 = vmatpush1.msra.mxu0 %v2575
    %2848 = vmatprep.subr.mxu0 0.0
    %2849 = vmatpush1.msra.mxu0 %v2576
    %2850 = vmatprep.subr.mxu0 0.0
    %2851 = vmatpush1.msra.mxu0 %v2577
    %2852 = vmatprep.subr.mxu0 0.0
    %2853 = vmatpush1.msra.mxu0 %v2578
    %2854 = vmatprep.subr.mxu0 0.0
    %2855 = vmatpush1.msra.mxu0 0.0
    %2856 = vmatprep.subr.mxu0 0.0
    %2857 = vmatpush1.msra.mxu0 0.0
    %2858 = vmatprep.subr.mxu0 0.0
    %2859 = vmatpush1.msra.mxu0 0.0
    %2860 = vmatprep.subr.mxu0 0.0
    %2861 = vmatpush1.msra.mxu0 0.0
    %2862 = vmatprep.subr.mxu0 0.0
    %2863 = vmatpush1.msra.mxu0 0.0
    %2864 = vmatprep.subr.mxu0 0.0
    %2865 = vmatpush1.msra.mxu0 0.0
    %2866 = vmatprep.subr.mxu0 0.0
    %2867 = vmatpush1.msra.mxu0 0.0
    %2868 = vmatprep.subr.mxu0 0.0
    %2869 = vmatpush1.msra.mxu0 0.0
    %2870 = vmatprep.subr.mxu0 0.0
    %2871 = vmatpush1.msra.mxu0 0.0
    %2872 = vmatprep.subr.mxu0 0.0
    %2873 = vmatpush1.msra.mxu0 0.0
    %2874 = vmatprep.subr.mxu0 0.0
    %2875 = vmatpush1.msra.mxu0 0.0
    %2876 = vmatprep.subr.mxu0 0.0
    %2877 = vmatpush1.msra.mxu0 0.0
    %2878 = vmatprep.subr.mxu0 0.0
    %2879 = vmatpush1.msra.mxu0 0.0
    %2880 = vmatprep.subr.mxu0 0.0
    %2881 = vmatpush1.msra.mxu0 0.0
    %2882 = vmatprep.subr.mxu0 0.0
    %2883 = vmatpush1.msra.mxu0 0.0
    %2884 = vmatprep.subr.mxu0 0.0
    %2885 = vmatpush1.msra.mxu0 0.0
    %2886 = vmatprep.subr.mxu0 0.0
    %2887 = vmatpush1.msra.mxu0 0.0
    %2888 = vmatprep.subr.mxu0 0.0
    %2889 = vmatpush1.msra.mxu0 0.0
    %2890 = vmatprep.subr.mxu0 0.0
    %2891 = vmatpush1.msra.mxu0 0.0
    %2892 = vmatprep.subr.mxu0 0.0
    %2893 = vmatpush1.msra.mxu0 0.0
    %2894 = vmatprep.subr.mxu0 0.0
    %2895 = vmatpush1.msra.mxu0 0.0
    %2896 = vmatprep.subr.mxu0 0.0
    %2897 = vmatpush1.msra.mxu0 0.0
    %2898 = vmatprep.subr.mxu0 0.0
    %2899 = vmatpush1.msra.mxu0 0.0
    %2900 = vmatprep.subr.mxu0 0.0
    %2901 = vmatpush1.msra.mxu0 0.0
    %2902 = vmatprep.subr.mxu0 0.0
    %2903 = vmatpush1.msra.mxu0 0.0
    %2904 = vmatprep.subr.mxu0 0.0
    %2905 = vmatpush1.msra.mxu0 0.0
    %2906 = vmatprep.subr.mxu0 0.0
    %2907 = vmatpush1.msra.mxu0 0.0
    %2908 = vmatprep.subr.mxu0 0.0
    %2909 = vmatpush1.msra.mxu0 0.0
    %2910 = vmatprep.mubr.f32.mxu0 0.0
    %2911 = vmatmul.mubr.f32.gmra.mrb[0].mxu0 %v2844
    %v2912 = vpop.f32.mrb[0].mxu0
    %v2913 = vadd.f32 %v2598, %v2912
    %v2914 = vpop.f32.mrb[0].mxu0
    %2915 = vdwg.mxu0
    %2916 = vmatprep.subr.mxu0 0.0
    %2917 = vmatpush1.msra.mxu0 %v2580
    %2918 = vmatprep.subr.mxu0 0.0
    %2919 = vmatpush1.msra.mxu0 %v2581
    %2920 = vmatprep.subr.mxu0 0.0
    %2921 = vmatpush1.msra.mxu0 %v2582
    %2922 = vmatprep.subr.mxu0 0.0
    %2923 = vmatpush1.msra.mxu0 %v2583
    %2924 = vmatprep.subr.mxu0 0.0
    %2925 = vmatpush1.msra.mxu0 0.0
    %2926 = vmatprep.subr.mxu0 0.0
    %2927 = vmatpush1.msra.mxu0 0.0
    %2928 = vmatprep.subr.mxu0 0.0
    %2929 = vmatpush1.msra.mxu0 0.0
    %2930 = vmatprep.subr.mxu0 0.0
    %2931 = vmatpush1.msra.mxu0 0.0
    %2932 = vmatprep.subr.mxu0 0.0
    %2933 = vmatpush1.msra.mxu0 0.0
    %2934 = vmatprep.subr.mxu0 0.0
    %2935 = vmatpush1.msra.mxu0 0.0
    %2936 = vmatprep.subr.mxu0 0.0
    %2937 = vmatpush1.msra.mxu0 0.0
    %2938 = vmatprep.subr.mxu0 0.0
    %2939 = vmatpush1.msra.mxu0 0.0
    %2940 = vmatprep.subr.mxu0 0.0
    %2941 = vmatpush1.msra.mxu0 0.0
    %2942 = vmatprep.subr.mxu0 0.0
    %2943 = vmatpush1.msra.mxu0 0.0
    %2944 = vmatprep.subr.mxu0 0.0
    %2945 = vmatpush1.msra.mxu0 0.0
    %2946 = vmatprep.subr.mxu0 0.0
    %2947 = vmatpush1.msra.mxu0 0.0
    %2948 = vmatprep.subr.mxu0 0.0
    %2949 = vmatpush1.msra.mxu0 0.0
    %2950 = vmatprep.subr.mxu0 0.0
    %2951 = vmatpush1.msra.mxu0 0.0
    %2952 = vmatprep.subr.mxu0 0.0
    %2953 = vmatpush1.msra.mxu0 0.0
    %2954 = vmatprep.subr.mxu0 0.0
    %2955 = vmatpush1.msra.mxu0 0.0
    %2956 = vmatprep.subr.mxu0 0.0
    %2957 = vmatpush1.msra.mxu0 0.0
    %2958 = vmatprep.subr.mxu0 0.0
    %2959 = vmatpush1.msra.mxu0 0.0
    %2960 = vmatprep.subr.mxu0 0.0
    %2961 = vmatpush1.msra.mxu0 0.0
    %2962 = vmatprep.subr.mxu0 0.0
    %2963 = vmatpush1.msra.mxu0 0.0
    %2964 = vmatprep.subr.mxu0 0.0
    %2965 = vmatpush1.msra.mxu0 0.0
    %2966 = vmatprep.subr.mxu0 0.0
    %2967 = vmatpush1.msra.mxu0 0.0
    %2968 = vmatprep.subr.mxu0 0.0
    %2969 = vmatpush1.msra.mxu0 0.0
    %2970 = vmatprep.subr.mxu0 0.0
    %2971 = vmatpush1.msra.mxu0 0.0
    %2972 = vmatprep.subr.mxu0 0.0
    %2973 = vmatpush1.msra.mxu0 0.0
    %2974 = vmatprep.subr.mxu0 0.0
    %2975 = vmatpush1.msra.mxu0 0.0
    %2976 = vmatprep.subr.mxu0 0.0
    %2977 = vmatpush1.msra.mxu0 0.0
    %2978 = vmatprep.subr.mxu0 0.0
    %2979 = vmatpush1.msra.mxu0 0.0
    %2980 = vmatprep.mubr.f32.mxu0 0.0
    %2981 = vmatmul.mubr.f32.gmra.mrb[0].mxu0 %v2844
    %v2982 = vpop.f32.mrb[0].mxu0
    %v2983 = vadd.f32 %v2674, %v2982
    %v2984 = vpop.f32.mrb[0].mxu0
    %2985 = vdwg.mxu0
    %2986 = vmatprep.subr.mxu0 0.0
    %2987 = vmatpush1.msra.mxu0 %v2585
    %2988 = vmatprep.subr.mxu0 0.0
    %2989 = vmatpush1.msra.mxu0 %v2586
    %2990 = vmatprep.subr.mxu0 0.0
    %2991 = vmatpush1.msra.mxu0 %v2587
    %2992 = vmatprep.subr.mxu0 0.0
    %2993 = vmatpush1.msra.mxu0 %v2588
    %2994 = vmatprep.subr.mxu0 0.0
    %2995 = vmatpush1.msra.mxu0 0.0
    %2996 = vmatprep.subr.mxu0 0.0
    %2997 = vmatpush1.msra.mxu0 0.0
    %2998 = vmatprep.subr.mxu0 0.0
    %2999 = vmatpush1.msra.mxu0 0.0
    %3000 = vmatprep.subr.mxu0 0.0
    %3001 = vmatpush1.msra.mxu0 0.0
    %3002 = vmatprep.subr.mxu0 0.0
    %3003 = vmatpush1.msra.mxu0 0.0
    %3004 = vmatprep.subr.mxu0 0.0
    %3005 = vmatpush1.msra.mxu0 0.0
    %3006 = vmatprep.subr.mxu0 0.0
    %3007 = vmatpush1.msra.mxu0 0.0
    %3008 = vmatprep.subr.mxu0 0.0
    %3009 = vmatpush1.msra.mxu0 0.0
    %3010 = vmatprep.subr.mxu0 0.0
    %3011 = vmatpush1.msra.mxu0 0.0
    %3012 = vmatprep.subr.mxu0 0.0
    %3013 = vmatpush1.msra.mxu0 0.0
    %3014 = vmatprep.subr.mxu0 0.0
    %3015 = vmatpush1.msra.mxu0 0.0
    %3016 = vmatprep.subr.mxu0 0.0
    %3017 = vmatpush1.msra.mxu0 0.0
    %3018 = vmatprep.subr.mxu0 0.0
    %3019 = vmatpush1.msra.mxu0 0.0
    %3020 = vmatprep.subr.mxu0 0.0
    %3021 = vmatpush1.msra.mxu0 0.0
    %3022 = vmatprep.subr.mxu0 0.0
    %3023 = vmatpush1.msra.mxu0 0.0
    %3024 = vmatprep.subr.mxu0 0.0
    %3025 = vmatpush1.msra.mxu0 0.0
    %3026 = vmatprep.subr.mxu0 0.0
    %3027 = vmatpush1.msra.mxu0 0.0
    %3028 = vmatprep.subr.mxu0 0.0
    %3029 = vmatpush1.msra.mxu0 0.0
    %3030 = vmatprep.subr.mxu0 0.0
    %3031 = vmatpush1.msra.mxu0 0.0
    %3032 = vmatprep.subr.mxu0 0.0
    %3033 = vmatpush1.msra.mxu0 0.0
    %3034 = vmatprep.subr.mxu0 0.0
    %3035 = vmatpush1.msra.mxu0 0.0
    %3036 = vmatprep.subr.mxu0 0.0
    %3037 = vmatpush1.msra.mxu0 0.0
    %3038 = vmatprep.subr.mxu0 0.0
    %3039 = vmatpush1.msra.mxu0 0.0
    %3040 = vmatprep.subr.mxu0 0.0
    %3041 = vmatpush1.msra.mxu0 0.0
    %3042 = vmatprep.subr.mxu0 0.0
    %3043 = vmatpush1.msra.mxu0 0.0
    %3044 = vmatprep.subr.mxu0 0.0
    %3045 = vmatpush1.msra.mxu0 0.0
    %3046 = vmatprep.subr.mxu0 0.0
    %3047 = vmatpush1.msra.mxu0 0.0
    %3048 = vmatprep.subr.mxu0 0.0
    %3049 = vmatpush1.msra.mxu0 0.0
    %3050 = vmatprep.mubr.f32.mxu0 0.0
    %3051 = vmatmul.mubr.f32.gmra.mrb[0].mxu0 %v2844
    %v3052 = vpop.f32.mrb[0].mxu0
    %v3053 = vadd.f32 %v2750, %v3052
    %v3054 = vpop.f32.mrb[0].mxu0
    %3055 = vdwg.mxu0
    %v3056 = vadd.f32 %v2284, %v2913
    %v3057 = vxor.u32 %v3056, 2147483648
    %v3058 = vmul.f32 %v3057, 1.442695
    %v3059 = vpow.pop %v3058
    %v3060 = vadd.f32 %v3059, 1.0
    %v3061 = vrcp.pop %v3060
    %v3062 = vmul.f32 1.0, %v3061
    %v3063 = vadd.f32 %v2416, %v2983
    %v3064 = vxor.u32 %v3063, 2147483648
    %v3065 = vmul.f32 %v3064, 1.442695
    %v3066 = vpow.pop %v3065
    %v3067 = vadd.f32 %v3066, 1.0
    %v3068 = vrcp.pop %v3067
    %v3069 = vmul.f32 1.0, %v3068
    %v3070 = vmul.f32 %v3062, %v3053
    %v3071 = vadd.f32 %v2548, %v3070
    %v3072 = vtanh.pop %v3071
    %v3073 = vsub.f32 1.0, %v3069
    %v3074 = vmul.f32 %v3073, %v3072
    %v3075 = vmul.f32 %v3069, %v2842
    %v3076 = vadd.f32 %v3074, %v3075
    %v3078 = vsel %vm257, %v3076, 0
    %3080 = vmatprep.subr.mxu0 0.0
    %3081 = vmatpush1.msra.mxu0 %v2575
    %3082 = vmatprep.subr.mxu0 0.0
    %3083 = vmatpush1.msra.mxu0 %v2576
    %3084 = vmatprep.subr.mxu0 0.0
    %3085 = vmatpush1.msra.mxu0 %v2577
    %3086 = vmatprep.subr.mxu0 0.0
    %3087 = vmatpush1.msra.mxu0 %v2578
    %3088 = vmatprep.subr.mxu0 0.0
    %3089 = vmatpush1.msra.mxu0 0.0
    %3090 = vmatprep.subr.mxu0 0.0
    %3091 = vmatpush1.msra.mxu0 0.0
    %3092 = vmatprep.subr.mxu0 0.0
    %3093 = vmatpush1.msra.mxu0 0.0
    %3094 = vmatprep.subr.mxu0 0.0
    %3095 = vmatpush1.msra.mxu0 0.0
    %3096 = vmatprep.subr.mxu0 0.0
    %3097 = vmatpush1.msra.mxu0 0.0
    %3098 = vmatprep.subr.mxu0 0.0
    %3099 = vmatpush1.msra.mxu0 0.0
    %3100 = vmatprep.subr.mxu0 0.0
    %3101 = vmatpush1.msra.mxu0 0.0
    %3102 = vmatprep.subr.mxu0 0.0
    %3103 = vmatpush1.msra.mxu0 0.0
    %3104 = vmatprep.subr.mxu0 0.0
    %3105 = vmatpush1.msra.mxu0 0.0
    %3106 = vmatprep.subr.mxu0 0.0
    %3107 = vmatpush1.msra.mxu0 0.0
    %3108 = vmatprep.subr.mxu0 0.0
    %3109 = vmatpush1.msra.mxu0 0.0
    %3110 = vmatprep.subr.mxu0 0.0
    %3111 = vmatpush1.msra.mxu0 0.0
    %3112 = vmatprep.subr.mxu0 0.0
    %3113 = vmatpush1.msra.mxu0 0.0
    %3114 = vmatprep.subr.mxu0 0.0
    %3115 = vmatpush1.msra.mxu0 0.0
    %3116 = vmatprep.subr.mxu0 0.0
    %3117 = vmatpush1.msra.mxu0 0.0
    %3118 = vmatprep.subr.mxu0 0.0
    %3119 = vmatpush1.msra.mxu0 0.0
    %3120 = vmatprep.subr.mxu0 0.0
    %3121 = vmatpush1.msra.mxu0 0.0
    %3122 = vmatprep.subr.mxu0 0.0
    %3123 = vmatpush1.msra.mxu0 0.0
    %3124 = vmatprep.subr.mxu0 0.0
    %3125 = vmatpush1.msra.mxu0 0.0
    %3126 = vmatprep.subr.mxu0 0.0
    %3127 = vmatpush1.msra.mxu0 0.0
    %3128 = vmatprep.subr.mxu0 0.0
    %3129 = vmatpush1.msra.mxu0 0.0
    %3130 = vmatprep.subr.mxu0 0.0
    %3131 = vmatpush1.msra.mxu0 0.0
    %3132 = vmatprep.subr.mxu0 0.0
    %3133 = vmatpush1.msra.mxu0 0.0
    %3134 = vmatprep.subr.mxu0 0.0
    %3135 = vmatpush1.msra.mxu0 0.0
    %3136 = vmatprep.subr.mxu0 0.0
    %3137 = vmatpush1.msra.mxu0 0.0
    %3138 = vmatprep.subr.mxu0 0.0
    %3139 = vmatpush1.msra.mxu0 0.0
    %3140 = vmatprep.subr.mxu0 0.0
    %3141 = vmatpush1.msra.mxu0 0.0
    %3142 = vmatprep.subr.mxu0 0.0
    %3143 = vmatpush1.msra.mxu0 0.0
    %3144 = vmatprep.mubr.f32.mxu0 0.0
    %3145 = vmatmul.mubr.f32.gmra.mrb[0].mxu0 %v3078
    %v3146 = vpop.f32.mrb[0].mxu0
    %v3147 = vadd.f32 %v2598, %v3146
    %v3148 = vpop.f32.mrb[0].mxu0
    %3149 = vdwg.mxu0
    %3150 = vmatprep.subr.mxu0 0.0
    %3151 = vmatpush1.msra.mxu0 %v2580
    %3152 = vmatprep.subr.mxu0 0.0
    %3153 = vmatpush1.msra.mxu0 %v2581
    %3154 = vmatprep.subr.mxu0 0.0
    %3155 = vmatpush1.msra.mxu0 %v2582
    %3156 = vmatprep.subr.mxu0 0.0
    %3157 = vmatpush1.msra.mxu0 %v2583
    %3158 = vmatprep.subr.mxu0 0.0
    %3159 = vmatpush1.msra.mxu0 0.0
    %3160 = vmatprep.subr.mxu0 0.0
    %3161 = vmatpush1.msra.mxu0 0.0
    %3162 = vmatprep.subr.mxu0 0.0
    %3163 = vmatpush1.msra.mxu0 0.0
    %3164 = vmatprep.subr.mxu0 0.0
    %3165 = vmatpush1.msra.mxu0 0.0
    %3166 = vmatprep.subr.mxu0 0.0
    %3167 = vmatpush1.msra.mxu0 0.0
    %3168 = vmatprep.subr.mxu0 0.0
    %3169 = vmatpush1.msra.mxu0 0.0
    %3170 = vmatprep.subr.mxu0 0.0
    %3171 = vmatpush1.msra.mxu0 0.0
    %3172 = vmatprep.subr.mxu0 0.0
    %3173 = vmatpush1.msra.mxu0 0.0
    %3174 = vmatprep.subr.mxu0 0.0
    %3175 = vmatpush1.msra.mxu0 0.0
    %3176 = vmatprep.subr.mxu0 0.0
    %3177 = vmatpush1.msra.mxu0 0.0
    %3178 = vmatprep.subr.mxu0 0.0
    %3179 = vmatpush1.msra.mxu0 0.0
    %3180 = vmatprep.subr.mxu0 0.0
    %3181 = vmatpush1.msra.mxu0 0.0
    %3182 = vmatprep.subr.mxu0 0.0
    %3183 = vmatpush1.msra.mxu0 0.0
    %3184 = vmatprep.subr.mxu0 0.0
    %3185 = vmatpush1.msra.mxu0 0.0
    %3186 = vmatprep.subr.mxu0 0.0
    %3187 = vmatpush1.msra.mxu0 0.0
    %3188 = vmatprep.subr.mxu0 0.0
    %3189 = vmatpush1.msra.mxu0 0.0
    %3190 = vmatprep.subr.mxu0 0.0
    %3191 = vmatpush1.msra.mxu0 0.0
    %3192 = vmatprep.subr.mxu0 0.0
    %3193 = vmatpush1.msra.mxu0 0.0
    %3194 = vmatprep.subr.mxu0 0.0
    %3195 = vmatpush1.msra.mxu0 0.0
    %3196 = vmatprep.subr.mxu0 0.0
    %3197 = vmatpush1.msra.mxu0 0.0
    %3198 = vmatprep.subr.mxu0 0.0
    %3199 = vmatpush1.msra.mxu0 0.0
    %3200 = vmatprep.subr.mxu0 0.0
    %3201 = vmatpush1.msra.mxu0 0.0
    %3202 = vmatprep.subr.mxu0 0.0
    %3203 = vmatpush1.msra.mxu0 0.0
    %3204 = vmatprep.subr.mxu0 0.0
    %3205 = vmatpush1.msra.mxu0 0.0
    %3206 = vmatprep.subr.mxu0 0.0
    %3207 = vmatpush1.msra.mxu0 0.0
    %3208 = vmatprep.subr.mxu0 0.0
    %3209 = vmatpush1.msra.mxu0 0.0
    %3210 = vmatprep.subr.mxu0 0.0
    %3211 = vmatpush1.msra.mxu0 0.0
    %3212 = vmatprep.subr.mxu0 0.0
    %3213 = vmatpush1.msra.mxu0 0.0
    %3214 = vmatprep.mubr.f32.mxu0 0.0
    %3215 = vmatmul.mubr.f32.gmra.mrb[0].mxu0 %v3078
    %v3216 = vpop.f32.mrb[0].mxu0
    %v3217 = vadd.f32 %v2674, %v3216
    %v3218 = vpop.f32.mrb[0].mxu0
    %3219 = vdwg.mxu0
    %3220 = vmatprep.subr.mxu0 0.0
    %3221 = vmatpush1.msra.mxu0 %v2585
    %3222 = vmatprep.subr.mxu0 0.0
    %3223 = vmatpush1.msra.mxu0 %v2586
    %3224 = vmatprep.subr.mxu0 0.0
    %3225 = vmatpush1.msra.mxu0 %v2587
    %3226 = vmatprep.subr.mxu0 0.0
    %3227 = vmatpush1.msra.mxu0 %v2588
    %3228 = vmatprep.subr.mxu0 0.0
    %3229 = vmatpush1.msra.mxu0 0.0
    %3230 = vmatprep.subr.mxu0 0.0
    %3231 = vmatpush1.msra.mxu0 0.0
    %3232 = vmatprep.subr.mxu0 0.0
    %3233 = vmatpush1.msra.mxu0 0.0
    %3234 = vmatprep.subr.mxu0 0.0
    %3235 = vmatpush1.msra.mxu0 0.0
    %3236 = vmatprep.subr.mxu0 0.0
    %3237 = vmatpush1.msra.mxu0 0.0
    %3238 = vmatprep.subr.mxu0 0.0
    %3239 = vmatpush1.msra.mxu0 0.0
    %3240 = vmatprep.subr.mxu0 0.0
    %3241 = vmatpush1.msra.mxu0 0.0
    %3242 = vmatprep.subr.mxu0 0.0
    %3243 = vmatpush1.msra.mxu0 0.0
    %3244 = vmatprep.subr.mxu0 0.0
    %3245 = vmatpush1.msra.mxu0 0.0
    %3246 = vmatprep.subr.mxu0 0.0
    %3247 = vmatpush1.msra.mxu0 0.0
    %3248 = vmatprep.subr.mxu0 0.0
    %3249 = vmatpush1.msra.mxu0 0.0
    %3250 = vmatprep.subr.mxu0 0.0
    %3251 = vmatpush1.msra.mxu0 0.0
    %3252 = vmatprep.subr.mxu0 0.0
    %3253 = vmatpush1.msra.mxu0 0.0
    %3254 = vmatprep.subr.mxu0 0.0
    %3255 = vmatpush1.msra.mxu0 0.0
    %3256 = vmatprep.subr.mxu0 0.0
    %3257 = vmatpush1.msra.mxu0 0.0
    %3258 = vmatprep.subr.mxu0 0.0
    %3259 = vmatpush1.msra.mxu0 0.0
    %3260 = vmatprep.subr.mxu0 0.0
    %3261 = vmatpush1.msra.mxu0 0.0
    %3262 = vmatprep.subr.mxu0 0.0
    %3263 = vmatpush1.msra.mxu0 0.0
    %3264 = vmatprep.subr.mxu0 0.0
    %3265 = vmatpush1.msra.mxu0 0.0
    %3266 = vmatprep.subr.mxu0 0.0
    %3267 = vmatpush1.msra.mxu0 0.0
    %3268 = vmatprep.subr.mxu0 0.0
    %3269 = vmatpush1.msra.mxu0 0.0
    %3270 = vmatprep.subr.mxu0 0.0
    %3271 = vmatpush1.msra.mxu0 0.0
    %3272 = vmatprep.subr.mxu0 0.0
    %3273 = vmatpush1.msra.mxu0 0.0
    %3274 = vmatprep.subr.mxu0 0.0
    %3275 = vmatpush1.msra.mxu0 0.0
    %3276 = vmatprep.subr.mxu0 0.0
    %3277 = vmatpush1.msra.mxu0 0.0
    %3278 = vmatprep.subr.mxu0 0.0
    %3279 = vmatpush1.msra.mxu0 0.0
    %3280 = vmatprep.subr.mxu0 0.0
    %3281 = vmatpush1.msra.mxu0 0.0
    %3282 = vmatprep.subr.mxu0 0.0
    %3283 = vmatpush1.msra.mxu0 0.0
    %3284 = vmatprep.mubr.f32.mxu0 0.0
    %3285 = vmatmul.mubr.f32.gmra.mrb[0].mxu0 %v3078
    %v3286 = vpop.f32.mrb[0].mxu0
    %v3287 = vadd.f32 %v2750, %v3286
    %v3288 = vpop.f32.mrb[0].mxu0
    %3289 = vdwg.mxu0
    %v3290 = vadd.f32 %v2283, %v3147
    %v3291 = vxor.u32 %v3290, 2147483648
    %v3292 = vmul.f32 %v3291, 1.442695
    %v3293 = vpow.pop %v3292
    %v3294 = vadd.f32 %v3293, 1.0
    %v3295 = vrcp.pop %v3294
    %v3296 = vmul.f32 1.0, %v3295
    %v3297 = vadd.f32 %v2415, %v3217
    %v3298 = vxor.u32 %v3297, 2147483648
    %v3299 = vmul.f32 %v3298, 1.442695
    %v3300 = vpow.pop %v3299
    %v3301 = vadd.f32 %v3300, 1.0
    %v3302 = vrcp.pop %v3301
    %v3303 = vmul.f32 1.0, %v3302
    %v3304 = vmul.f32 %v3296, %v3287
    %v3305 = vadd.f32 %v2547, %v3304
    %v3306 = vtanh.pop %v3305
    %v3307 = vsub.f32 1.0, %v3303
    %v3308 = vmul.f32 %v3307, %v3306
    %v3309 = vmul.f32 %v3303, %v3076
    %v3310 = vadd.f32 %v3308, %v3309
    %v3312 = vsel %vm257, %v3310, 0
    %3314 = vmatprep.subr.mxu0 0.0
    %3315 = vmatpush1.msra.mxu0 %v2575
    %3316 = vmatprep.subr.mxu0 0.0
    %3317 = vmatpush1.msra.mxu0 %v2576
    %3318 = vmatprep.subr.mxu0 0.0
    %3319 = vmatpush1.msra.mxu0 %v2577
    %3320 = vmatprep.subr.mxu0 0.0
    %3321 = vmatpush1.msra.mxu0 %v2578
    %3322 = vmatprep.subr.mxu0 0.0
    %3323 = vmatpush1.msra.mxu0 0.0
    %3324 = vmatprep.subr.mxu0 0.0
    %3325 = vmatpush1.msra.mxu0 0.0
    %3326 = vmatprep.subr.mxu0 0.0
    %3327 = vmatpush1.msra.mxu0 0.0
    %3328 = vmatprep.subr.mxu0 0.0
    %3329 = vmatpush1.msra.mxu0 0.0
    %3330 = vmatprep.subr.mxu0 0.0
    %3331 = vmatpush1.msra.mxu0 0.0
    %3332 = vmatprep.subr.mxu0 0.0
    %3333 = vmatpush1.msra.mxu0 0.0
    %3334 = vmatprep.subr.mxu0 0.0
    %3335 = vmatpush1.msra.mxu0 0.0
    %3336 = vmatprep.subr.mxu0 0.0
    %3337 = vmatpush1.msra.mxu0 0.0
    %3338 = vmatprep.subr.mxu0 0.0
    %3339 = vmatpush1.msra.mxu0 0.0
    %3340 = vmatprep.subr.mxu0 0.0
    %3341 = vmatpush1.msra.mxu0 0.0
    %3342 = vmatprep.subr.mxu0 0.0
    %3343 = vmatpush1.msra.mxu0 0.0
    %3344 = vmatprep.subr.mxu0 0.0
    %3345 = vmatpush1.msra.mxu0 0.0
    %3346 = vmatprep.subr.mxu0 0.0
    %3347 = vmatpush1.msra.mxu0 0.0
    %3348 = vmatprep.subr.mxu0 0.0
    %3349 = vmatpush1.msra.mxu0 0.0
    %3350 = vmatprep.subr.mxu0 0.0
    %3351 = vmatpush1.msra.mxu0 0.0
    %3352 = vmatprep.subr.mxu0 0.0
    %3353 = vmatpush1.msra.mxu0 0.0
    %3354 = vmatprep.subr.mxu0 0.0
    %3355 = vmatpush1.msra.mxu0 0.0
    %3356 = vmatprep.subr.mxu0 0.0
    %3357 = vmatpush1.msra.mxu0 0.0
    %3358 = vmatprep.subr.mxu0 0.0
    %3359 = vmatpush1.msra.mxu0 0.0
    %3360 = vmatprep.subr.mxu0 0.0
    %3361 = vmatpush1.msra.mxu0 0.0
    %3362 = vmatprep.subr.mxu0 0.0
    %3363 = vmatpush1.msra.mxu0 0.0
    %3364 = vmatprep.subr.mxu0 0.0
    %3365 = vmatpush1.msra.mxu0 0.0
    %3366 = vmatprep.subr.mxu0 0.0
    %3367 = vmatpush1.msra.mxu0 0.0
    %3368 = vmatprep.subr.mxu0 0.0
    %3369 = vmatpush1.msra.mxu0 0.0
    %3370 = vmatprep.subr.mxu0 0.0
    %3371 = vmatpush1.msra.mxu0 0.0
    %3372 = vmatprep.subr.mxu0 0.0
    %3373 = vmatpush1.msra.mxu0 0.0
    %3374 = vmatprep.subr.mxu0 0.0
    %3375 = vmatpush1.msra.mxu0 0.0
    %3376 = vmatprep.subr.mxu0 0.0
    %3377 = vmatpush1.msra.mxu0 0.0
    %3378 = vmatprep.mubr.f32.mxu0 0.0
    %3379 = vmatmul.mubr.f32.gmra.mrb[0].mxu0 %v3312
    %v3380 = vpop.f32.mrb[0].mxu0
    %v3381 = vadd.f32 %v2598, %v3380
    %v3382 = vpop.f32.mrb[0].mxu0
    %3383 = vdwg.mxu0
    %3384 = vmatprep.subr.mxu0 0.0
    %3385 = vmatpush1.msra.mxu0 %v2580
    %3386 = vmatprep.subr.mxu0 0.0
    %3387 = vmatpush1.msra.mxu0 %v2581
    %3388 = vmatprep.subr.mxu0 0.0
    %3389 = vmatpush1.msra.mxu0 %v2582
    %3390 = vmatprep.subr.mxu0 0.0
    %3391 = vmatpush1.msra.mxu0 %v2583
    %3392 = vmatprep.subr.mxu0 0.0
    %3393 = vmatpush1.msra.mxu0 0.0
    %3394 = vmatprep.subr.mxu0 0.0
    %3395 = vmatpush1.msra.mxu0 0.0
    %3396 = vmatprep.subr.mxu0 0.0
    %3397 = vmatpush1.msra.mxu0 0.0
    %3398 = vmatprep.subr.mxu0 0.0
    %3399 = vmatpush1.msra.mxu0 0.0
    %3400 = vmatprep.subr.mxu0 0.0
    %3401 = vmatpush1.msra.mxu0 0.0
    %3402 = vmatprep.subr.mxu0 0.0
    %3403 = vmatpush1.msra.mxu0 0.0
    %3404 = vmatprep.subr.mxu0 0.0
    %3405 = vmatpush1.msra.mxu0 0.0
    %3406 = vmatprep.subr.mxu0 0.0
    %3407 = vmatpush1.msra.mxu0 0.0
    %3408 = vmatprep.subr.mxu0 0.0
    %3409 = vmatpush1.msra.mxu0 0.0
    %3410 = vmatprep.subr.mxu0 0.0
    %3411 = vmatpush1.msra.mxu0 0.0
    %3412 = vmatprep.subr.mxu0 0.0
    %3413 = vmatpush1.msra.mxu0 0.0
    %3414 = vmatprep.subr.mxu0 0.0
    %3415 = vmatpush1.msra.mxu0 0.0
    %3416 = vmatprep.subr.mxu0 0.0
    %3417 = vmatpush1.msra.mxu0 0.0
    %3418 = vmatprep.subr.mxu0 0.0
    %3419 = vmatpush1.msra.mxu0 0.0
    %3420 = vmatprep.subr.mxu0 0.0
    %3421 = vmatpush1.msra.mxu0 0.0
    %3422 = vmatprep.subr.mxu0 0.0
    %3423 = vmatpush1.msra.mxu0 0.0
    %3424 = vmatprep.subr.mxu0 0.0
    %3425 = vmatpush1.msra.mxu0 0.0
    %3426 = vmatprep.subr.mxu0 0.0
    %3427 = vmatpush1.msra.mxu0 0.0
    %3428 = vmatprep.subr.mxu0 0.0
    %3429 = vmatpush1.msra.mxu0 0.0
    %3430 = vmatprep.subr.mxu0 0.0
    %3431 = vmatpush1.msra.mxu0 0.0
    %3432 = vmatprep.subr.mxu0 0.0
    %3433 = vmatpush1.msra.mxu0 0.0
    %3434 = vmatprep.subr.mxu0 0.0
    %3435 = vmatpush1.msra.mxu0 0.0
    %3436 = vmatprep.subr.mxu0 0.0
    %3437 = vmatpush1.msra.mxu0 0.0
    %3438 = vmatprep.subr.mxu0 0.0
    %3439 = vmatpush1.msra.mxu0 0.0
    %3440 = vmatprep.subr.mxu0 0.0
    %3441 = vmatpush1.msra.mxu0 0.0
    %3442 = vmatprep.subr.mxu0 0.0
    %3443 = vmatpush1.msra.mxu0 0.0
    %3444 = vmatprep.subr.mxu0 0.0
    %3445 = vmatpush1.msra.mxu0 0.0
    %3446 = vmatprep.subr.mxu0 0.0
    %3447 = vmatpush1.msra.mxu0 0.0
    %3448 = vmatprep.mubr.f32.mxu0 0.0
    %3449 = vmatmul.mubr.f32.gmra.mrb[0].mxu0 %v3312
    %v3450 = vpop.f32.mrb[0].mxu0
    %v3451 = vadd.f32 %v2674, %v3450
    %v3452 = vpop.f32.mrb[0].mxu0
    %3453 = vdwg.mxu0
    %3454 = vmatprep.subr.mxu0 0.0
    %3455 = vmatpush1.msra.mxu0 %v2585
    %3456 = vmatprep.subr.mxu0 0.0
    %3457 = vmatpush1.msra.mxu0 %v2586
    %3458 = vmatprep.subr.mxu0 0.0
    %3459 = vmatpush1.msra.mxu0 %v2587
    %3460 = vmatprep.subr.mxu0 0.0
    %3461 = vmatpush1.msra.mxu0 %v2588
    %3462 = vmatprep.subr.mxu0 0.0
    %3463 = vmatpush1.msra.mxu0 0.0
    %3464 = vmatprep.subr.mxu0 0.0
    %3465 = vmatpush1.msra.mxu0 0.0
    %3466 = vmatprep.subr.mxu0 0.0
    %3467 = vmatpush1.msra.mxu0 0.0
    %3468 = vmatprep.subr.mxu0 0.0
    %3469 = vmatpush1.msra.mxu0 0.0
    %3470 = vmatprep.subr.mxu0 0.0
    %3471 = vmatpush1.msra.mxu0 0.0
    %3472 = vmatprep.subr.mxu0 0.0
    %3473 = vmatpush1.msra.mxu0 0.0
    %3474 = vmatprep.subr.mxu0 0.0
    %3475 = vmatpush1.msra.mxu0 0.0
    %3476 = vmatprep.subr.mxu0 0.0
    %3477 = vmatpush1.msra.mxu0 0.0
    %3478 = vmatprep.subr.mxu0 0.0
    %3479 = vmatpush1.msra.mxu0 0.0
    %3480 = vmatprep.subr.mxu0 0.0
    %3481 = vmatpush1.msra.mxu0 0.0
    %3482 = vmatprep.subr.mxu0 0.0
    %3483 = vmatpush1.msra.mxu0 0.0
    %3484 = vmatprep.subr.mxu0 0.0
    %3485 = vmatpush1.msra.mxu0 0.0
    %3486 = vmatprep.subr.mxu0 0.0
    %3487 = vmatpush1.msra.mxu0 0.0
    %3488 = vmatprep.subr.mxu0 0.0
    %3489 = vmatpush1.msra.mxu0 0.0
    %3490 = vmatprep.subr.mxu0 0.0
    %3491 = vmatpush1.msra.mxu0 0.0
    %3492 = vmatprep.subr.mxu0 0.0
    %3493 = vmatpush1.msra.mxu0 0.0
    %3494 = vmatprep.subr.mxu0 0.0
    %3495 = vmatpush1.msra.mxu0 0.0
    %3496 = vmatprep.subr.mxu0 0.0
    %3497 = vmatpush1.msra.mxu0 0.0
    %3498 = vmatprep.subr.mxu0 0.0
    %3499 = vmatpush1.msra.mxu0 0.0
    %3500 = vmatprep.subr.mxu0 0.0
    %3501 = vmatpush1.msra.mxu0 0.0
    %3502 = vmatprep.subr.mxu0 0.0
    %3503 = vmatpush1.msra.mxu0 0.0
    %3504 = vmatprep.subr.mxu0 0.0
    %3505 = vmatpush1.msra.mxu0 0.0
    %3506 = vmatprep.subr.mxu0 0.0
    %3507 = vmatpush1.msra.mxu0 0.0
    %3508 = vmatprep.subr.mxu0 0.0
    %3509 = vmatpush1.msra.mxu0 0.0
    %3510 = vmatprep.subr.mxu0 0.0
    %3511 = vmatpush1.msra.mxu0 0.0
    %3512 = vmatprep.subr.mxu0 0.0
    %3513 = vmatpush1.msra.mxu0 0.0
    %3514 = vmatprep.subr.mxu0 0.0
    %3515 = vmatpush1.msra.mxu0 0.0
    %3516 = vmatprep.subr.mxu0 0.0
    %3517 = vmatpush1.msra.mxu0 0.0
    %3518 = vmatprep.mubr.f32.mxu0 0.0
    %3519 = vmatmul.mubr.f32.gmra.mrb[0].mxu0 %v3312
    %v3520 = vpop.f32.mrb[0].mxu0
    %v3521 = vadd.f32 %v2750, %v3520
    %v3522 = vpop.f32.mrb[0].mxu0
    %3523 = vdwg.mxu0
    %v3524 = vadd.f32 %v2285, %v3381
    %v3525 = vxor.u32 %v3524, 2147483648
    %v3526 = vmul.f32 %v3525, 1.442695
    %v3527 = vpow.pop %v3526
    %v3528 = vadd.f32 %v3527, 1.0
    %v3529 = vrcp.pop %v3528
    %v3530 = vmul.f32 1.0, %v3529
    %v3531 = vadd.f32 %v2417, %v3451
    %v3532 = vxor.u32 %v3531, 2147483648
    %v3533 = vmul.f32 %v3532, 1.442695
    %v3534 = vpow.pop %v3533
    %v3535 = vadd.f32 %v3534, 1.0
    %v3536 = vrcp.pop %v3535
    %v3537 = vmul.f32 1.0, %v3536
    %v3538 = vmul.f32 %v3530, %v3521
    %v3539 = vadd.f32 %v2549, %v3538
    %v3540 = vtanh.pop %v3539
    %v3541 = vsub.f32 1.0, %v3537
    %v3542 = vmul.f32 %v3541, %v3540
    %v3543 = vmul.f32 %v3537, %v3310
    %v3544 = vadd.f32 %v3542, %v3543
    %v3546 = vsel %vm257, %v3544, 0
    %3548 = vmatprep.subr.mxu0 0.0
    %3549 = vmatpush1.msra.mxu0 %v2575
    %3550 = vmatprep.subr.mxu0 0.0
    %3551 = vmatpush1.msra.mxu0 %v2576
    %3552 = vmatprep.subr.mxu0 0.0
    %3553 = vmatpush1.msra.mxu0 %v2577
    %3554 = vmatprep.subr.mxu0 0.0
    %3555 = vmatpush1.msra.mxu0 %v2578
    %3556 = vmatprep.subr.mxu0 0.0
    %3557 = vmatpush1.msra.mxu0 0.0
    %3558 = vmatprep.subr.mxu0 0.0
    %3559 = vmatpush1.msra.mxu0 0.0
    %3560 = vmatprep.subr.mxu0 0.0
    %3561 = vmatpush1.msra.mxu0 0.0
    %3562 = vmatprep.subr.mxu0 0.0
    %3563 = vmatpush1.msra.mxu0 0.0
    %3564 = vmatprep.subr.mxu0 0.0
    %3565 = vmatpush1.msra.mxu0 0.0
    %3566 = vmatprep.subr.mxu0 0.0
    %3567 = vmatpush1.msra.mxu0 0.0
    %3568 = vmatprep.subr.mxu0 0.0
    %3569 = vmatpush1.msra.mxu0 0.0
    %3570 = vmatprep.subr.mxu0 0.0
    %3571 = vmatpush1.msra.mxu0 0.0
    %3572 = vmatprep.subr.mxu0 0.0
    %3573 = vmatpush1.msra.mxu0 0.0
    %3574 = vmatprep.subr.mxu0 0.0
    %3575 = vmatpush1.msra.mxu0 0.0
    %3576 = vmatprep.subr.mxu0 0.0
    %3577 = vmatpush1.msra.mxu0 0.0
    %3578 = vmatprep.subr.mxu0 0.0
    %3579 = vmatpush1.msra.mxu0 0.0
    %3580 = vmatprep.subr.mxu0 0.0
    %3581 = vmatpush1.msra.mxu0 0.0
    %3582 = vmatprep.subr.mxu0 0.0
    %3583 = vmatpush1.msra.mxu0 0.0
    %3584 = vmatprep.subr.mxu0 0.0
    %3585 = vmatpush1.msra.mxu0 0.0
    %3586 = vmatprep.subr.mxu0 0.0
    %3587 = vmatpush1.msra.mxu0 0.0
    %3588 = vmatprep.subr.mxu0 0.0
    %3589 = vmatpush1.msra.mxu0 0.0
    %3590 = vmatprep.subr.mxu0 0.0
    %3591 = vmatpush1.msra.mxu0 0.0
    %3592 = vmatprep.subr.mxu0 0.0
    %3593 = vmatpush1.msra.mxu0 0.0
    %3594 = vmatprep.subr.mxu0 0.0
    %3595 = vmatpush1.msra.mxu0 0.0
    %3596 = vmatprep.subr.mxu0 0.0
    %3597 = vmatpush1.msra.mxu0 0.0
    %3598 = vmatprep.subr.mxu0 0.0
    %3599 = vmatpush1.msra.mxu0 0.0
    %3600 = vmatprep.subr.mxu0 0.0
    %3601 = vmatpush1.msra.mxu0 0.0
    %3602 = vmatprep.subr.mxu0 0.0
    %3603 = vmatpush1.msra.mxu0 0.0
    %3604 = vmatprep.subr.mxu0 0.0
    %3605 = vmatpush1.msra.mxu0 0.0
    %3606 = vmatprep.subr.mxu0 0.0
    %3607 = vmatpush1.msra.mxu0 0.0
    %3608 = vmatprep.subr.mxu0 0.0
    %3609 = vmatpush1.msra.mxu0 0.0
    %3610 = vmatprep.subr.mxu0 0.0
    %3611 = vmatpush1.msra.mxu0 0.0
    %3612 = vmatprep.mubr.f32.mxu0 0.0
    %3613 = vmatmul.mubr.f32.gmra.mrb[0].mxu0 %v3546
    %v3614 = vpop.f32.mrb[0].mxu0
    %v3615 = vadd.f32 %v2598, %v3614
    %v3616 = vpop.f32.mrb[0].mxu0
    %3617 = vdwg.mxu0
    %3618 = vmatprep.subr.mxu0 0.0
    %3619 = vmatpush1.msra.mxu0 %v2580
    %3620 = vmatprep.subr.mxu0 0.0
    %3621 = vmatpush1.msra.mxu0 %v2581
    %3622 = vmatprep.subr.mxu0 0.0
    %3623 = vmatpush1.msra.mxu0 %v2582
    %3624 = vmatprep.subr.mxu0 0.0
    %3625 = vmatpush1.msra.mxu0 %v2583
    %3626 = vmatprep.subr.mxu0 0.0
    %3627 = vmatpush1.msra.mxu0 0.0
    %3628 = vmatprep.subr.mxu0 0.0
    %3629 = vmatpush1.msra.mxu0 0.0
    %3630 = vmatprep.subr.mxu0 0.0
    %3631 = vmatpush1.msra.mxu0 0.0
    %3632 = vmatprep.subr.mxu0 0.0
    %3633 = vmatpush1.msra.mxu0 0.0
    %3634 = vmatprep.subr.mxu0 0.0
    %3635 = vmatpush1.msra.mxu0 0.0
    %3636 = vmatprep.subr.mxu0 0.0
    %3637 = vmatpush1.msra.mxu0 0.0
    %3638 = vmatprep.subr.mxu0 0.0
    %3639 = vmatpush1.msra.mxu0 0.0
    %3640 = vmatprep.subr.mxu0 0.0
    %3641 = vmatpush1.msra.mxu0 0.0
    %3642 = vmatprep.subr.mxu0 0.0
    %3643 = vmatpush1.msra.mxu0 0.0
    %3644 = vmatprep.subr.mxu0 0.0
    %3645 = vmatpush1.msra.mxu0 0.0
    %3646 = vmatprep.subr.mxu0 0.0
    %3647 = vmatpush1.msra.mxu0 0.0
    %3648 = vmatprep.subr.mxu0 0.0
    %3649 = vmatpush1.msra.mxu0 0.0
    %3650 = vmatprep.subr.mxu0 0.0
    %3651 = vmatpush1.msra.mxu0 0.0
    %3652 = vmatprep.subr.mxu0 0.0
    %3653 = vmatpush1.msra.mxu0 0.0
    %3654 = vmatprep.subr.mxu0 0.0
    %3655 = vmatpush1.msra.mxu0 0.0
    %3656 = vmatprep.subr.mxu0 0.0
    %3657 = vmatpush1.msra.mxu0 0.0
    %3658 = vmatprep.subr.mxu0 0.0
    %3659 = vmatpush1.msra.mxu0 0.0
    %3660 = vmatprep.subr.mxu0 0.0
    %3661 = vmatpush1.msra.mxu0 0.0
    %3662 = vmatprep.subr.mxu0 0.0
    %3663 = vmatpush1.msra.mxu0 0.0
    %3664 = vmatprep.subr.mxu0 0.0
    %3665 = vmatpush1.msra.mxu0 0.0
    %3666 = vmatprep.subr.mxu0 0.0
    %3667 = vmatpush1.msra.mxu0 0.0
    %3668 = vmatprep.subr.mxu0 0.0
    %3669 = vmatpush1.msra.mxu0 0.0
    %3670 = vmatprep.subr.mxu0 0.0
    %3671 = vmatpush1.msra.mxu0 0.0
    %3672 = vmatprep.subr.mxu0 0.0
    %3673 = vmatpush1.msra.mxu0 0.0
    %3674 = vmatprep.subr.mxu0 0.0
    %3675 = vmatpush1.msra.mxu0 0.0
    %3676 = vmatprep.subr.mxu0 0.0
    %3677 = vmatpush1.msra.mxu0 0.0
    %3678 = vmatprep.subr.mxu0 0.0
    %3679 = vmatpush1.msra.mxu0 0.0
    %3680 = vmatprep.subr.mxu0 0.0
    %3681 = vmatpush1.msra.mxu0 0.0
    %3682 = vmatprep.mubr.f32.mxu0 0.0
    %3683 = vmatmul.mubr.f32.gmra.mrb[0].mxu0 %v3546
    %v3684 = vpop.f32.mrb[0].mxu0
    %v3685 = vadd.f32 %v2674, %v3684
    %v3686 = vpop.f32.mrb[0].mxu0
    %3687 = vdwg.mxu0
    %3688 = vmatprep.subr.mxu0 0.0
    %3689 = vmatpush1.msra.mxu0 %v2585
    %3690 = vmatprep.subr.mxu0 0.0
    %3691 = vmatpush1.msra.mxu0 %v2586
    %3692 = vmatprep.subr.mxu0 0.0
    %3693 = vmatpush1.msra.mxu0 %v2587
    %3694 = vmatprep.subr.mxu0 0.0
    %3695 = vmatpush1.msra.mxu0 %v2588
    %3696 = vmatprep.subr.mxu0 0.0
    %3697 = vmatpush1.msra.mxu0 0.0
    %3698 = vmatprep.subr.mxu0 0.0
    %3699 = vmatpush1.msra.mxu0 0.0
    %3700 = vmatprep.subr.mxu0 0.0
    %3701 = vmatpush1.msra.mxu0 0.0
    %3702 = vmatprep.subr.mxu0 0.0
    %3703 = vmatpush1.msra.mxu0 0.0
    %3704 = vmatprep.subr.mxu0 0.0
    %3705 = vmatpush1.msra.mxu0 0.0
    %3706 = vmatprep.subr.mxu0 0.0
    %3707 = vmatpush1.msra.mxu0 0.0
    %3708 = vmatprep.subr.mxu0 0.0
    %3709 = vmatpush1.msra.mxu0 0.0
    %3710 = vmatprep.subr.mxu0 0.0
    %3711 = vmatpush1.msra.mxu0 0.0
    %3712 = vmatprep.subr.mxu0 0.0
    %3713 = vmatpush1.msra.mxu0 0.0
    %3714 = vmatprep.subr.mxu0 0.0
    %3715 = vmatpush1.msra.mxu0 0.0
    %3716 = vmatprep.subr.mxu0 0.0
    %3717 = vmatpush1.msra.mxu0 0.0
    %3718 = vmatprep.subr.mxu0 0.0
    %3719 = vmatpush1.msra.mxu0 0.0
    %3720 = vmatprep.subr.mxu0 0.0
    %3721 = vmatpush1.msra.mxu0 0.0
    %3722 = vmatprep.subr.mxu0 0.0
    %3723 = vmatpush1.msra.mxu0 0.0
    %3724 = vmatprep.subr.mxu0 0.0
    %3725 = vmatpush1.msra.mxu0 0.0
    %3726 = vmatprep.subr.mxu0 0.0
    %3727 = vmatpush1.msra.mxu0 0.0
    %3728 = vmatprep.subr.mxu0 0.0
    %3729 = vmatpush1.msra.mxu0 0.0
    %3730 = vmatprep.subr.mxu0 0.0
    %3731 = vmatpush1.msra.mxu0 0.0
    %3732 = vmatprep.subr.mxu0 0.0
    %3733 = vmatpush1.msra.mxu0 0.0
    %3734 = vmatprep.subr.mxu0 0.0
    %3735 = vmatpush1.msra.mxu0 0.0
    %3736 = vmatprep.subr.mxu0 0.0
    %3737 = vmatpush1.msra.mxu0 0.0
    %3738 = vmatprep.subr.mxu0 0.0
    %3739 = vmatpush1.msra.mxu0 0.0
    %3740 = vmatprep.subr.mxu0 0.0
    %3741 = vmatpush1.msra.mxu0 0.0
    %3742 = vmatprep.subr.mxu0 0.0
    %3743 = vmatpush1.msra.mxu0 0.0
    %3744 = vmatprep.subr.mxu0 0.0
    %3745 = vmatpush1.msra.mxu0 0.0
    %3746 = vmatprep.subr.mxu0 0.0
    %3747 = vmatpush1.msra.mxu0 0.0
    %3748 = vmatprep.subr.mxu0 0.0
    %3749 = vmatpush1.msra.mxu0 0.0
    %3750 = vmatprep.subr.mxu0 0.0
    %3751 = vmatpush1.msra.mxu0 0.0
    %3752 = vmatprep.mubr.f32.mxu0 0.0
    %3753 = vmatmul.mubr.f32.gmra.mrb[0].mxu0 %v3546
    %v3754 = vpop.f32.mrb[0].mxu0
    %v3755 = vadd.f32 %v2750, %v3754
    %v3756 = vpop.f32.mrb[0].mxu0
    %3757 = vdwg.mxu0
    %v3758 = vadd.f32 %v2293, %v3615
    %v3759 = vxor.u32 %v3758, 2147483648
    %v3760 = vmul.f32 %v3759, 1.442695
    %v3761 = vpow.pop %v3760
    %v3762 = vadd.f32 %v3761, 1.0
    %v3763 = vrcp.pop %v3762
    %v3764 = vmul.f32 1.0, %v3763
    %v3765 = vadd.f32 %v2425, %v3685
    %v3766 = vxor.u32 %v3765, 2147483648
    %v3767 = vmul.f32 %v3766, 1.442695
    %v3768 = vpow.pop %v3767
    %v3769 = vadd.f32 %v3768, 1.0
    %v3770 = vrcp.pop %v3769
    %v3771 = vmul.f32 1.0, %v3770
    %v3772 = vmul.f32 %v3764, %v3755
    %v3773 = vadd.f32 %v2557, %v3772
    %v3774 = vtanh.pop %v3773
    %v3775 = vsub.f32 1.0, %v3771
    %v3776 = vmul.f32 %v3775, %v3774
    %v3777 = vmul.f32 %v3771, %v3544
    %v3778 = vadd.f32 %v3776, %v3777
    %v3780 = vsel %vm257, %v3778, 0
    %3782 = vmatprep.subr.mxu0 0.0
    %3783 = vmatpush1.msra.mxu0 %v2575
    %3784 = vmatprep.subr.mxu0 0.0
    %3785 = vmatpush1.msra.mxu0 %v2576
    %3786 = vmatprep.subr.mxu0 0.0
    %3787 = vmatpush1.msra.mxu0 %v2577
    %3788 = vmatprep.subr.mxu0 0.0
    %3789 = vmatpush1.msra.mxu0 %v2578
    %3790 = vmatprep.subr.mxu0 0.0
    %3791 = vmatpush1.msra.mxu0 0.0
    %3792 = vmatprep.subr.mxu0 0.0
    %3793 = vmatpush1.msra.mxu0 0.0
    %3794 = vmatprep.subr.mxu0 0.0
    %3795 = vmatpush1.msra.mxu0 0.0
    %3796 = vmatprep.subr.mxu0 0.0
    %3797 = vmatpush1.msra.mxu0 0.0
    %3798 = vmatprep.subr.mxu0 0.0
    %3799 = vmatpush1.msra.mxu0 0.0
    %3800 = vmatprep.subr.mxu0 0.0
    %3801 = vmatpush1.msra.mxu0 0.0
    %3802 = vmatprep.subr.mxu0 0.0
    %3803 = vmatpush1.msra.mxu0 0.0
    %3804 = vmatprep.subr.mxu0 0.0
    %3805 = vmatpush1.msra.mxu0 0.0
    %3806 = vmatprep.subr.mxu0 0.0
    %3807 = vmatpush1.msra.mxu0 0.0
    %3808 = vmatprep.subr.mxu0 0.0
    %3809 = vmatpush1.msra.mxu0 0.0
    %3810 = vmatprep.subr.mxu0 0.0
    %3811 = vmatpush1.msra.mxu0 0.0
    %3812 = vmatprep.subr.mxu0 0.0
    %3813 = vmatpush1.msra.mxu0 0.0
    %3814 = vmatprep.subr.mxu0 0.0
    %3815 = vmatpush1.msra.mxu0 0.0
    %3816 = vmatprep.subr.mxu0 0.0
    %3817 = vmatpush1.msra.mxu0 0.0
    %3818 = vmatprep.subr.mxu0 0.0
    %3819 = vmatpush1.msra.mxu0 0.0
    %3820 = vmatprep.subr.mxu0 0.0
    %3821 = vmatpush1.msra.mxu0 0.0
    %3822 = vmatprep.subr.mxu0 0.0
    %3823 = vmatpush1.msra.mxu0 0.0
    %3824 = vmatprep.subr.mxu0 0.0
    %3825 = vmatpush1.msra.mxu0 0.0
    %3826 = vmatprep.subr.mxu0 0.0
    %3827 = vmatpush1.msra.mxu0 0.0
    %3828 = vmatprep.subr.mxu0 0.0
    %3829 = vmatpush1.msra.mxu0 0.0
    %3830 = vmatprep.subr.mxu0 0.0
    %3831 = vmatpush1.msra.mxu0 0.0
    %3832 = vmatprep.subr.mxu0 0.0
    %3833 = vmatpush1.msra.mxu0 0.0
    %3834 = vmatprep.subr.mxu0 0.0
    %3835 = vmatpush1.msra.mxu0 0.0
    %3836 = vmatprep.subr.mxu0 0.0
    %3837 = vmatpush1.msra.mxu0 0.0
    %3838 = vmatprep.subr.mxu0 0.0
    %3839 = vmatpush1.msra.mxu0 0.0
    %3840 = vmatprep.subr.mxu0 0.0
    %3841 = vmatpush1.msra.mxu0 0.0
    %3842 = vmatprep.subr.mxu0 0.0
    %3843 = vmatpush1.msra.mxu0 0.0
    %3844 = vmatprep.subr.mxu0 0.0
    %3845 = vmatpush1.msra.mxu0 0.0
    %3846 = vmatprep.mubr.f32.mxu0 0.0
    %3847 = vmatmul.mubr.f32.gmra.mrb[0].mxu0 %v3780
    %v3848 = vpop.f32.mrb[0].mxu0
    %v3849 = vadd.f32 %v2598, %v3848
    %v3850 = vpop.f32.mrb[0].mxu0
    %3851 = vdwg.mxu0
    %3852 = vmatprep.subr.mxu0 0.0
    %3853 = vmatpush1.msra.mxu0 %v2580
    %3854 = vmatprep.subr.mxu0 0.0
    %3855 = vmatpush1.msra.mxu0 %v2581
    %3856 = vmatprep.subr.mxu0 0.0
    %3857 = vmatpush1.msra.mxu0 %v2582
    %3858 = vmatprep.subr.mxu0 0.0
    %3859 = vmatpush1.msra.mxu0 %v2583
    %3860 = vmatprep.subr.mxu0 0.0
    %3861 = vmatpush1.msra.mxu0 0.0
    %3862 = vmatprep.subr.mxu0 0.0
    %3863 = vmatpush1.msra.mxu0 0.0
    %3864 = vmatprep.subr.mxu0 0.0
    %3865 = vmatpush1.msra.mxu0 0.0
    %3866 = vmatprep.subr.mxu0 0.0
    %3867 = vmatpush1.msra.mxu0 0.0
    %3868 = vmatprep.subr.mxu0 0.0
    %3869 = vmatpush1.msra.mxu0 0.0
    %3870 = vmatprep.subr.mxu0 0.0
    %3871 = vmatpush1.msra.mxu0 0.0
    %3872 = vmatprep.subr.mxu0 0.0
    %3873 = vmatpush1.msra.mxu0 0.0
    %3874 = vmatprep.subr.mxu0 0.0
    %3875 = vmatpush1.msra.mxu0 0.0
    %3876 = vmatprep.subr.mxu0 0.0
    %3877 = vmatpush1.msra.mxu0 0.0
    %3878 = vmatprep.subr.mxu0 0.0
    %3879 = vmatpush1.msra.mxu0 0.0
    %3880 = vmatprep.subr.mxu0 0.0
    %3881 = vmatpush1.msra.mxu0 0.0
    %3882 = vmatprep.subr.mxu0 0.0
    %3883 = vmatpush1.msra.mxu0 0.0
    %3884 = vmatprep.subr.mxu0 0.0
    %3885 = vmatpush1.msra.mxu0 0.0
    %3886 = vmatprep.subr.mxu0 0.0
    %3887 = vmatpush1.msra.mxu0 0.0
    %3888 = vmatprep.subr.mxu0 0.0
    %3889 = vmatpush1.msra.mxu0 0.0
    %3890 = vmatprep.subr.mxu0 0.0
    %3891 = vmatpush1.msra.mxu0 0.0
    %3892 = vmatprep.subr.mxu0 0.0
    %3893 = vmatpush1.msra.mxu0 0.0
    %3894 = vmatprep.subr.mxu0 0.0
    %3895 = vmatpush1.msra.mxu0 0.0
    %3896 = vmatprep.subr.mxu0 0.0
    %3897 = vmatpush1.msra.mxu0 0.0
    %3898 = vmatprep.subr.mxu0 0.0
    %3899 = vmatpush1.msra.mxu0 0.0
    %3900 = vmatprep.subr.mxu0 0.0
    %3901 = vmatpush1.msra.mxu0 0.0
    %3902 = vmatprep.subr.mxu0 0.0
    %3903 = vmatpush1.msra.mxu0 0.0
    %3904 = vmatprep.subr.mxu0 0.0
    %3905 = vmatpush1.msra.mxu0 0.0
    %3906 = vmatprep.subr.mxu0 0.0
    %3907 = vmatpush1.msra.mxu0 0.0
    %3908 = vmatprep.subr.mxu0 0.0
    %3909 = vmatpush1.msra.mxu0 0.0
    %3910 = vmatprep.subr.mxu0 0.0
    %3911 = vmatpush1.msra.mxu0 0.0
    %3912 = vmatprep.subr.mxu0 0.0
    %3913 = vmatpush1.msra.mxu0 0.0
    %3914 = vmatprep.subr.mxu0 0.0
    %3915 = vmatpush1.msra.mxu0 0.0
    %3916 = vmatprep.mubr.f32.mxu0 0.0
    %3917 = vmatmul.mubr.f32.gmra.mrb[0].mxu0 %v3780
    %v3918 = vpop.f32.mrb[0].mxu0
    %v3919 = vadd.f32 %v2674, %v3918
    %v3920 = vpop.f32.mrb[0].mxu0
    %3921 = vdwg.mxu0
    %3922 = vmatprep.subr.mxu0 0.0
    %3923 = vmatpush1.msra.mxu0 %v2585
    %3924 = vmatprep.subr.mxu0 0.0
    %3925 = vmatpush1.msra.mxu0 %v2586
    %3926 = vmatprep.subr.mxu0 0.0
    %3927 = vmatpush1.msra.mxu0 %v2587
    %3928 = vmatprep.subr.mxu0 0.0
    %3929 = vmatpush1.msra.mxu0 %v2588
    %3930 = vmatprep.subr.mxu0 0.0
    %3931 = vmatpush1.msra.mxu0 0.0
    %3932 = vmatprep.subr.mxu0 0.0
    %3933 = vmatpush1.msra.mxu0 0.0
    %3934 = vmatprep.subr.mxu0 0.0
    %3935 = vmatpush1.msra.mxu0 0.0
    %3936 = vmatprep.subr.mxu0 0.0
    %3937 = vmatpush1.msra.mxu0 0.0
    %3938 = vmatprep.subr.mxu0 0.0
    %3939 = vmatpush1.msra.mxu0 0.0
    %3940 = vmatprep.subr.mxu0 0.0
    %3941 = vmatpush1.msra.mxu0 0.0
    %3942 = vmatprep.subr.mxu0 0.0
    %3943 = vmatpush1.msra.mxu0 0.0
    %3944 = vmatprep.subr.mxu0 0.0
    %3945 = vmatpush1.msra.mxu0 0.0
    %3946 = vmatprep.subr.mxu0 0.0
    %3947 = vmatpush1.msra.mxu0 0.0
    %3948 = vmatprep.subr.mxu0 0.0
    %3949 = vmatpush1.msra.mxu0 0.0
    %3950 = vmatprep.subr.mxu0 0.0
    %3951 = vmatpush1.msra.mxu0 0.0
    %3952 = vmatprep.subr.mxu0 0.0
    %3953 = vmatpush1.msra.mxu0 0.0
    %3954 = vmatprep.subr.mxu0 0.0
    %3955 = vmatpush1.msra.mxu0 0.0
    %3956 = vmatprep.subr.mxu0 0.0
    %3957 = vmatpush1.msra.mxu0 0.0
    %3958 = vmatprep.subr.mxu0 0.0
    %3959 = vmatpush1.msra.mxu0 0.0
    %3960 = vmatprep.subr.mxu0 0.0
    %3961 = vmatpush1.msra.mxu0 0.0
    %3962 = vmatprep.subr.mxu0 0.0
    %3963 = vmatpush1.msra.mxu0 0.0
    %3964 = vmatprep.subr.mxu0 0.0
    %3965 = vmatpush1.msra.mxu0 0.0
    %3966 = vmatprep.subr.mxu0 0.0
    %3967 = vmatpush1.msra.mxu0 0.0
    %3968 = vmatprep.subr.mxu0 0.0
    %3969 = vmatpush1.msra.mxu0 0.0
    %3970 = vmatprep.subr.mxu0 0.0
    %3971 = vmatpush1.msra.mxu0 0.0
    %3972 = vmatprep.subr.mxu0 0.0
    %3973 = vmatpush1.msra.mxu0 0.0
    %3974 = vmatprep.subr.mxu0 0.0
    %3975 = vmatpush1.msra.mxu0 0.0
    %3976 = vmatprep.subr.mxu0 0.0
    %3977 = vmatpush1.msra.mxu0 0.0
    %3978 = vmatprep.subr.mxu0 0.0
    %3979 = vmatpush1.msra.mxu0 0.0
    %3980 = vmatprep.subr.mxu0 0.0
    %3981 = vmatpush1.msra.mxu0 0.0
    %3982 = vmatprep.subr.mxu0 0.0
    %3983 = vmatpush1.msra.mxu0 0.0
    %3984 = vmatprep.subr.mxu0 0.0
    %3985 = vmatpush1.msra.mxu0 0.0
    %3986 = vmatprep.mubr.f32.mxu0 0.0
    %3987 = vmatmul.mubr.f32.gmra.mrb[0].mxu0 %v3780
    %v3988 = vpop.f32.mrb[0].mxu0
    %v3989 = vadd.f32 %v2750, %v3988
    %v3990 = vpop.f32.mrb[0].mxu0
    %3991 = vdwg.mxu0
    %v3992 = vadd.f32 %v2301, %v3849
    %v3993 = vxor.u32 %v3992, 2147483648
    %v3994 = vmul.f32 %v3993, 1.442695
    %v3995 = vpow.pop %v3994
    %v3996 = vadd.f32 %v3995, 1.0
    %v3997 = vrcp.pop %v3996
    %v3998 = vmul.f32 1.0, %v3997
    %v3999 = vadd.f32 %v2433, %v3919
    %v4000 = vxor.u32 %v3999, 2147483648
    %v4001 = vmul.f32 %v4000, 1.442695
    %v4002 = vpow.pop %v4001
    %v4003 = vadd.f32 %v4002, 1.0
    %v4004 = vrcp.pop %v4003
    %v4005 = vmul.f32 1.0, %v4004
    %v4006 = vmul.f32 %v3998, %v3989
    %v4007 = vadd.f32 %v2565, %v4006
    %v4008 = vtanh.pop %v4007
    %v4009 = vsub.f32 1.0, %v4005
    %v4010 = vmul.f32 %v4009, %v4008
    %v4011 = vmul.f32 %v4005, %v3778
    %v4012 = vadd.f32 %v4010, %v4011
    %v4014 = vsel %vm257, %v4012, 0
    %4016 = vmatprep.subr.mxu0 0.0
    %4017 = vmatpush1.msra.mxu0 %v2575
    %4018 = vmatprep.subr.mxu0 0.0
    %4019 = vmatpush1.msra.mxu0 %v2576
    %4020 = vmatprep.subr.mxu0 0.0
    %4021 = vmatpush1.msra.mxu0 %v2577
    %4022 = vmatprep.subr.mxu0 0.0
    %4023 = vmatpush1.msra.mxu0 %v2578
    %4024 = vmatprep.subr.mxu0 0.0
    %4025 = vmatpush1.msra.mxu0 0.0
    %4026 = vmatprep.subr.mxu0 0.0
    %4027 = vmatpush1.msra.mxu0 0.0
    %4028 = vmatprep.subr.mxu0 0.0
    %4029 = vmatpush1.msra.mxu0 0.0
    %4030 = vmatprep.subr.mxu0 0.0
    %4031 = vmatpush1.msra.mxu0 0.0
    %4032 = vmatprep.subr.mxu0 0.0
    %4033 = vmatpush1.msra.mxu0 0.0
    %4034 = vmatprep.subr.mxu0 0.0
    %4035 = vmatpush1.msra.mxu0 0.0
    %4036 = vmatprep.subr.mxu0 0.0
    %4037 = vmatpush1.msra.mxu0 0.0
    %4038 = vmatprep.subr.mxu0 0.0
    %4039 = vmatpush1.msra.mxu0 0.0
    %4040 = vmatprep.subr.mxu0 0.0
    %4041 = vmatpush1.msra.mxu0 0.0
    %4042 = vmatprep.subr.mxu0 0.0
    %4043 = vmatpush1.msra.mxu0 0.0
    %4044 = vmatprep.subr.mxu0 0.0
    %4045 = vmatpush1.msra.mxu0 0.0
    %4046 = vmatprep.subr.mxu0 0.0
    %4047 = vmatpush1.msra.mxu0 0.0
    %4048 = vmatprep.subr.mxu0 0.0
    %4049 = vmatpush1.msra.mxu0 0.0
    %4050 = vmatprep.subr.mxu0 0.0
    %4051 = vmatpush1.msra.mxu0 0.0
    %4052 = vmatprep.subr.mxu0 0.0
    %4053 = vmatpush1.msra.mxu0 0.0
    %4054 = vmatprep.subr.mxu0 0.0
    %4055 = vmatpush1.msra.mxu0 0.0
    %4056 = vmatprep.subr.mxu0 0.0
    %4057 = vmatpush1.msra.mxu0 0.0
    %4058 = vmatprep.subr.mxu0 0.0
    %4059 = vmatpush1.msra.mxu0 0.0
    %4060 = vmatprep.subr.mxu0 0.0
    %4061 = vmatpush1.msra.mxu0 0.0
    %4062 = vmatprep.subr.mxu0 0.0
    %4063 = vmatpush1.msra.mxu0 0.0
    %4064 = vmatprep.subr.mxu0 0.0
    %4065 = vmatpush1.msra.mxu0 0.0
    %4066 = vmatprep.subr.mxu0 0.0
    %4067 = vmatpush1.msra.mxu0 0.0
    %4068 = vmatprep.subr.mxu0 0.0
    %4069 = vmatpush1.msra.mxu0 0.0
    %4070 = vmatprep.subr.mxu0 0.0
    %4071 = vmatpush1.msra.mxu0 0.0
    %4072 = vmatprep.subr.mxu0 0.0
    %4073 = vmatpush1.msra.mxu0 0.0
    %4074 = vmatprep.subr.mxu0 0.0
    %4075 = vmatpush1.msra.mxu0 0.0
    %4076 = vmatprep.subr.mxu0 0.0
    %4077 = vmatpush1.msra.mxu0 0.0
    %4078 = vmatprep.subr.mxu0 0.0
    %4079 = vmatpush1.msra.mxu0 0.0
    %4080 = vmatprep.mubr.f32.mxu0 0.0
    %4081 = vmatmul.mubr.f32.gmra.mrb[0].mxu0 %v4014
    %v4082 = vpop.f32.mrb[0].mxu0
    %v4083 = vadd.f32 %v2598, %v4082
    %v4084 = vpop.f32.mrb[0].mxu0
    %4085 = vdwg.mxu0
    %4086 = vmatprep.subr.mxu0 0.0
    %4087 = vmatpush1.msra.mxu0 %v2580
    %4088 = vmatprep.subr.mxu0 0.0
    %4089 = vmatpush1.msra.mxu0 %v2581
    %4090 = vmatprep.subr.mxu0 0.0
    %4091 = vmatpush1.msra.mxu0 %v2582
    %4092 = vmatprep.subr.mxu0 0.0
    %4093 = vmatpush1.msra.mxu0 %v2583
    %4094 = vmatprep.subr.mxu0 0.0
    %4095 = vmatpush1.msra.mxu0 0.0
    %4096 = vmatprep.subr.mxu0 0.0
    %4097 = vmatpush1.msra.mxu0 0.0
    %4098 = vmatprep.subr.mxu0 0.0
    %4099 = vmatpush1.msra.mxu0 0.0
    %4100 = vmatprep.subr.mxu0 0.0
    %4101 = vmatpush1.msra.mxu0 0.0
    %4102 = vmatprep.subr.mxu0 0.0
    %4103 = vmatpush1.msra.mxu0 0.0
    %4104 = vmatprep.subr.mxu0 0.0
    %4105 = vmatpush1.msra.mxu0 0.0
    %4106 = vmatprep.subr.mxu0 0.0
    %4107 = vmatpush1.msra.mxu0 0.0
    %4108 = vmatprep.subr.mxu0 0.0
    %4109 = vmatpush1.msra.mxu0 0.0
    %4110 = vmatprep.subr.mxu0 0.0
    %4111 = vmatpush1.msra.mxu0 0.0
    %4112 = vmatprep.subr.mxu0 0.0
    %4113 = vmatpush1.msra.mxu0 0.0
    %4114 = vmatprep.subr.mxu0 0.0
    %4115 = vmatpush1.msra.mxu0 0.0
    %4116 = vmatprep.subr.mxu0 0.0
    %4117 = vmatpush1.msra.mxu0 0.0
    %4118 = vmatprep.subr.mxu0 0.0
    %4119 = vmatpush1.msra.mxu0 0.0
    %4120 = vmatprep.subr.mxu0 0.0
    %4121 = vmatpush1.msra.mxu0 0.0
    %4122 = vmatprep.subr.mxu0 0.0
    %4123 = vmatpush1.msra.mxu0 0.0
    %4124 = vmatprep.subr.mxu0 0.0
    %4125 = vmatpush1.msra.mxu0 0.0
    %4126 = vmatprep.subr.mxu0 0.0
    %4127 = vmatpush1.msra.mxu0 0.0
    %4128 = vmatprep.subr.mxu0 0.0
    %4129 = vmatpush1.msra.mxu0 0.0
    %4130 = vmatprep.subr.mxu0 0.0
    %4131 = vmatpush1.msra.mxu0 0.0
    %4132 = vmatprep.subr.mxu0 0.0
    %4133 = vmatpush1.msra.mxu0 0.0
    %4134 = vmatprep.subr.mxu0 0.0
    %4135 = vmatpush1.msra.mxu0 0.0
    %4136 = vmatprep.subr.mxu0 0.0
    %4137 = vmatpush1.msra.mxu0 0.0
    %4138 = vmatprep.subr.mxu0 0.0
    %4139 = vmatpush1.msra.mxu0 0.0
    %4140 = vmatprep.subr.mxu0 0.0
    %4141 = vmatpush1.msra.mxu0 0.0
    %4142 = vmatprep.subr.mxu0 0.0
    %4143 = vmatpush1.msra.mxu0 0.0
    %4144 = vmatprep.subr.mxu0 0.0
    %4145 = vmatpush1.msra.mxu0 0.0
    %4146 = vmatprep.subr.mxu0 0.0
    %4147 = vmatpush1.msra.mxu0 0.0
    %4148 = vmatprep.subr.mxu0 0.0
    %4149 = vmatpush1.msra.mxu0 0.0
    %4150 = vmatprep.mubr.f32.mxu0 0.0
    %4151 = vmatmul.mubr.f32.gmra.mrb[0].mxu0 %v4014
    %v4152 = vpop.f32.mrb[0].mxu0
    %v4153 = vadd.f32 %v2674, %v4152
    %v4154 = vpop.f32.mrb[0].mxu0
    %4155 = vdwg.mxu0
    %4156 = vmatprep.subr.mxu0 0.0
    %4157 = vmatpush1.msra.mxu0 %v2585
    %4158 = vmatprep.subr.mxu0 0.0
    %4159 = vmatpush1.msra.mxu0 %v2586
    %4160 = vmatprep.subr.mxu0 0.0
    %4161 = vmatpush1.msra.mxu0 %v2587
    %4162 = vmatprep.subr.mxu0 0.0
    %4163 = vmatpush1.msra.mxu0 %v2588
    %4164 = vmatprep.subr.mxu0 0.0
    %4165 = vmatpush1.msra.mxu0 0.0
    %4166 = vmatprep.subr.mxu0 0.0
    %4167 = vmatpush1.msra.mxu0 0.0
    %4168 = vmatprep.subr.mxu0 0.0
    %4169 = vmatpush1.msra.mxu0 0.0
    %4170 = vmatprep.subr.mxu0 0.0
    %4171 = vmatpush1.msra.mxu0 0.0
    %4172 = vmatprep.subr.mxu0 0.0
    %4173 = vmatpush1.msra.mxu0 0.0
    %4174 = vmatprep.subr.mxu0 0.0
    %4175 = vmatpush1.msra.mxu0 0.0
    %4176 = vmatprep.subr.mxu0 0.0
    %4177 = vmatpush1.msra.mxu0 0.0
    %4178 = vmatprep.subr.mxu0 0.0
    %4179 = vmatpush1.msra.mxu0 0.0
    %4180 = vmatprep.subr.mxu0 0.0
    %4181 = vmatpush1.msra.mxu0 0.0
    %4182 = vmatprep.subr.mxu0 0.0
    %4183 = vmatpush1.msra.mxu0 0.0
    %4184 = vmatprep.subr.mxu0 0.0
    %4185 = vmatpush1.msra.mxu0 0.0
    %4186 = vmatprep.subr.mxu0 0.0
    %4187 = vmatpush1.msra.mxu0 0.0
    %4188 = vmatprep.subr.mxu0 0.0
    %4189 = vmatpush1.msra.mxu0 0.0
    %4190 = vmatprep.subr.mxu0 0.0
    %4191 = vmatpush1.msra.mxu0 0.0
    %4192 = vmatprep.subr.mxu0 0.0
    %4193 = vmatpush1.msra.mxu0 0.0
    %4194 = vmatprep.subr.mxu0 0.0
    %4195 = vmatpush1.msra.mxu0 0.0
    %4196 = vmatprep.subr.mxu0 0.0
    %4197 = vmatpush1.msra.mxu0 0.0
    %4198 = vmatprep.subr.mxu0 0.0
    %4199 = vmatpush1.msra.mxu0 0.0
    %4200 = vmatprep.subr.mxu0 0.0
    %4201 = vmatpush1.msra.mxu0 0.0
    %4202 = vmatprep.subr.mxu0 0.0
    %4203 = vmatpush1.msra.mxu0 0.0
    %4204 = vmatprep.subr.mxu0 0.0
    %4205 = vmatpush1.msra.mxu0 0.0
    %4206 = vmatprep.subr.mxu0 0.0
    %4207 = vmatpush1.msra.mxu0 0.0
    %4208 = vmatprep.subr.mxu0 0.0
    %4209 = vmatpush1.msra.mxu0 0.0
    %4210 = vmatprep.subr.mxu0 0.0
    %4211 = vmatpush1.msra.mxu0 0.0
    %4212 = vmatprep.subr.mxu0 0.0
    %4213 = vmatpush1.msra.mxu0 0.0
    %4214 = vmatprep.subr.mxu0 0.0
    %4215 = vmatpush1.msra.mxu0 0.0
    %4216 = vmatprep.subr.mxu0 0.0
    %4217 = vmatpush1.msra.mxu0 0.0
    %4218 = vmatprep.subr.mxu0 0.0
    %4219 = vmatpush1.msra.mxu0 0.0
    %4220 = vmatprep.mubr.f32.mxu0 0.0
    %4221 = vmatmul.mubr.f32.gmra.mrb[0].mxu0 %v4014
    %v4222 = vpop.f32.mrb[0].mxu0
    %v4223 = vadd.f32 %v2750, %v4222
    %v4224 = vpop.f32.mrb[0].mxu0
    %4225 = vdwg.mxu0
    %v4226 = vadd.f32 %v2300, %v4083
    %v4227 = vxor.u32 %v4226, 2147483648
    %v4228 = vmul.f32 %v4227, 1.442695
    %v4229 = vpow.pop %v4228
    %v4230 = vadd.f32 %v4229, 1.0
    %v4231 = vrcp.pop %v4230
    %v4232 = vmul.f32 1.0, %v4231
    %v4233 = vadd.f32 %v2432, %v4153
    %v4234 = vxor.u32 %v4233, 2147483648
    %v4235 = vmul.f32 %v4234, 1.442695
    %v4236 = vpow.pop %v4235
    %v4237 = vadd.f32 %v4236, 1.0
    %v4238 = vrcp.pop %v4237
    %v4239 = vmul.f32 1.0, %v4238
    %v4240 = vmul.f32 %v4232, %v4223
    %v4241 = vadd.f32 %v2564, %v4240
    %v4242 = vtanh.pop %v4241
    %v4243 = vsub.f32 1.0, %v4239
    %v4244 = vmul.f32 %v4243, %v4242
    %v4245 = vmul.f32 %v4239, %v4012
    %v4246 = vadd.f32 %v4244, %v4245
    %v4248 = vsel %vm257, %v4246, 0
    %4250 = vmatprep.subr.mxu0 0.0
    %4251 = vmatpush1.msra.mxu0 %v2575
    %4252 = vmatprep.subr.mxu0 0.0
    %4253 = vmatpush1.msra.mxu0 %v2576
    %4254 = vmatprep.subr.mxu0 0.0
    %4255 = vmatpush1.msra.mxu0 %v2577
    %4256 = vmatprep.subr.mxu0 0.0
    %4257 = vmatpush1.msra.mxu0 %v2578
    %4258 = vmatprep.subr.mxu0 0.0
    %4259 = vmatpush1.msra.mxu0 0.0
    %4260 = vmatprep.subr.mxu0 0.0
    %4261 = vmatpush1.msra.mxu0 0.0
    %4262 = vmatprep.subr.mxu0 0.0
    %4263 = vmatpush1.msra.mxu0 0.0
    %4264 = vmatprep.subr.mxu0 0.0
    %4265 = vmatpush1.msra.mxu0 0.0
    %4266 = vmatprep.subr.mxu0 0.0
    %4267 = vmatpush1.msra.mxu0 0.0
    %4268 = vmatprep.subr.mxu0 0.0
    %4269 = vmatpush1.msra.mxu0 0.0
    %4270 = vmatprep.subr.mxu0 0.0
    %4271 = vmatpush1.msra.mxu0 0.0
    %4272 = vmatprep.subr.mxu0 0.0
    %4273 = vmatpush1.msra.mxu0 0.0
    %4274 = vmatprep.subr.mxu0 0.0
    %4275 = vmatpush1.msra.mxu0 0.0
    %4276 = vmatprep.subr.mxu0 0.0
    %4277 = vmatpush1.msra.mxu0 0.0
    %4278 = vmatprep.subr.mxu0 0.0
    %4279 = vmatpush1.msra.mxu0 0.0
    %4280 = vmatprep.subr.mxu0 0.0
    %4281 = vmatpush1.msra.mxu0 0.0
    %4282 = vmatprep.subr.mxu0 0.0
    %4283 = vmatpush1.msra.mxu0 0.0
    %4284 = vmatprep.subr.mxu0 0.0
    %4285 = vmatpush1.msra.mxu0 0.0
    %4286 = vmatprep.subr.mxu0 0.0
    %4287 = vmatpush1.msra.mxu0 0.0
    %4288 = vmatprep.subr.mxu0 0.0
    %4289 = vmatpush1.msra.mxu0 0.0
    %4290 = vmatprep.subr.mxu0 0.0
    %4291 = vmatpush1.msra.mxu0 0.0
    %4292 = vmatprep.subr.mxu0 0.0
    %4293 = vmatpush1.msra.mxu0 0.0
    %4294 = vmatprep.subr.mxu0 0.0
    %4295 = vmatpush1.msra.mxu0 0.0
    %4296 = vmatprep.subr.mxu0 0.0
    %4297 = vmatpush1.msra.mxu0 0.0
    %4298 = vmatprep.subr.mxu0 0.0
    %4299 = vmatpush1.msra.mxu0 0.0
    %4300 = vmatprep.subr.mxu0 0.0
    %4301 = vmatpush1.msra.mxu0 0.0
    %4302 = vmatprep.subr.mxu0 0.0
    %4303 = vmatpush1.msra.mxu0 0.0
    %4304 = vmatprep.subr.mxu0 0.0
    %4305 = vmatpush1.msra.mxu0 0.0
    %4306 = vmatprep.subr.mxu0 0.0
    %4307 = vmatpush1.msra.mxu0 0.0
    %4308 = vmatprep.subr.mxu0 0.0
    %4309 = vmatpush1.msra.mxu0 0.0
    %4310 = vmatprep.subr.mxu0 0.0
    %4311 = vmatpush1.msra.mxu0 0.0
    %4312 = vmatprep.subr.mxu0 0.0
    %4313 = vmatpush1.msra.mxu0 0.0
    %4314 = vmatprep.mubr.f32.mxu0 0.0
    %4315 = vmatmul.mubr.f32.gmra.mrb[0].mxu0 %v4248
    %v4316 = vpop.f32.mrb[0].mxu0
    %v4317 = vadd.f32 %v2598, %v4316
    %v4318 = vpop.f32.mrb[0].mxu0
    %4319 = vdwg.mxu0
    %4320 = vmatprep.subr.mxu0 0.0
    %4321 = vmatpush1.msra.mxu0 %v2580
    %4322 = vmatprep.subr.mxu0 0.0
    %4323 = vmatpush1.msra.mxu0 %v2581
    %4324 = vmatprep.subr.mxu0 0.0
    %4325 = vmatpush1.msra.mxu0 %v2582
    %4326 = vmatprep.subr.mxu0 0.0
    %4327 = vmatpush1.msra.mxu0 %v2583
    %4328 = vmatprep.subr.mxu0 0.0
    %4329 = vmatpush1.msra.mxu0 0.0
    %4330 = vmatprep.subr.mxu0 0.0
    %4331 = vmatpush1.msra.mxu0 0.0
    %4332 = vmatprep.subr.mxu0 0.0
    %4333 = vmatpush1.msra.mxu0 0.0
    %4334 = vmatprep.subr.mxu0 0.0
    %4335 = vmatpush1.msra.mxu0 0.0
    %4336 = vmatprep.subr.mxu0 0.0
    %4337 = vmatpush1.msra.mxu0 0.0
    %4338 = vmatprep.subr.mxu0 0.0
    %4339 = vmatpush1.msra.mxu0 0.0
    %4340 = vmatprep.subr.mxu0 0.0
    %4341 = vmatpush1.msra.mxu0 0.0
    %4342 = vmatprep.subr.mxu0 0.0
    %4343 = vmatpush1.msra.mxu0 0.0
    %4344 = vmatprep.subr.mxu0 0.0
    %4345 = vmatpush1.msra.mxu0 0.0
    %4346 = vmatprep.subr.mxu0 0.0
    %4347 = vmatpush1.msra.mxu0 0.0
    %4348 = vmatprep.subr.mxu0 0.0
    %4349 = vmatpush1.msra.mxu0 0.0
    %4350 = vmatprep.subr.mxu0 0.0
    %4351 = vmatpush1.msra.mxu0 0.0
    %4352 = vmatprep.subr.mxu0 0.0
    %4353 = vmatpush1.msra.mxu0 0.0
    %4354 = vmatprep.subr.mxu0 0.0
    %4355 = vmatpush1.msra.mxu0 0.0
    %4356 = vmatprep.subr.mxu0 0.0
    %4357 = vmatpush1.msra.mxu0 0.0
    %4358 = vmatprep.subr.mxu0 0.0
    %4359 = vmatpush1.msra.mxu0 0.0
    %4360 = vmatprep.subr.mxu0 0.0
    %4361 = vmatpush1.msra.mxu0 0.0
    %4362 = vmatprep.subr.mxu0 0.0
    %4363 = vmatpush1.msra.mxu0 0.0
    %4364 = vmatprep.subr.mxu0 0.0
    %4365 = vmatpush1.msra.mxu0 0.0
    %4366 = vmatprep.subr.mxu0 0.0
    %4367 = vmatpush1.msra.mxu0 0.0
    %4368 = vmatprep.subr.mxu0 0.0
    %4369 = vmatpush1.msra.mxu0 0.0
    %4370 = vmatprep.subr.mxu0 0.0
    %4371 = vmatpush1.msra.mxu0 0.0
    %4372 = vmatprep.subr.mxu0 0.0
    %4373 = vmatpush1.msra.mxu0 0.0
    %4374 = vmatprep.subr.mxu0 0.0
    %4375 = vmatpush1.msra.mxu0 0.0
    %4376 = vmatprep.subr.mxu0 0.0
    %4377 = vmatpush1.msra.mxu0 0.0
    %4378 = vmatprep.subr.mxu0 0.0
    %4379 = vmatpush1.msra.mxu0 0.0
    %4380 = vmatprep.subr.mxu0 0.0
    %4381 = vmatpush1.msra.mxu0 0.0
    %4382 = vmatprep.subr.mxu0 0.0
    %4383 = vmatpush1.msra.mxu0 0.0
    %4384 = vmatprep.mubr.f32.mxu0 0.0
    %4385 = vmatmul.mubr.f32.gmra.mrb[0].mxu0 %v4248
    %v4386 = vpop.f32.mrb[0].mxu0
    %v4387 = vadd.f32 %v2674, %v4386
    %v4388 = vpop.f32.mrb[0].mxu0
    %4389 = vdwg.mxu0
    %4390 = vmatprep.subr.mxu0 0.0
    %4391 = vmatpush1.msra.mxu0 %v2585
    %4392 = vmatprep.subr.mxu0 0.0
    %4393 = vmatpush1.msra.mxu0 %v2586
    %4394 = vmatprep.subr.mxu0 0.0
    %4395 = vmatpush1.msra.mxu0 %v2587
    %4396 = vmatprep.subr.mxu0 0.0
    %4397 = vmatpush1.msra.mxu0 %v2588
    %4398 = vmatprep.subr.mxu0 0.0
    %4399 = vmatpush1.msra.mxu0 0.0
    %4400 = vmatprep.subr.mxu0 0.0
    %4401 = vmatpush1.msra.mxu0 0.0
    %4402 = vmatprep.subr.mxu0 0.0
    %4403 = vmatpush1.msra.mxu0 0.0
    %4404 = vmatprep.subr.mxu0 0.0
    %4405 = vmatpush1.msra.mxu0 0.0
    %4406 = vmatprep.subr.mxu0 0.0
    %4407 = vmatpush1.msra.mxu0 0.0
    %4408 = vmatprep.subr.mxu0 0.0
    %4409 = vmatpush1.msra.mxu0 0.0
    %4410 = vmatprep.subr.mxu0 0.0
    %4411 = vmatpush1.msra.mxu0 0.0
    %4412 = vmatprep.subr.mxu0 0.0
    %4413 = vmatpush1.msra.mxu0 0.0
    %4414 = vmatprep.subr.mxu0 0.0
    %4415 = vmatpush1.msra.mxu0 0.0
    %4416 = vmatprep.subr.mxu0 0.0
    %4417 = vmatpush1.msra.mxu0 0.0
    %4418 = vmatprep.subr.mxu0 0.0
    %4419 = vmatpush1.msra.mxu0 0.0
    %4420 = vmatprep.subr.mxu0 0.0
    %4421 = vmatpush1.msra.mxu0 0.0
    %4422 = vmatprep.subr.mxu0 0.0
    %4423 = vmatpush1.msra.mxu0 0.0
    %4424 = vmatprep.subr.mxu0 0.0
    %4425 = vmatpush1.msra.mxu0 0.0
    %4426 = vmatprep.subr.mxu0 0.0
    %4427 = vmatpush1.msra.mxu0 0.0
    %4428 = vmatprep.subr.mxu0 0.0
    %4429 = vmatpush1.msra.mxu0 0.0
    %4430 = vmatprep.subr.mxu0 0.0
    %4431 = vmatpush1.msra.mxu0 0.0
    %4432 = vmatprep.subr.mxu0 0.0
    %4433 = vmatpush1.msra.mxu0 0.0
    %4434 = vmatprep.subr.mxu0 0.0
    %4435 = vmatpush1.msra.mxu0 0.0
    %4436 = vmatprep.subr.mxu0 0.0
    %4437 = vmatpush1.msra.mxu0 0.0
    %4438 = vmatprep.subr.mxu0 0.0
    %4439 = vmatpush1.msra.mxu0 0.0
    %4440 = vmatprep.subr.mxu0 0.0
    %4441 = vmatpush1.msra.mxu0 0.0
    %4442 = vmatprep.subr.mxu0 0.0
    %4443 = vmatpush1.msra.mxu0 0.0
    %4444 = vmatprep.subr.mxu0 0.0
    %4445 = vmatpush1.msra.mxu0 0.0
    %4446 = vmatprep.subr.mxu0 0.0
    %4447 = vmatpush1.msra.mxu0 0.0
    %4448 = vmatprep.subr.mxu0 0.0
    %4449 = vmatpush1.msra.mxu0 0.0
    %4450 = vmatprep.subr.mxu0 0.0
    %4451 = vmatpush1.msra.mxu0 0.0
    %4452 = vmatprep.subr.mxu0 0.0
    %4453 = vmatpush1.msra.mxu0 0.0
    %4454 = vmatprep.mubr.f32.mxu0 0.0
    %4455 = vmatmul.mubr.f32.gmra.mrb[0].mxu0 %v4248
    %v4456 = vpop.f32.mrb[0].mxu0
    %v4457 = vadd.f32 %v2750, %v4456
    %v4458 = vpop.f32.mrb[0].mxu0
    %4459 = vdwg.mxu0
    %v4460 = vadd.f32 %v2302, %v4317
    %v4461 = vxor.u32 %v4460, 2147483648
    %v4462 = vmul.f32 %v4461, 1.442695
    %v4463 = vpow.pop %v4462
    %v4464 = vadd.f32 %v4463, 1.0
    %v4465 = vrcp.pop %v4464
    %v4466 = vmul.f32 1.0, %v4465
    %v4467 = vadd.f32 %v2434, %v4387
    %v4468 = vxor.u32 %v4467, 2147483648
    %v4469 = vmul.f32 %v4468, 1.442695
    %v4470 = vpow.pop %v4469
    %v4471 = vadd.f32 %v4470, 1.0
    %v4472 = vrcp.pop %v4471
    %v4473 = vmul.f32 1.0, %v4472
    %v4474 = vmul.f32 %v4466, %v4457
    %v4475 = vadd.f32 %v2566, %v4474
    %v4476 = vtanh.pop %v4475
    %v4477 = vsub.f32 1.0, %v4473
    %v4478 = vmul.f32 %v4477, %v4476
    %v4479 = vmul.f32 %v4473, %v4246
    %v4480 = vadd.f32 %v4478, %v4479
    %v4481 = vld [vmem:[%s9] sm:$0x1]
    %v4483 = vlaneseq
    %v4484 = vshrl.u32 %v4483, 7
    %v4485 = vsub.s32 0, %v4484
    %v4486 = vrot.slane %v4481, %v4485
    %v4488 = vmul.f32 %v2842, %v4486
    %v4489 = vmul.f32 %v3076, %v4486
    %v4490 = vmul.f32 %v3310, %v4486
    %v4491 = vmul.f32 %v3544, %v4486
    %v4492 = vmul.f32 %v3778, %v4486
    %v4493 = vmul.f32 %v4012, %v4486
    %v4494 = vmul.f32 %v4246, %v4486
    %v4495 = vmul.f32 %v4480, %v4486
    %vm4496 = vcmask 254976
    %v4497 = vsel %vm4496, %v4488, 0.0
    %4498 = vadd.xlane.f32.xlu0 %v4497
    %v4499 = vpop.xlane.xlu0 %4498
    %v4500 = vsel %vm4496, %v4489, 0.0
    %4501 = vadd.xlane.f32.xlu0 %v4500
    %v4502 = vpop.xlane.xlu0 %4501
    %v4503 = vsel %vm4496, %v4490, 0.0
    %4504 = vadd.xlane.f32.xlu0 %v4503
    %v4505 = vpop.xlane.xlu0 %4504
    %v4506 = vsel %vm4496, %v4491, 0.0
    %4507 = vadd.xlane.f32.xlu0 %v4506
    %v4508 = vpop.xlane.xlu0 %4507
    %v4509 = vsel %vm4496, %v4492, 0.0
    %4510 = vadd.xlane.f32.xlu0 %v4509
    %v4511 = vpop.xlane.xlu0 %4510
    %v4512 = vsel %vm4496, %v4493, 0.0
    %4513 = vadd.xlane.f32.xlu0 %v4512
    %v4514 = vpop.xlane.xlu0 %4513
    %v4515 = vsel %vm4496, %v4494, 0.0
    %4516 = vadd.xlane.f32.xlu0 %v4515
    %v4517 = vpop.xlane.xlu0 %4516
    %v4518 = vsel %vm4496, %v4495, 0.0
    %4519 = vadd.xlane.f32.xlu0 %v4518
    %v4520 = vpop.xlane.xlu0 %4519
    %v4521 = vld [vmem:[#allocation2] sm:$0x1]
    %v4523 = vlaneseq
    %v4524 = vshrl.u32 %v4523, 7
    %v4525 = vsub.s32 0, %v4524
    %v4526 = vrot.slane %v4521, %v4525
    %4527 = vset.pattern.permute.xlu0 0
    %4528 = vperm.xlu0 %4527, %v4526
    %v4529 = vpop.permute.xlu0 %4528
    %v4531 = vadd.f32 %v4499, %v4529
    %v4532 = vadd.f32 %v4502, %v4529
    %v4533 = vadd.f32 %v4505, %v4529
    %v4534 = vadd.f32 %v4508, %v4529
    %v4535 = vadd.f32 %v4511, %v4529
    %v4536 = vadd.f32 %v4514, %v4529
    %v4537 = vadd.f32 %v4517, %v4529
    %v4538 = vadd.f32 %v4520, %v4529
    %v4547 = vlaneseq
    %v4548 = vand.u32 %v4547, 127
    %v4549 = vlaneseq
    %v4550 = vshrl.u32 %v4549, 7
    %v4551 = vsub.s32 %v4548, %v4550
    %v4552 = vrot.slane %v4531, %v4551
    %v4553 = vlaneseq
    %v4554 = vshrl.u32 %v4553, 7
    %v4555 = vsub.s32 %v4548, %v4554
    %v4556 = vrot.slane %v4532, %v4555
    %v4557 = vlaneseq
    %v4558 = vshrl.u32 %v4557, 7
    %v4559 = vsub.s32 %v4548, %v4558
    %v4560 = vrot.slane %v4533, %v4559
    %v4561 = vlaneseq
    %v4562 = vshrl.u32 %v4561, 7
    %v4563 = vsub.s32 %v4548, %v4562
    %v4564 = vrot.slane %v4534, %v4563
    %v4565 = vlaneseq
    %v4566 = vshrl.u32 %v4565, 7
    %v4567 = vsub.s32 %v4548, %v4566
    %v4568 = vrot.slane %v4535, %v4567
    %v4569 = vlaneseq
    %v4570 = vshrl.u32 %v4569, 7
    %v4571 = vsub.s32 %v4548, %v4570
    %v4572 = vrot.slane %v4536, %v4571
    %v4573 = vlaneseq
    %v4574 = vshrl.u32 %v4573, 7
    %v4575 = vsub.s32 %v4548, %v4574
    %v4576 = vrot.slane %v4537, %v4575
    %v4577 = vlaneseq
    %v4578 = vshrl.u32 %v4577, 7
    %v4579 = vsub.s32 %v4548, %v4578
    %v4580 = vrot.slane %v4538, %v4579
    %vm4581 = vcmask 1041409
    %v4582 = vsel %vm4581, %v4556, %v4552
    %vm4583 = vcmask 1042434
    %v4584 = vsel %vm4583, %v4560, %v4582
    %vm4585 = vcmask 1043459
    %v4586 = vsel %vm4585, %v4564, %v4584
    %vm4587 = vcmask 1044484
    %v4588 = vsel %vm4587, %v4568, %v4586
    %vm4589 = vcmask 1045509
    %v4590 = vsel %vm4589, %v4572, %v4588
    %vm4591 = vcmask 1046534
    %v4592 = vsel %vm4591, %v4576, %v4590
    %vm4593 = vcmask 1047559
    %v4594 = vsel %vm4593, %v4580, %v4592
    %vm4596 = vcmask 15360
    %4597 = vst.msk [vmem:[%s11] sm:$0xff] %vm4596, %v4594
    // Predicated region
    $region58: #{tpu_custom_call.1} parent=1 // pred_check
      _
    $region59: #{tpu_custom_call.1} parent=1 // pred_check_branch
      %4599 = sbr.rel (0) target = $region61
    $region60: #{tpu_custom_call.1} parent=1 // pred_region
      _
    $region61: #{tpu_custom_call.1} parent=1 // pred_fallthru
      _
    // Predicated region
    $region62: #{tpu_custom_call.1} parent=1 // pred_check
      _
    $region63: #{tpu_custom_call.1} parent=1 // pred_check_branch
      %4601 = sbr.rel (0) target = $region65
    $region64: #{tpu_custom_call.1} parent=1 // pred_region
      _
    $region65: #{tpu_custom_call.1} parent=1 // pred_fallthru
      _
    %4602 = vsyncpa [#allocation4], 1
    %4603 = vsyncpa [#allocation6], 1

</llo_original>
